<compile_context>
chip_gen: v5e
topology: v5e:2x2
jax: 0.10.0
libtpu: 0.0.40
codegen_flags: <defaults>
</compile_context>

<pallas_src>
import functools

import jax
import jax.numpy as jnp
from jax.experimental import pallas as pl
from jax.experimental.pallas import tpu as pltpu

HP = 128          # lane-aligned (padded) hidden size
C_PAD = 128       # lane-aligned (padded) fc output width


def _full_block(shape):
    """BlockSpec covering the whole array (grid=(1,))."""
    nd = len(shape)
    return pl.BlockSpec(shape, lambda i, _nd=nd: (0,) * _nd)


# ---------------------------------------------------------------------------
# Fused forward kernel: layer-0 projection (embed folded) -> unrolled LSTM
# recurrence per layer -> fc, all in VMEM.
# ---------------------------------------------------------------------------
def _fused_kernel(num_layers, S, BP, Hp, *refs):
    x_ref, h0_ref, c0_ref = refs[0:3]
    idx = 3
    layer_refs = []
    for _ in range(num_layers):
        layer_refs.append((refs[idx], refs[idx + 1], refs[idx + 2]))
        idx += 3
    wfc_ref, bfc_ref = refs[idx], refs[idx + 1]
    out_ref, hN_ref, cN_ref = refs[idx + 2], refs[idx + 3], refs[idx + 4]
    y_scr = refs[idx + 5]                           # (S*BP, Hp) f32 scratch

    # y holds the full-sequence activations; rows t*BP + b, BP sublane-aligned.
    y = x_ref[...]                                  # (S*BP, F) f32

    for l, (wi_ref, wh_ref, b_ref) in enumerate(layer_refs):
        wi = wi_ref[...]                            # (K, 4*Hp) bf16
        wh = wh_ref[...]                            # (Hp, 4*Hp) bf16
        b = b_ref[...]                              # (1, 4*Hp) f32

        # Hoisted input projection + bias for the whole sequence (one matmul).
        gx = jnp.dot(y.astype(jnp.bfloat16), wi,
                     preferred_element_type=jnp.float32) + b   # (S*BP, 4*Hp)

        h = h0_ref[l]                               # (BP, Hp) f32
        c = c0_ref[l]                               # (BP, Hp) f32
        # Fully unrolled recurrence: only h @ W_hh + VPU/EUP work per step.
        for t in range(S):
            g = gx[t * BP:(t + 1) * BP, :] + jnp.dot(
                h.astype(jnp.bfloat16), wh,
                preferred_element_type=jnp.float32)            # (BP, 4*Hp)
            # PyTorch gate order i, f, g, o -- each slice is 128-lane aligned.
            i_g = jax.nn.sigmoid(g[:, 0 * Hp:1 * Hp])
            f_g = jax.nn.sigmoid(g[:, 1 * Hp:2 * Hp])
            g_g = jnp.tanh(g[:, 2 * Hp:3 * Hp])
            o_g = jax.nn.sigmoid(g[:, 3 * Hp:4 * Hp])
            c = f_g * c + i_g * g_g
            h = o_g * jnp.tanh(c)
            # (8,128)-aligned store of this timestep's hidden state.
            y_scr[t * BP:(t + 1) * BP, :] = h

        hN_ref[l] = h
        cN_ref[l] = c
        y = y_scr[...]                              # (S*BP, Hp) f32

    # fc into a lane-dense 128-wide slab (sliced to num_classes outside).
    out_ref[...] = (
        jnp.dot(y.astype(jnp.bfloat16), wfc_ref[...],
                preferred_element_type=jnp.float32)
        + bfc_ref[...]
    )


# ---------------------------------------------------------------------------
# Parameter initialization (PyTorch-equivalent layout, weights pre-transposed
# to (in_features, out_features)) and one-time kernel-ready preparation.
# ---------------------------------------------------------------------------
def init_params(key, num_classes, num_layers=3, hidden_size=64, embed_size=64,
                input_size=192):
    keys = jax.random.split(key, 4 + 4 * num_layers)
    p = {}
    s = 0.05
    p["embed_w_t"] = s * jax.random.normal(keys[0], (input_size, embed_size),
                                           jnp.float32)
    p["embed_b"] = s * jax.random.normal(keys[1], (embed_size,), jnp.float32)
    p["fc_w_t"] = s * jax.random.normal(keys[2], (hidden_size, num_classes),
                                        jnp.float32)
    p["fc_b"] = s * jax.random.normal(keys[3], (num_classes,), jnp.float32)
    for l in range(num_layers):
        in_sz = embed_size if l == 0 else hidden_size
        k = keys[4 + 4 * l: 8 + 4 * l]
        p[f"wih{l}_t"] = s * jax.random.normal(k[0], (in_sz, 4 * hidden_size),
                                               jnp.float32)
        p[f"whh{l}_t"] = s * jax.random.normal(k[1], (hidden_size,
                                                      4 * hidden_size),
                                               jnp.float32)
        # b = bias_ih + bias_hh (folded).
        p[f"b{l}"] = (s * jax.random.normal(k[2], (4 * hidden_size,),
                                            jnp.float32)
                      + s * jax.random.normal(k[3], (4 * hidden_size,),
                                              jnp.float32))
    return p


def _pad_gate_cols(w, H, Hp):
    """Pad each of the 4 gate column-blocks from H to Hp (zeros)."""
    blocks = [w[..., k * H:(k + 1) * H] for k in range(4)]
    pads = [(0, 0)] * (w.ndim - 1) + [(0, Hp - H)]
    return jnp.concatenate([jnp.pad(b, pads) for b in blocks], axis=-1)


def prepare_params(p, num_classes, num_layers=3, hidden_size=64):
    """One-time (load-time) fold/pad/cast into kernel-ready tensors."""
    H, Hp = hidden_size, HP
    out = {}
    for l in range(num_layers):
        wih = p[f"wih{l}_t"]                        # (in, 4H) f32
        whh = p[f"whh{l}_t"]                        # (H, 4H) f32
        b = p[f"b{l}"]                              # (4H,) f32
        if l == 0:
            # Fold embed Linear into layer-0 input projection (eval mode).
            wih = p["embed_w_t"] @ wih              # (192, 4H)
            b = p["embed_b"] @ p[f"wih{l}_t"] + b
        else:
            wih = jnp.pad(wih, ((0, Hp - H), (0, 0)))   # zero input rows
        whh = jnp.pad(whh, ((0, Hp - H), (0, 0)))
        out[f"wi{l}"] = _pad_gate_cols(wih, H, Hp).astype(jnp.bfloat16)
        out[f"wh{l}"] = _pad_gate_cols(whh, H, Hp).astype(jnp.bfloat16)
        out[f"b{l}"] = _pad_gate_cols(b.reshape(1, 4 * H), H, Hp).astype(
            jnp.float32)
    wfc = jnp.pad(p["fc_w_t"], ((0, Hp - H), (0, C_PAD - num_classes)))
    bfc = jnp.pad(p["fc_b"], (0, C_PAD - num_classes)).reshape(1, C_PAD)
    out["wfc"] = wfc.astype(jnp.bfloat16)
    out["bfc"] = bfc.astype(jnp.float32)
    return out


# ---------------------------------------------------------------------------
# Jitted forward wrapper around the single fused pallas_call.
# ---------------------------------------------------------------------------
@functools.partial(jax.jit,
                   static_argnames=("num_layers", "hidden_size", "num_classes"))
def lstm_model_simple_forward(prepped, x, h0, c0, num_layers=3, hidden_size=64,
                              num_classes=10):
    """x: (S, B, 192), h0/c0: (num_layers, B, H).

    Returns (y: (S, B, num_classes), (hN, cN): each (num_layers, B, H)).
    """
    S, B, F = x.shape
    H, Hp = hidden_size, HP
    BP = ((B + 7) // 8) * 8                          # sublane-aligned batch

    # Pad batch to BP so every per-timestep slice / store is (8,128)-aligned.
    x2d = jnp.pad(x, ((0, 0), (0, BP - B), (0, 0))).reshape(S * BP, F)
    h0p = jnp.pad(h0, ((0, 0), (0, BP - B), (0, Hp - H)))
    c0p = jnp.pad(c0, ((0, 0), (0, BP - B), (0, Hp - H)))

    args = [x2d, h0p, c0p]
    for l in range(num_layers):
        args += [prepped[f"wi{l}"], prepped[f"wh{l}"], prepped[f"b{l}"]]
    args += [prepped["wfc"], prepped["bfc"]]

    out_shape = (
        jax.ShapeDtypeStruct((S * BP, C_PAD), jnp.float32),
        jax.ShapeDtypeStruct((num_layers, BP, Hp), jnp.float32),
        jax.ShapeDtypeStruct((num_layers, BP, Hp), jnp.float32),
    )

    kernel = functools.partial(_fused_kernel, num_layers, S, BP, Hp)
    outp, hNp, cNp = pl.pallas_call(
        kernel,
        out_shape=out_shape,
        grid=(1,),
        in_specs=[_full_block(a.shape) for a in args],
        out_specs=[_full_block(s.shape) for s in out_shape],
        scratch_shapes=[pltpu.VMEM((S * BP, Hp), jnp.float32)],
        compiler_params=pltpu.CompilerParams(
            dimension_semantics=("arbitrary",)),
    )(*args)

    y = outp.reshape(S, BP, C_PAD)[:, :B, :num_classes]
    hN = hNp[:, :B, :H]
    cN = cNp[:, :B, :H]
    return y, (hN, cN)


# ---------------------------------------------------------------------------
# Pure-JAX reference (f32) for a sanity check.
# ---------------------------------------------------------------------------
def reference_forward(params, x, h0, c0, num_layers=3, hidden_size=64):
    S, B, _ = x.shape
    H = hidden_size
    y = x @ params["embed_w_t"] + params["embed_b"]      # embed (dropout=id)
    h_list, c_list = [], []
    for l in range(num_layers):
        wih, whh, b = params[f"wih{l}_t"], params[f"whh{l}_t"], params[f"b{l}"]
        h, c = h0[l], c0[l]
        outs = []
        for t in range(S):
            g = y[t] @ wih + h @ whh + b
            i = jax.nn.sigmoid(g[:, 0 * H:1 * H])
            f = jax.nn.sigmoid(g[:, 1 * H:2 * H])
            gg = jnp.tanh(g[:, 2 * H:3 * H])
            o = jax.nn.sigmoid(g[:, 3 * H:4 * H])
            c = f * c + i * gg
            h = o * jnp.tanh(c)
            outs.append(h)
        y = jnp.stack(outs, axis=0)
        h_list.append(h)
        c_list.append(c)
    out = y @ params["fc_w_t"] + params["fc_b"]
    return out, (jnp.stack(h_list), jnp.stack(c_list))


if __name__ == "__main__":
    NUM_CLASSES = 10
    NUM_LAYERS = 3
    HIDDEN = 64
    EMBED = 64
    SEQ, BATCH, IN_FEAT = 8, 2, 192

    key = jax.random.PRNGKey(0)
    k_param, k_x = jax.random.split(key)

    params = init_params(k_param, NUM_CLASSES, NUM_LAYERS, HIDDEN, EMBED,
                         IN_FEAT)
    prepped = prepare_params(params, NUM_CLASSES, NUM_LAYERS, HIDDEN)

    x = jax.random.normal(k_x, (SEQ, BATCH, IN_FEAT), jnp.float32)
    # initHidden(batch_size): zeros.
    h0 = jnp.zeros((NUM_LAYERS, BATCH, HIDDEN), jnp.float32)
    c0 = jnp.zeros((NUM_LAYERS, BATCH, HIDDEN), jnp.float32)

    y, (hN, cN) = lstm_model_simple_forward(
        prepped, x, h0, c0, num_layers=NUM_LAYERS, hidden_size=HIDDEN,
        num_classes=NUM_CLASSES)
    jax.block_until_ready((y, hN, cN))

    assert y.shape == (SEQ, BATCH, NUM_CLASSES)
    assert hN.shape == (NUM_LAYERS, BATCH, HIDDEN)
    assert cN.shape == (NUM_LAYERS, BATCH, HIDDEN)

    # Sanity check against the f32 pure-JAX reference (loose tolerance:
    # kernel uses bf16 MXU inputs with f32 accumulation).
    y_ref, (h_ref, c_ref) = reference_forward(params, x, h0, c0, NUM_LAYERS,
                                              HIDDEN)
    assert jnp.max(jnp.abs(y - y_ref)) < 0.1
    assert jnp.max(jnp.abs(hN - h_ref)) < 0.1
    assert jnp.max(jnp.abs(cN - c_ref)) < 0.1

    print("KERNEL_OK")
</pallas_src>

<mosaic_0001>
module attributes {stable_mosaic.version = 11 : i64} {
  func.func @_fused_kernel(%arg0: i32, %arg1: memref<64x192xf32, #tpu.memory_space<vmem>>, %arg2: memref<3x8x128xf32, #tpu.memory_space<vmem>>, %arg3: memref<3x8x128xf32, #tpu.memory_space<vmem>>, %arg4: memref<192x512xbf16, #tpu.memory_space<vmem>>, %arg5: memref<128x512xbf16, #tpu.memory_space<vmem>>, %arg6: memref<1x512xf32, #tpu.memory_space<vmem>>, %arg7: memref<128x512xbf16, #tpu.memory_space<vmem>>, %arg8: memref<128x512xbf16, #tpu.memory_space<vmem>>, %arg9: memref<1x512xf32, #tpu.memory_space<vmem>>, %arg10: memref<128x512xbf16, #tpu.memory_space<vmem>>, %arg11: memref<128x512xbf16, #tpu.memory_space<vmem>>, %arg12: memref<1x512xf32, #tpu.memory_space<vmem>>, %arg13: memref<128x128xbf16, #tpu.memory_space<vmem>>, %arg14: memref<1x128xf32, #tpu.memory_space<vmem>>, %arg15: memref<64x128xf32, #tpu.memory_space<vmem>>, %arg16: memref<3x8x128xf32, #tpu.memory_space<vmem>>, %arg17: memref<3x8x128xf32, #tpu.memory_space<vmem>>, %arg18: memref<64x128xf32, #tpu.memory_space<vmem>>) attributes {dimension_semantics = [#tpu.dimension_semantics<arbitrary>], iteration_bounds = array<i64: 1>, scalar_prefetch = 0 : i64, scratch_operands = 1 : i64, tpu.core_type = #tpu.core_type<tc>, window_params = [{pipeline_mode = #tpu.pipeline_mode<synchronous>, transform_indices = @transform_0, window_bounds = array<i64: 64, 192>}, {pipeline_mode = #tpu.pipeline_mode<synchronous>, transform_indices = @transform_1, window_bounds = array<i64: 3, 8, 128>}, {pipeline_mode = #tpu.pipeline_mode<synchronous>, transform_indices = @transform_2, window_bounds = array<i64: 3, 8, 128>}, {pipeline_mode = #tpu.pipeline_mode<synchronous>, transform_indices = @transform_3, window_bounds = array<i64: 192, 512>}, {pipeline_mode = #tpu.pipeline_mode<synchronous>, transform_indices = @transform_4, window_bounds = array<i64: 128, 512>}, {pipeline_mode = #tpu.pipeline_mode<synchronous>, transform_indices = @transform_5, window_bounds = array<i64: 1, 512>}, {pipeline_mode = #tpu.pipeline_mode<synchronous>, transform_indices = @transform_6, window_bounds = array<i64: 128, 512>}, {pipeline_mode = #tpu.pipeline_mode<synchronous>, transform_indices = @transform_7, window_bounds = array<i64: 128, 512>}, {pipeline_mode = #tpu.pipeline_mode<synchronous>, transform_indices = @transform_8, window_bounds = array<i64: 1, 512>}, {pipeline_mode = #tpu.pipeline_mode<synchronous>, transform_indices = @transform_9, window_bounds = array<i64: 128, 512>}, {pipeline_mode = #tpu.pipeline_mode<synchronous>, transform_indices = @transform_10, window_bounds = array<i64: 128, 512>}, {pipeline_mode = #tpu.pipeline_mode<synchronous>, transform_indices = @transform_11, window_bounds = array<i64: 1, 512>}, {pipeline_mode = #tpu.pipeline_mode<synchronous>, transform_indices = @transform_12, window_bounds = array<i64: 128, 128>}, {pipeline_mode = #tpu.pipeline_mode<synchronous>, transform_indices = @transform_13, window_bounds = array<i64: 1, 128>}, {pipeline_mode = #tpu.pipeline_mode<synchronous>, transform_indices = @transform_14, window_bounds = array<i64: 64, 128>}, {pipeline_mode = #tpu.pipeline_mode<synchronous>, transform_indices = @transform_15, window_bounds = array<i64: 3, 8, 128>}, {pipeline_mode = #tpu.pipeline_mode<synchronous>, transform_indices = @transform_16, window_bounds = array<i64: 3, 8, 128>}]} {
    %c0 = arith.constant 0 : index
    %c0_0 = arith.constant 0 : index
    %0 = vector.load %arg1[%c0, %c0_0] : memref<64x192xf32, #tpu.memory_space<vmem>>, vector<64x192xf32>
    %c0_1 = arith.constant 0 : index
    %c0_2 = arith.constant 0 : index
    %1 = vector.load %arg4[%c0_1, %c0_2] : memref<192x512xbf16, #tpu.memory_space<vmem>>, vector<192x512xbf16>
    %c0_3 = arith.constant 0 : index
    %c0_4 = arith.constant 0 : index
    %2 = vector.load %arg5[%c0_3, %c0_4] : memref<128x512xbf16, #tpu.memory_space<vmem>>, vector<128x512xbf16>
    %c0_5 = arith.constant 0 : index
    %c0_6 = arith.constant 0 : index
    %3 = vector.load %arg6[%c0_5, %c0_6] : memref<1x512xf32, #tpu.memory_space<vmem>>, vector<1x512xf32>
    %4 = arith.truncf %0 : vector<64x192xf32> to vector<64x192xbf16>
    %cst = arith.constant dense<0.000000e+00> : vector<64x512xf32>
    %5 = tpu.matmul %4, %1, %cst {dimension_numbers = #tpu.dot_dimension_numbers<[1], [0], [0], [1], [0, 0, 1, 1], [], []>} : vector<64x192xbf16>, vector<192x512xbf16>, vector<64x512xf32> -> vector<64x512xf32>
    %6 = vector.broadcast %3 : vector<1x512xf32> to vector<64x512xf32>
    %7 = arith.addf %5, %6 : vector<64x512xf32>
    %c0_7 = arith.constant 0 : index
    %c0_8 = arith.constant 0 : index
    %c0_9 = arith.constant 0 : index
    %8 = vector.load %arg2[%c0_7, %c0_8, %c0_9] : memref<3x8x128xf32, #tpu.memory_space<vmem>>, vector<1x8x128xf32>
    %9 = vector.shape_cast %8 : vector<1x8x128xf32> to vector<8x128xf32>
    %c0_10 = arith.constant 0 : index
    %c0_11 = arith.constant 0 : index
    %c0_12 = arith.constant 0 : index
    %10 = vector.load %arg3[%c0_10, %c0_11, %c0_12] : memref<3x8x128xf32, #tpu.memory_space<vmem>>, vector<1x8x128xf32>
    %11 = vector.shape_cast %10 : vector<1x8x128xf32> to vector<8x128xf32>
    %12 = vector.extract_strided_slice %7 {offsets = [0, 0], sizes = [8, 512], strides = [1, 1]} : vector<64x512xf32> to vector<8x512xf32>
    %13 = arith.truncf %9 : vector<8x128xf32> to vector<8x128xbf16>
    %cst_13 = arith.constant dense<0.000000e+00> : vector<8x512xf32>
    %14 = tpu.matmul %13, %2, %cst_13 {dimension_numbers = #tpu.dot_dimension_numbers<[1], [0], [0], [1], [0, 0, 1, 1], [], []>} : vector<8x128xbf16>, vector<128x512xbf16>, vector<8x512xf32> -> vector<8x512xf32>
    %15 = arith.addf %12, %14 : vector<8x512xf32>
    %16 = vector.extract_strided_slice %15 {offsets = [0, 0], sizes = [8, 128], strides = [1, 1]} : vector<8x512xf32> to vector<8x128xf32>
    %17 = arith.negf %16 : vector<8x128xf32>
    %18 = math.exp %17 : vector<8x128xf32>
    %cst_14 = arith.constant 1.000000e+00 : f32
    %19 = vector.broadcast %cst_14 : f32 to vector<8x128xf32>
    %20 = arith.addf %19, %18 : vector<8x128xf32>
    %21 = arith.divf %19, %20 : vector<8x128xf32>
    %22 = vector.extract_strided_slice %15 {offsets = [0, 128], sizes = [8, 128], strides = [1, 1]} : vector<8x512xf32> to vector<8x128xf32>
    %23 = arith.negf %22 : vector<8x128xf32>
    %24 = math.exp %23 : vector<8x128xf32>
    %cst_15 = arith.constant 1.000000e+00 : f32
    %25 = vector.broadcast %cst_15 : f32 to vector<8x128xf32>
    %26 = arith.addf %25, %24 : vector<8x128xf32>
    %27 = arith.divf %25, %26 : vector<8x128xf32>
    %28 = vector.extract_strided_slice %15 {offsets = [0, 256], sizes = [8, 128], strides = [1, 1]} : vector<8x512xf32> to vector<8x128xf32>
    %29 = math.tanh %28 : vector<8x128xf32>
    %30 = vector.extract_strided_slice %15 {offsets = [0, 384], sizes = [8, 128], strides = [1, 1]} : vector<8x512xf32> to vector<8x128xf32>
    %31 = arith.negf %30 : vector<8x128xf32>
    %32 = math.exp %31 : vector<8x128xf32>
    %cst_16 = arith.constant 1.000000e+00 : f32
    %33 = vector.broadcast %cst_16 : f32 to vector<8x128xf32>
    %34 = arith.addf %33, %32 : vector<8x128xf32>
    %35 = arith.divf %33, %34 : vector<8x128xf32>
    %36 = arith.mulf %27, %11 : vector<8x128xf32>
    %37 = arith.mulf %21, %29 : vector<8x128xf32>
    %38 = arith.addf %36, %37 : vector<8x128xf32>
    %39 = math.tanh %38 : vector<8x128xf32>
    %40 = arith.mulf %35, %39 : vector<8x128xf32>
    %c0_17 = arith.constant 0 : index
    %c0_18 = arith.constant 0 : index
    %41 = vector.load %arg18[%c0_17, %c0_18] : memref<64x128xf32, #tpu.memory_space<vmem>>, vector<8x128xf32>
    tpu.vector_store %arg18[%c0_17, %c0_18], %40 {strides = array<i32>} : memref<64x128xf32, #tpu.memory_space<vmem>>, vector<8x128xf32>,
    %42 = vector.extract_strided_slice %7 {offsets = [8, 0], sizes = [8, 512], strides = [1, 1]} : vector<64x512xf32> to vector<8x512xf32>
    %43 = arith.truncf %40 : vector<8x128xf32> to vector<8x128xbf16>
    %cst_19 = arith.constant dense<0.000000e+00> : vector<8x512xf32>
    %44 = tpu.matmul %43, %2, %cst_19 {dimension_numbers = #tpu.dot_dimension_numbers<[1], [0], [0], [1], [0, 0, 1, 1], [], []>} : vector<8x128xbf16>, vector<128x512xbf16>, vector<8x512xf32> -> vector<8x512xf32>
    %45 = arith.addf %42, %44 : vector<8x512xf32>
    %46 = vector.extract_strided_slice %45 {offsets = [0, 0], sizes = [8, 128], strides = [1, 1]} : vector<8x512xf32> to vector<8x128xf32>
    %47 = arith.negf %46 : vector<8x128xf32>
    %48 = math.exp %47 : vector<8x128xf32>
    %cst_20 = arith.constant 1.000000e+00 : f32
    %49 = vector.broadcast %cst_20 : f32 to vector<8x128xf32>
    %50 = arith.addf %49, %48 : vector<8x128xf32>
    %51 = arith.divf %49, %50 : vector<8x128xf32>
    %52 = vector.extract_strided_slice %45 {offsets = [0, 128], sizes = [8, 128], strides = [1, 1]} : vector<8x512xf32> to vector<8x128xf32>
    %53 = arith.negf %52 : vector<8x128xf32>
    %54 = math.exp %53 : vector<8x128xf32>
    %cst_21 = arith.constant 1.000000e+00 : f32
    %55 = vector.broadcast %cst_21 : f32 to vector<8x128xf32>
    %56 = arith.addf %55, %54 : vector<8x128xf32>
    %57 = arith.divf %55, %56 : vector<8x128xf32>
    %58 = vector.extract_strided_slice %45 {offsets = [0, 256], sizes = [8, 128], strides = [1, 1]} : vector<8x512xf32> to vector<8x128xf32>
    %59 = math.tanh %58 : vector<8x128xf32>
    %60 = vector.extract_strided_slice %45 {offsets = [0, 384], sizes = [8, 128], strides = [1, 1]} : vector<8x512xf32> to vector<8x128xf32>
    %61 = arith.negf %60 : vector<8x128xf32>
    %62 = math.exp %61 : vector<8x128xf32>
    %cst_22 = arith.constant 1.000000e+00 : f32
    %63 = vector.broadcast %cst_22 : f32 to vector<8x128xf32>
    %64 = arith.addf %63, %62 : vector<8x128xf32>
    %65 = arith.divf %63, %64 : vector<8x128xf32>
    %66 = arith.mulf %57, %38 : vector<8x128xf32>
    %67 = arith.mulf %51, %59 : vector<8x128xf32>
    %68 = arith.addf %66, %67 : vector<8x128xf32>
    %69 = math.tanh %68 : vector<8x128xf32>
    %70 = arith.mulf %65, %69 : vector<8x128xf32>
    %c8 = arith.constant 8 : index
    %c0_23 = arith.constant 0 : index
    %71 = vector.load %arg18[%c8, %c0_23] : memref<64x128xf32, #tpu.memory_space<vmem>>, vector<8x128xf32>
    tpu.vector_store %arg18[%c8, %c0_23], %70 {strides = array<i32>} : memref<64x128xf32, #tpu.memory_space<vmem>>, vector<8x128xf32>,
    %72 = vector.extract_strided_slice %7 {offsets = [16, 0], sizes = [8, 512], strides = [1, 1]} : vector<64x512xf32> to vector<8x512xf32>
    %73 = arith.truncf %70 : vector<8x128xf32> to vector<8x128xbf16>
    %cst_24 = arith.constant dense<0.000000e+00> : vector<8x512xf32>
    %74 = tpu.matmul %73, %2, %cst_24 {dimension_numbers = #tpu.dot_dimension_numbers<[1], [0], [0], [1], [0, 0, 1, 1], [], []>} : vector<8x128xbf16>, vector<128x512xbf16>, vector<8x512xf32> -> vector<8x512xf32>
    %75 = arith.addf %72, %74 : vector<8x512xf32>
    %76 = vector.extract_strided_slice %75 {offsets = [0, 0], sizes = [8, 128], strides = [1, 1]} : vector<8x512xf32> to vector<8x128xf32>
    %77 = arith.negf %76 : vector<8x128xf32>
    %78 = math.exp %77 : vector<8x128xf32>
    %cst_25 = arith.constant 1.000000e+00 : f32
    %79 = vector.broadcast %cst_25 : f32 to vector<8x128xf32>
    %80 = arith.addf %79, %78 : vector<8x128xf32>
    %81 = arith.divf %79, %80 : vector<8x128xf32>
    %82 = vector.extract_strided_slice %75 {offsets = [0, 128], sizes = [8, 128], strides = [1, 1]} : vector<8x512xf32> to vector<8x128xf32>
    %83 = arith.negf %82 : vector<8x128xf32>
    %84 = math.exp %83 : vector<8x128xf32>
    %cst_26 = arith.constant 1.000000e+00 : f32
    %85 = vector.broadcast %cst_26 : f32 to vector<8x128xf32>
    %86 = arith.addf %85, %84 : vector<8x128xf32>
    %87 = arith.divf %85, %86 : vector<8x128xf32>
    %88 = vector.extract_strided_slice %75 {offsets = [0, 256], sizes = [8, 128], strides = [1, 1]} : vector<8x512xf32> to vector<8x128xf32>
    %89 = math.tanh %88 : vector<8x128xf32>
    %90 = vector.extract_strided_slice %75 {offsets = [0, 384], sizes = [8, 128], strides = [1, 1]} : vector<8x512xf32> to vector<8x128xf32>
    %91 = arith.negf %90 : vector<8x128xf32>
    %92 = math.exp %91 : vector<8x128xf32>
    %cst_27 = arith.constant 1.000000e+00 : f32
    %93 = vector.broadcast %cst_27 : f32 to vector<8x128xf32>
    %94 = arith.addf %93, %92 : vector<8x128xf32>
    %95 = arith.divf %93, %94 : vector<8x128xf32>
    %96 = arith.mulf %87, %68 : vector<8x128xf32>
    %97 = arith.mulf %81, %89 : vector<8x128xf32>
    %98 = arith.addf %96, %97 : vector<8x128xf32>
    %99 = math.tanh %98 : vector<8x128xf32>
    %100 = arith.mulf %95, %99 : vector<8x128xf32>
    %c16 = arith.constant 16 : index
    %c0_28 = arith.constant 0 : index
    %101 = vector.load %arg18[%c16, %c0_28] : memref<64x128xf32, #tpu.memory_space<vmem>>, vector<8x128xf32>
    tpu.vector_store %arg18[%c16, %c0_28], %100 {strides = array<i32>} : memref<64x128xf32, #tpu.memory_space<vmem>>, vector<8x128xf32>,
    %102 = vector.extract_strided_slice %7 {offsets = [24, 0], sizes = [8, 512], strides = [1, 1]} : vector<64x512xf32> to vector<8x512xf32>
    %103 = arith.truncf %100 : vector<8x128xf32> to vector<8x128xbf16>
    %cst_29 = arith.constant dense<0.000000e+00> : vector<8x512xf32>
    %104 = tpu.matmul %103, %2, %cst_29 {dimension_numbers = #tpu.dot_dimension_numbers<[1], [0], [0], [1], [0, 0, 1, 1], [], []>} : vector<8x128xbf16>, vector<128x512xbf16>, vector<8x512xf32> -> vector<8x512xf32>
    %105 = arith.addf %102, %104 : vector<8x512xf32>
    %106 = vector.extract_strided_slice %105 {offsets = [0, 0], sizes = [8, 128], strides = [1, 1]} : vector<8x512xf32> to vector<8x128xf32>
    %107 = arith.negf %106 : vector<8x128xf32>
    %108 = math.exp %107 : vector<8x128xf32>
    %cst_30 = arith.constant 1.000000e+00 : f32
    %109 = vector.broadcast %cst_30 : f32 to vector<8x128xf32>
    %110 = arith.addf %109, %108 : vector<8x128xf32>
    %111 = arith.divf %109, %110 : vector<8x128xf32>
    %112 = vector.extract_strided_slice %105 {offsets = [0, 128], sizes = [8, 128], strides = [1, 1]} : vector<8x512xf32> to vector<8x128xf32>
    %113 = arith.negf %112 : vector<8x128xf32>
    %114 = math.exp %113 : vector<8x128xf32>
    %cst_31 = arith.constant 1.000000e+00 : f32
    %115 = vector.broadcast %cst_31 : f32 to vector<8x128xf32>
    %116 = arith.addf %115, %114 : vector<8x128xf32>
    %117 = arith.divf %115, %116 : vector<8x128xf32>
    %118 = vector.extract_strided_slice %105 {offsets = [0, 256], sizes = [8, 128], strides = [1, 1]} : vector<8x512xf32> to vector<8x128xf32>
    %119 = math.tanh %118 : vector<8x128xf32>
    %120 = vector.extract_strided_slice %105 {offsets = [0, 384], sizes = [8, 128], strides = [1, 1]} : vector<8x512xf32> to vector<8x128xf32>
    %121 = arith.negf %120 : vector<8x128xf32>
    %122 = math.exp %121 : vector<8x128xf32>
    %cst_32 = arith.constant 1.000000e+00 : f32
    %123 = vector.broadcast %cst_32 : f32 to vector<8x128xf32>
    %124 = arith.addf %123, %122 : vector<8x128xf32>
    %125 = arith.divf %123, %124 : vector<8x128xf32>
    %126 = arith.mulf %117, %98 : vector<8x128xf32>
    %127 = arith.mulf %111, %119 : vector<8x128xf32>
    %128 = arith.addf %126, %127 : vector<8x128xf32>
    %129 = math.tanh %128 : vector<8x128xf32>
    %130 = arith.mulf %125, %129 : vector<8x128xf32>
    %c24 = arith.constant 24 : index
    %c0_33 = arith.constant 0 : index
    %131 = vector.load %arg18[%c24, %c0_33] : memref<64x128xf32, #tpu.memory_space<vmem>>, vector<8x128xf32>
    tpu.vector_store %arg18[%c24, %c0_33], %130 {strides = array<i32>} : memref<64x128xf32, #tpu.memory_space<vmem>>, vector<8x128xf32>,
    %132 = vector.extract_strided_slice %7 {offsets = [32, 0], sizes = [8, 512], strides = [1, 1]} : vector<64x512xf32> to vector<8x512xf32>
    %133 = arith.truncf %130 : vector<8x128xf32> to vector<8x128xbf16>
    %cst_34 = arith.constant dense<0.000000e+00> : vector<8x512xf32>
    %134 = tpu.matmul %133, %2, %cst_34 {dimension_numbers = #tpu.dot_dimension_numbers<[1], [0], [0], [1], [0, 0, 1, 1], [], []>} : vector<8x128xbf16>, vector<128x512xbf16>, vector<8x512xf32> -> vector<8x512xf32>
    %135 = arith.addf %132, %134 : vector<8x512xf32>
    %136 = vector.extract_strided_slice %135 {offsets = [0, 0], sizes = [8, 128], strides = [1, 1]} : vector<8x512xf32> to vector<8x128xf32>
    %137 = arith.negf %136 : vector<8x128xf32>
    %138 = math.exp %137 : vector<8x128xf32>
    %cst_35 = arith.constant 1.000000e+00 : f32
    %139 = vector.broadcast %cst_35 : f32 to vector<8x128xf32>
    %140 = arith.addf %139, %138 : vector<8x128xf32>
    %141 = arith.divf %139, %140 : vector<8x128xf32>
    %142 = vector.extract_strided_slice %135 {offsets = [0, 128], sizes = [8, 128], strides = [1, 1]} : vector<8x512xf32> to vector<8x128xf32>
    %143 = arith.negf %142 : vector<8x128xf32>
    %144 = math.exp %143 : vector<8x128xf32>
    %cst_36 = arith.constant 1.000000e+00 : f32
    %145 = vector.broadcast %cst_36 : f32 to vector<8x128xf32>
    %146 = arith.addf %145, %144 : vector<8x128xf32>
    %147 = arith.divf %145, %146 : vector<8x128xf32>
    %148 = vector.extract_strided_slice %135 {offsets = [0, 256], sizes = [8, 128], strides = [1, 1]} : vector<8x512xf32> to vector<8x128xf32>
    %149 = math.tanh %148 : vector<8x128xf32>
    %150 = vector.extract_strided_slice %135 {offsets = [0, 384], sizes = [8, 128], strides = [1, 1]} : vector<8x512xf32> to vector<8x128xf32>
    %151 = arith.negf %150 : vector<8x128xf32>
    %152 = math.exp %151 : vector<8x128xf32>
    %cst_37 = arith.constant 1.000000e+00 : f32
    %153 = vector.broadcast %cst_37 : f32 to vector<8x128xf32>
    %154 = arith.addf %153, %152 : vector<8x128xf32>
    %155 = arith.divf %153, %154 : vector<8x128xf32>
    %156 = arith.mulf %147, %128 : vector<8x128xf32>
    %157 = arith.mulf %141, %149 : vector<8x128xf32>
    %158 = arith.addf %156, %157 : vector<8x128xf32>
    %159 = math.tanh %158 : vector<8x128xf32>
    %160 = arith.mulf %155, %159 : vector<8x128xf32>
    %c32 = arith.constant 32 : index
    %c0_38 = arith.constant 0 : index
    %161 = vector.load %arg18[%c32, %c0_38] : memref<64x128xf32, #tpu.memory_space<vmem>>, vector<8x128xf32>
    tpu.vector_store %arg18[%c32, %c0_38], %160 {strides = array<i32>} : memref<64x128xf32, #tpu.memory_space<vmem>>, vector<8x128xf32>,
    %162 = vector.extract_strided_slice %7 {offsets = [40, 0], sizes = [8, 512], strides = [1, 1]} : vector<64x512xf32> to vector<8x512xf32>
    %163 = arith.truncf %160 : vector<8x128xf32> to vector<8x128xbf16>
    %cst_39 = arith.constant dense<0.000000e+00> : vector<8x512xf32>
    %164 = tpu.matmul %163, %2, %cst_39 {dimension_numbers = #tpu.dot_dimension_numbers<[1], [0], [0], [1], [0, 0, 1, 1], [], []>} : vector<8x128xbf16>, vector<128x512xbf16>, vector<8x512xf32> -> vector<8x512xf32>
    %165 = arith.addf %162, %164 : vector<8x512xf32>
    %166 = vector.extract_strided_slice %165 {offsets = [0, 0], sizes = [8, 128], strides = [1, 1]} : vector<8x512xf32> to vector<8x128xf32>
    %167 = arith.negf %166 : vector<8x128xf32>
    %168 = math.exp %167 : vector<8x128xf32>
    %cst_40 = arith.constant 1.000000e+00 : f32
    %169 = vector.broadcast %cst_40 : f32 to vector<8x128xf32>
    %170 = arith.addf %169, %168 : vector<8x128xf32>
    %171 = arith.divf %169, %170 : vector<8x128xf32>
    %172 = vector.extract_strided_slice %165 {offsets = [0, 128], sizes = [8, 128], strides = [1, 1]} : vector<8x512xf32> to vector<8x128xf32>
    %173 = arith.negf %172 : vector<8x128xf32>
    %174 = math.exp %173 : vector<8x128xf32>
    %cst_41 = arith.constant 1.000000e+00 : f32
    %175 = vector.broadcast %cst_41 : f32 to vector<8x128xf32>
    %176 = arith.addf %175, %174 : vector<8x128xf32>
    %177 = arith.divf %175, %176 : vector<8x128xf32>
    %178 = vector.extract_strided_slice %165 {offsets = [0, 256], sizes = [8, 128], strides = [1, 1]} : vector<8x512xf32> to vector<8x128xf32>
    %179 = math.tanh %178 : vector<8x128xf32>
    %180 = vector.extract_strided_slice %165 {offsets = [0, 384], sizes = [8, 128], strides = [1, 1]} : vector<8x512xf32> to vector<8x128xf32>
    %181 = arith.negf %180 : vector<8x128xf32>
    %182 = math.exp %181 : vector<8x128xf32>
    %cst_42 = arith.constant 1.000000e+00 : f32
    %183 = vector.broadcast %cst_42 : f32 to vector<8x128xf32>
    %184 = arith.addf %183, %182 : vector<8x128xf32>
    %185 = arith.divf %183, %184 : vector<8x128xf32>
    %186 = arith.mulf %177, %158 : vector<8x128xf32>
    %187 = arith.mulf %171, %179 : vector<8x128xf32>
    %188 = arith.addf %186, %187 : vector<8x128xf32>
    %189 = math.tanh %188 : vector<8x128xf32>
    %190 = arith.mulf %185, %189 : vector<8x128xf32>
    %c40 = arith.constant 40 : index
    %c0_43 = arith.constant 0 : index
    %191 = vector.load %arg18[%c40, %c0_43] : memref<64x128xf32, #tpu.memory_space<vmem>>, vector<8x128xf32>
    tpu.vector_store %arg18[%c40, %c0_43], %190 {strides = array<i32>} : memref<64x128xf32, #tpu.memory_space<vmem>>, vector<8x128xf32>,
    %192 = vector.extract_strided_slice %7 {offsets = [48, 0], sizes = [8, 512], strides = [1, 1]} : vector<64x512xf32> to vector<8x512xf32>
    %193 = arith.truncf %190 : vector<8x128xf32> to vector<8x128xbf16>
    %cst_44 = arith.constant dense<0.000000e+00> : vector<8x512xf32>
    %194 = tpu.matmul %193, %2, %cst_44 {dimension_numbers = #tpu.dot_dimension_numbers<[1], [0], [0], [1], [0, 0, 1, 1], [], []>} : vector<8x128xbf16>, vector<128x512xbf16>, vector<8x512xf32> -> vector<8x512xf32>
    %195 = arith.addf %192, %194 : vector<8x512xf32>
    %196 = vector.extract_strided_slice %195 {offsets = [0, 0], sizes = [8, 128], strides = [1, 1]} : vector<8x512xf32> to vector<8x128xf32>
    %197 = arith.negf %196 : vector<8x128xf32>
    %198 = math.exp %197 : vector<8x128xf32>
    %cst_45 = arith.constant 1.000000e+00 : f32
    %199 = vector.broadcast %cst_45 : f32 to vector<8x128xf32>
    %200 = arith.addf %199, %198 : vector<8x128xf32>
    %201 = arith.divf %199, %200 : vector<8x128xf32>
    %202 = vector.extract_strided_slice %195 {offsets = [0, 128], sizes = [8, 128], strides = [1, 1]} : vector<8x512xf32> to vector<8x128xf32>
    %203 = arith.negf %202 : vector<8x128xf32>
    %204 = math.exp %203 : vector<8x128xf32>
    %cst_46 = arith.constant 1.000000e+00 : f32
    %205 = vector.broadcast %cst_46 : f32 to vector<8x128xf32>
    %206 = arith.addf %205, %204 : vector<8x128xf32>
    %207 = arith.divf %205, %206 : vector<8x128xf32>
    %208 = vector.extract_strided_slice %195 {offsets = [0, 256], sizes = [8, 128], strides = [1, 1]} : vector<8x512xf32> to vector<8x128xf32>
    %209 = math.tanh %208 : vector<8x128xf32>
    %210 = vector.extract_strided_slice %195 {offsets = [0, 384], sizes = [8, 128], strides = [1, 1]} : vector<8x512xf32> to vector<8x128xf32>
    %211 = arith.negf %210 : vector<8x128xf32>
    %212 = math.exp %211 : vector<8x128xf32>
    %cst_47 = arith.constant 1.000000e+00 : f32
    %213 = vector.broadcast %cst_47 : f32 to vector<8x128xf32>
    %214 = arith.addf %213, %212 : vector<8x128xf32>
    %215 = arith.divf %213, %214 : vector<8x128xf32>
    %216 = arith.mulf %207, %188 : vector<8x128xf32>
    %217 = arith.mulf %201, %209 : vector<8x128xf32>
    %218 = arith.addf %216, %217 : vector<8x128xf32>
    %219 = math.tanh %218 : vector<8x128xf32>
    %220 = arith.mulf %215, %219 : vector<8x128xf32>
    %c48 = arith.constant 48 : index
    %c0_48 = arith.constant 0 : index
    %221 = vector.load %arg18[%c48, %c0_48] : memref<64x128xf32, #tpu.memory_space<vmem>>, vector<8x128xf32>
    tpu.vector_store %arg18[%c48, %c0_48], %220 {strides = array<i32>} : memref<64x128xf32, #tpu.memory_space<vmem>>, vector<8x128xf32>,
    %222 = vector.extract_strided_slice %7 {offsets = [56, 0], sizes = [8, 512], strides = [1, 1]} : vector<64x512xf32> to vector<8x512xf32>
    %223 = arith.truncf %220 : vector<8x128xf32> to vector<8x128xbf16>
    %cst_49 = arith.constant dense<0.000000e+00> : vector<8x512xf32>
    %224 = tpu.matmul %223, %2, %cst_49 {dimension_numbers = #tpu.dot_dimension_numbers<[1], [0], [0], [1], [0, 0, 1, 1], [], []>} : vector<8x128xbf16>, vector<128x512xbf16>, vector<8x512xf32> -> vector<8x512xf32>
    %225 = arith.addf %222, %224 : vector<8x512xf32>
    %226 = vector.extract_strided_slice %225 {offsets = [0, 0], sizes = [8, 128], strides = [1, 1]} : vector<8x512xf32> to vector<8x128xf32>
    %227 = arith.negf %226 : vector<8x128xf32>
    %228 = math.exp %227 : vector<8x128xf32>
    %cst_50 = arith.constant 1.000000e+00 : f32
    %229 = vector.broadcast %cst_50 : f32 to vector<8x128xf32>
    %230 = arith.addf %229, %228 : vector<8x128xf32>
    %231 = arith.divf %229, %230 : vector<8x128xf32>
    %232 = vector.extract_strided_slice %225 {offsets = [0, 128], sizes = [8, 128], strides = [1, 1]} : vector<8x512xf32> to vector<8x128xf32>
    %233 = arith.negf %232 : vector<8x128xf32>
    %234 = math.exp %233 : vector<8x128xf32>
    %cst_51 = arith.constant 1.000000e+00 : f32
    %235 = vector.broadcast %cst_51 : f32 to vector<8x128xf32>
    %236 = arith.addf %235, %234 : vector<8x128xf32>
    %237 = arith.divf %235, %236 : vector<8x128xf32>
    %238 = vector.extract_strided_slice %225 {offsets = [0, 256], sizes = [8, 128], strides = [1, 1]} : vector<8x512xf32> to vector<8x128xf32>
    %239 = math.tanh %238 : vector<8x128xf32>
    %240 = vector.extract_strided_slice %225 {offsets = [0, 384], sizes = [8, 128], strides = [1, 1]} : vector<8x512xf32> to vector<8x128xf32>
    %241 = arith.negf %240 : vector<8x128xf32>
    %242 = math.exp %241 : vector<8x128xf32>
    %cst_52 = arith.constant 1.000000e+00 : f32
    %243 = vector.broadcast %cst_52 : f32 to vector<8x128xf32>
    %244 = arith.addf %243, %242 : vector<8x128xf32>
    %245 = arith.divf %243, %244 : vector<8x128xf32>
    %246 = arith.mulf %237, %218 : vector<8x128xf32>
    %247 = arith.mulf %231, %239 : vector<8x128xf32>
    %248 = arith.addf %246, %247 : vector<8x128xf32>
    %249 = math.tanh %248 : vector<8x128xf32>
    %250 = arith.mulf %245, %249 : vector<8x128xf32>
    %c56 = arith.constant 56 : index
    %c0_53 = arith.constant 0 : index
    %251 = vector.load %arg18[%c56, %c0_53] : memref<64x128xf32, #tpu.memory_space<vmem>>, vector<8x128xf32>
    tpu.vector_store %arg18[%c56, %c0_53], %250 {strides = array<i32>} : memref<64x128xf32, #tpu.memory_space<vmem>>, vector<8x128xf32>,
    %c0_54 = arith.constant 0 : index
    %c0_55 = arith.constant 0 : index
    %c0_56 = arith.constant 0 : index
    %252 = vector.load %arg16[%c0_54, %c0_55, %c0_56] : memref<3x8x128xf32, #tpu.memory_space<vmem>>, vector<1x8x128xf32>
    %253 = vector.shape_cast %252 : vector<1x8x128xf32> to vector<8x128xf32>
    %254 = vector.shape_cast %250 : vector<8x128xf32> to vector<1x8x128xf32>
    tpu.vector_store %arg16[%c0_54, %c0_55, %c0_56], %254 {strides = array<i32>} : memref<3x8x128xf32, #tpu.memory_space<vmem>>, vector<1x8x128xf32>,
    %c0_57 = arith.constant 0 : index
    %c0_58 = arith.constant 0 : index
    %c0_59 = arith.constant 0 : index
    %255 = vector.load %arg17[%c0_57, %c0_58, %c0_59] : memref<3x8x128xf32, #tpu.memory_space<vmem>>, vector<1x8x128xf32>
    %256 = vector.shape_cast %255 : vector<1x8x128xf32> to vector<8x128xf32>
    %257 = vector.shape_cast %248 : vector<8x128xf32> to vector<1x8x128xf32>
    tpu.vector_store %arg17[%c0_57, %c0_58, %c0_59], %257 {strides = array<i32>} : memref<3x8x128xf32, #tpu.memory_space<vmem>>, vector<1x8x128xf32>,
    %c0_60 = arith.constant 0 : index
    %c0_61 = arith.constant 0 : index
    %258 = vector.load %arg18[%c0_60, %c0_61] : memref<64x128xf32, #tpu.memory_space<vmem>>, vector<64x128xf32>
    %c0_62 = arith.constant 0 : index
    %c0_63 = arith.constant 0 : index
    %259 = vector.load %arg7[%c0_62, %c0_63] : memref<128x512xbf16, #tpu.memory_space<vmem>>, vector<128x512xbf16>
    %c0_64 = arith.constant 0 : index
    %c0_65 = arith.constant 0 : index
    %260 = vector.load %arg8[%c0_64, %c0_65] : memref<128x512xbf16, #tpu.memory_space<vmem>>, vector<128x512xbf16>
    %c0_66 = arith.constant 0 : index
    %c0_67 = arith.constant 0 : index
    %261 = vector.load %arg9[%c0_66, %c0_67] : memref<1x512xf32, #tpu.memory_space<vmem>>, vector<1x512xf32>
    %262 = arith.truncf %258 : vector<64x128xf32> to vector<64x128xbf16>
    %cst_68 = arith.constant dense<0.000000e+00> : vector<64x512xf32>
    %263 = tpu.matmul %262, %259, %cst_68 {dimension_numbers = #tpu.dot_dimension_numbers<[1], [0], [0], [1], [0, 0, 1, 1], [], []>} : vector<64x128xbf16>, vector<128x512xbf16>, vector<64x512xf32> -> vector<64x512xf32>
    %264 = vector.broadcast %261 : vector<1x512xf32> to vector<64x512xf32>
    %265 = arith.addf %263, %264 : vector<64x512xf32>
    %c1 = arith.constant 1 : index
    %c0_69 = arith.constant 0 : index
    %c0_70 = arith.constant 0 : index
    %266 = vector.load %arg2[%c1, %c0_69, %c0_70] : memref<3x8x128xf32, #tpu.memory_space<vmem>>, vector<1x8x128xf32>
    %267 = vector.shape_cast %266 : vector<1x8x128xf32> to vector<8x128xf32>
    %c1_71 = arith.constant 1 : index
    %c0_72 = arith.constant 0 : index
    %c0_73 = arith.constant 0 : index
    %268 = vector.load %arg3[%c1_71, %c0_72, %c0_73] : memref<3x8x128xf32, #tpu.memory_space<vmem>>, vector<1x8x128xf32>
    %269 = vector.shape_cast %268 : vector<1x8x128xf32> to vector<8x128xf32>
    %270 = vector.extract_strided_slice %265 {offsets = [0, 0], sizes = [8, 512], strides = [1, 1]} : vector<64x512xf32> to vector<8x512xf32>
    %271 = arith.truncf %267 : vector<8x128xf32> to vector<8x128xbf16>
    %cst_74 = arith.constant dense<0.000000e+00> : vector<8x512xf32>
    %272 = tpu.matmul %271, %260, %cst_74 {dimension_numbers = #tpu.dot_dimension_numbers<[1], [0], [0], [1], [0, 0, 1, 1], [], []>} : vector<8x128xbf16>, vector<128x512xbf16>, vector<8x512xf32> -> vector<8x512xf32>
    %273 = arith.addf %270, %272 : vector<8x512xf32>
    %274 = vector.extract_strided_slice %273 {offsets = [0, 0], sizes = [8, 128], strides = [1, 1]} : vector<8x512xf32> to vector<8x128xf32>
    %275 = arith.negf %274 : vector<8x128xf32>
    %276 = math.exp %275 : vector<8x128xf32>
    %cst_75 = arith.constant 1.000000e+00 : f32
    %277 = vector.broadcast %cst_75 : f32 to vector<8x128xf32>
    %278 = arith.addf %277, %276 : vector<8x128xf32>
    %279 = arith.divf %277, %278 : vector<8x128xf32>
    %280 = vector.extract_strided_slice %273 {offsets = [0, 128], sizes = [8, 128], strides = [1, 1]} : vector<8x512xf32> to vector<8x128xf32>
    %281 = arith.negf %280 : vector<8x128xf32>
    %282 = math.exp %281 : vector<8x128xf32>
    %cst_76 = arith.constant 1.000000e+00 : f32
    %283 = vector.broadcast %cst_76 : f32 to vector<8x128xf32>
    %284 = arith.addf %283, %282 : vector<8x128xf32>
    %285 = arith.divf %283, %284 : vector<8x128xf32>
    %286 = vector.extract_strided_slice %273 {offsets = [0, 256], sizes = [8, 128], strides = [1, 1]} : vector<8x512xf32> to vector<8x128xf32>
    %287 = math.tanh %286 : vector<8x128xf32>
    %288 = vector.extract_strided_slice %273 {offsets = [0, 384], sizes = [8, 128], strides = [1, 1]} : vector<8x512xf32> to vector<8x128xf32>
    %289 = arith.negf %288 : vector<8x128xf32>
    %290 = math.exp %289 : vector<8x128xf32>
    %cst_77 = arith.constant 1.000000e+00 : f32
    %291 = vector.broadcast %cst_77 : f32 to vector<8x128xf32>
    %292 = arith.addf %291, %290 : vector<8x128xf32>
    %293 = arith.divf %291, %292 : vector<8x128xf32>
    %294 = arith.mulf %285, %269 : vector<8x128xf32>
    %295 = arith.mulf %279, %287 : vector<8x128xf32>
    %296 = arith.addf %294, %295 : vector<8x128xf32>
    %297 = math.tanh %296 : vector<8x128xf32>
    %298 = arith.mulf %293, %297 : vector<8x128xf32>
    %c0_78 = arith.constant 0 : index
    %c0_79 = arith.constant 0 : index
    %299 = vector.load %arg18[%c0_78, %c0_79] : memref<64x128xf32, #tpu.memory_space<vmem>>, vector<8x128xf32>
    tpu.vector_store %arg18[%c0_78, %c0_79], %298 {strides = array<i32>} : memref<64x128xf32, #tpu.memory_space<vmem>>, vector<8x128xf32>,
    %300 = vector.extract_strided_slice %265 {offsets = [8, 0], sizes = [8, 512], strides = [1, 1]} : vector<64x512xf32> to vector<8x512xf32>
    %301 = arith.truncf %298 : vector<8x128xf32> to vector<8x128xbf16>
    %cst_80 = arith.constant dense<0.000000e+00> : vector<8x512xf32>
    %302 = tpu.matmul %301, %260, %cst_80 {dimension_numbers = #tpu.dot_dimension_numbers<[1], [0], [0], [1], [0, 0, 1, 1], [], []>} : vector<8x128xbf16>, vector<128x512xbf16>, vector<8x512xf32> -> vector<8x512xf32>
    %303 = arith.addf %300, %302 : vector<8x512xf32>
    %304 = vector.extract_strided_slice %303 {offsets = [0, 0], sizes = [8, 128], strides = [1, 1]} : vector<8x512xf32> to vector<8x128xf32>
    %305 = arith.negf %304 : vector<8x128xf32>
    %306 = math.exp %305 : vector<8x128xf32>
    %cst_81 = arith.constant 1.000000e+00 : f32
    %307 = vector.broadcast %cst_81 : f32 to vector<8x128xf32>
    %308 = arith.addf %307, %306 : vector<8x128xf32>
    %309 = arith.divf %307, %308 : vector<8x128xf32>
    %310 = vector.extract_strided_slice %303 {offsets = [0, 128], sizes = [8, 128], strides = [1, 1]} : vector<8x512xf32> to vector<8x128xf32>
    %311 = arith.negf %310 : vector<8x128xf32>
    %312 = math.exp %311 : vector<8x128xf32>
    %cst_82 = arith.constant 1.000000e+00 : f32
    %313 = vector.broadcast %cst_82 : f32 to vector<8x128xf32>
    %314 = arith.addf %313, %312 : vector<8x128xf32>
    %315 = arith.divf %313, %314 : vector<8x128xf32>
    %316 = vector.extract_strided_slice %303 {offsets = [0, 256], sizes = [8, 128], strides = [1, 1]} : vector<8x512xf32> to vector<8x128xf32>
    %317 = math.tanh %316 : vector<8x128xf32>
    %318 = vector.extract_strided_slice %303 {offsets = [0, 384], sizes = [8, 128], strides = [1, 1]} : vector<8x512xf32> to vector<8x128xf32>
    %319 = arith.negf %318 : vector<8x128xf32>
    %320 = math.exp %319 : vector<8x128xf32>
    %cst_83 = arith.constant 1.000000e+00 : f32
    %321 = vector.broadcast %cst_83 : f32 to vector<8x128xf32>
    %322 = arith.addf %321, %320 : vector<8x128xf32>
    %323 = arith.divf %321, %322 : vector<8x128xf32>
    %324 = arith.mulf %315, %296 : vector<8x128xf32>
    %325 = arith.mulf %309, %317 : vector<8x128xf32>
    %326 = arith.addf %324, %325 : vector<8x128xf32>
    %327 = math.tanh %326 : vector<8x128xf32>
    %328 = arith.mulf %323, %327 : vector<8x128xf32>
    %c8_84 = arith.constant 8 : index
    %c0_85 = arith.constant 0 : index
    %329 = vector.load %arg18[%c8_84, %c0_85] : memref<64x128xf32, #tpu.memory_space<vmem>>, vector<8x128xf32>
    tpu.vector_store %arg18[%c8_84, %c0_85], %328 {strides = array<i32>} : memref<64x128xf32, #tpu.memory_space<vmem>>, vector<8x128xf32>,
    %330 = vector.extract_strided_slice %265 {offsets = [16, 0], sizes = [8, 512], strides = [1, 1]} : vector<64x512xf32> to vector<8x512xf32>
    %331 = arith.truncf %328 : vector<8x128xf32> to vector<8x128xbf16>
    %cst_86 = arith.constant dense<0.000000e+00> : vector<8x512xf32>
    %332 = tpu.matmul %331, %260, %cst_86 {dimension_numbers = #tpu.dot_dimension_numbers<[1], [0], [0], [1], [0, 0, 1, 1], [], []>} : vector<8x128xbf16>, vector<128x512xbf16>, vector<8x512xf32> -> vector<8x512xf32>
    %333 = arith.addf %330, %332 : vector<8x512xf32>
    %334 = vector.extract_strided_slice %333 {offsets = [0, 0], sizes = [8, 128], strides = [1, 1]} : vector<8x512xf32> to vector<8x128xf32>
    %335 = arith.negf %334 : vector<8x128xf32>
    %336 = math.exp %335 : vector<8x128xf32>
    %cst_87 = arith.constant 1.000000e+00 : f32
    %337 = vector.broadcast %cst_87 : f32 to vector<8x128xf32>
    %338 = arith.addf %337, %336 : vector<8x128xf32>
    %339 = arith.divf %337, %338 : vector<8x128xf32>
    %340 = vector.extract_strided_slice %333 {offsets = [0, 128], sizes = [8, 128], strides = [1, 1]} : vector<8x512xf32> to vector<8x128xf32>
    %341 = arith.negf %340 : vector<8x128xf32>
    %342 = math.exp %341 : vector<8x128xf32>
    %cst_88 = arith.constant 1.000000e+00 : f32
    %343 = vector.broadcast %cst_88 : f32 to vector<8x128xf32>
    %344 = arith.addf %343, %342 : vector<8x128xf32>
    %345 = arith.divf %343, %344 : vector<8x128xf32>
    %346 = vector.extract_strided_slice %333 {offsets = [0, 256], sizes = [8, 128], strides = [1, 1]} : vector<8x512xf32> to vector<8x128xf32>
    %347 = math.tanh %346 : vector<8x128xf32>
    %348 = vector.extract_strided_slice %333 {offsets = [0, 384], sizes = [8, 128], strides = [1, 1]} : vector<8x512xf32> to vector<8x128xf32>
    %349 = arith.negf %348 : vector<8x128xf32>
    %350 = math.exp %349 : vector<8x128xf32>
    %cst_89 = arith.constant 1.000000e+00 : f32
    %351 = vector.broadcast %cst_89 : f32 to vector<8x128xf32>
    %352 = arith.addf %351, %350 : vector<8x128xf32>
    %353 = arith.divf %351, %352 : vector<8x128xf32>
    %354 = arith.mulf %345, %326 : vector<8x128xf32>
    %355 = arith.mulf %339, %347 : vector<8x128xf32>
    %356 = arith.addf %354, %355 : vector<8x128xf32>
    %357 = math.tanh %356 : vector<8x128xf32>
    %358 = arith.mulf %353, %357 : vector<8x128xf32>
    %c16_90 = arith.constant 16 : index
    %c0_91 = arith.constant 0 : index
    %359 = vector.load %arg18[%c16_90, %c0_91] : memref<64x128xf32, #tpu.memory_space<vmem>>, vector<8x128xf32>
    tpu.vector_store %arg18[%c16_90, %c0_91], %358 {strides = array<i32>} : memref<64x128xf32, #tpu.memory_space<vmem>>, vector<8x128xf32>,
    %360 = vector.extract_strided_slice %265 {offsets = [24, 0], sizes = [8, 512], strides = [1, 1]} : vector<64x512xf32> to vector<8x512xf32>
    %361 = arith.truncf %358 : vector<8x128xf32> to vector<8x128xbf16>
    %cst_92 = arith.constant dense<0.000000e+00> : vector<8x512xf32>
    %362 = tpu.matmul %361, %260, %cst_92 {dimension_numbers = #tpu.dot_dimension_numbers<[1], [0], [0], [1], [0, 0, 1, 1], [], []>} : vector<8x128xbf16>, vector<128x512xbf16>, vector<8x512xf32> -> vector<8x512xf32>
    %363 = arith.addf %360, %362 : vector<8x512xf32>
    %364 = vector.extract_strided_slice %363 {offsets = [0, 0], sizes = [8, 128], strides = [1, 1]} : vector<8x512xf32> to vector<8x128xf32>
    %365 = arith.negf %364 : vector<8x128xf32>
    %366 = math.exp %365 : vector<8x128xf32>
    %cst_93 = arith.constant 1.000000e+00 : f32
    %367 = vector.broadcast %cst_93 : f32 to vector<8x128xf32>
    %368 = arith.addf %367, %366 : vector<8x128xf32>
    %369 = arith.divf %367, %368 : vector<8x128xf32>
    %370 = vector.extract_strided_slice %363 {offsets = [0, 128], sizes = [8, 128], strides = [1, 1]} : vector<8x512xf32> to vector<8x128xf32>
    %371 = arith.negf %370 : vector<8x128xf32>
    %372 = math.exp %371 : vector<8x128xf32>
    %cst_94 = arith.constant 1.000000e+00 : f32
    %373 = vector.broadcast %cst_94 : f32 to vector<8x128xf32>
    %374 = arith.addf %373, %372 : vector<8x128xf32>
    %375 = arith.divf %373, %374 : vector<8x128xf32>
    %376 = vector.extract_strided_slice %363 {offsets = [0, 256], sizes = [8, 128], strides = [1, 1]} : vector<8x512xf32> to vector<8x128xf32>
    %377 = math.tanh %376 : vector<8x128xf32>
    %378 = vector.extract_strided_slice %363 {offsets = [0, 384], sizes = [8, 128], strides = [1, 1]} : vector<8x512xf32> to vector<8x128xf32>
    %379 = arith.negf %378 : vector<8x128xf32>
    %380 = math.exp %379 : vector<8x128xf32>
    %cst_95 = arith.constant 1.000000e+00 : f32
    %381 = vector.broadcast %cst_95 : f32 to vector<8x128xf32>
    %382 = arith.addf %381, %380 : vector<8x128xf32>
    %383 = arith.divf %381, %382 : vector<8x128xf32>
    %384 = arith.mulf %375, %356 : vector<8x128xf32>
    %385 = arith.mulf %369, %377 : vector<8x128xf32>
    %386 = arith.addf %384, %385 : vector<8x128xf32>
    %387 = math.tanh %386 : vector<8x128xf32>
    %388 = arith.mulf %383, %387 : vector<8x128xf32>
    %c24_96 = arith.constant 24 : index
    %c0_97 = arith.constant 0 : index
    %389 = vector.load %arg18[%c24_96, %c0_97] : memref<64x128xf32, #tpu.memory_space<vmem>>, vector<8x128xf32>
    tpu.vector_store %arg18[%c24_96, %c0_97], %388 {strides = array<i32>} : memref<64x128xf32, #tpu.memory_space<vmem>>, vector<8x128xf32>,
    %390 = vector.extract_strided_slice %265 {offsets = [32, 0], sizes = [8, 512], strides = [1, 1]} : vector<64x512xf32> to vector<8x512xf32>
    %391 = arith.truncf %388 : vector<8x128xf32> to vector<8x128xbf16>
    %cst_98 = arith.constant dense<0.000000e+00> : vector<8x512xf32>
    %392 = tpu.matmul %391, %260, %cst_98 {dimension_numbers = #tpu.dot_dimension_numbers<[1], [0], [0], [1], [0, 0, 1, 1], [], []>} : vector<8x128xbf16>, vector<128x512xbf16>, vector<8x512xf32> -> vector<8x512xf32>
    %393 = arith.addf %390, %392 : vector<8x512xf32>
    %394 = vector.extract_strided_slice %393 {offsets = [0, 0], sizes = [8, 128], strides = [1, 1]} : vector<8x512xf32> to vector<8x128xf32>
    %395 = arith.negf %394 : vector<8x128xf32>
    %396 = math.exp %395 : vector<8x128xf32>
    %cst_99 = arith.constant 1.000000e+00 : f32
    %397 = vector.broadcast %cst_99 : f32 to vector<8x128xf32>
    %398 = arith.addf %397, %396 : vector<8x128xf32>
    %399 = arith.divf %397, %398 : vector<8x128xf32>
    %400 = vector.extract_strided_slice %393 {offsets = [0, 128], sizes = [8, 128], strides = [1, 1]} : vector<8x512xf32> to vector<8x128xf32>
    %401 = arith.negf %400 : vector<8x128xf32>
    %402 = math.exp %401 : vector<8x128xf32>
    %cst_100 = arith.constant 1.000000e+00 : f32
    %403 = vector.broadcast %cst_100 : f32 to vector<8x128xf32>
    %404 = arith.addf %403, %402 : vector<8x128xf32>
    %405 = arith.divf %403, %404 : vector<8x128xf32>
    %406 = vector.extract_strided_slice %393 {offsets = [0, 256], sizes = [8, 128], strides = [1, 1]} : vector<8x512xf32> to vector<8x128xf32>
    %407 = math.tanh %406 : vector<8x128xf32>
    %408 = vector.extract_strided_slice %393 {offsets = [0, 384], sizes = [8, 128], strides = [1, 1]} : vector<8x512xf32> to vector<8x128xf32>
    %409 = arith.negf %408 : vector<8x128xf32>
    %410 = math.exp %409 : vector<8x128xf32>
    %cst_101 = arith.constant 1.000000e+00 : f32
    %411 = vector.broadcast %cst_101 : f32 to vector<8x128xf32>
    %412 = arith.addf %411, %410 : vector<8x128xf32>
    %413 = arith.divf %411, %412 : vector<8x128xf32>
    %414 = arith.mulf %405, %386 : vector<8x128xf32>
    %415 = arith.mulf %399, %407 : vector<8x128xf32>
    %416 = arith.addf %414, %415 : vector<8x128xf32>
    %417 = math.tanh %416 : vector<8x128xf32>
    %418 = arith.mulf %413, %417 : vector<8x128xf32>
    %c32_102 = arith.constant 32 : index
    %c0_103 = arith.constant 0 : index
    %419 = vector.load %arg18[%c32_102, %c0_103] : memref<64x128xf32, #tpu.memory_space<vmem>>, vector<8x128xf32>
    tpu.vector_store %arg18[%c32_102, %c0_103], %418 {strides = array<i32>} : memref<64x128xf32, #tpu.memory_space<vmem>>, vector<8x128xf32>,
    %420 = vector.extract_strided_slice %265 {offsets = [40, 0], sizes = [8, 512], strides = [1, 1]} : vector<64x512xf32> to vector<8x512xf32>
    %421 = arith.truncf %418 : vector<8x128xf32> to vector<8x128xbf16>
    %cst_104 = arith.constant dense<0.000000e+00> : vector<8x512xf32>
    %422 = tpu.matmul %421, %260, %cst_104 {dimension_numbers = #tpu.dot_dimension_numbers<[1], [0], [0], [1], [0, 0, 1, 1], [], []>} : vector<8x128xbf16>, vector<128x512xbf16>, vector<8x512xf32> -> vector<8x512xf32>
    %423 = arith.addf %420, %422 : vector<8x512xf32>
    %424 = vector.extract_strided_slice %423 {offsets = [0, 0], sizes = [8, 128], strides = [1, 1]} : vector<8x512xf32> to vector<8x128xf32>
    %425 = arith.negf %424 : vector<8x128xf32>
    %426 = math.exp %425 : vector<8x128xf32>
    %cst_105 = arith.constant 1.000000e+00 : f32
    %427 = vector.broadcast %cst_105 : f32 to vector<8x128xf32>
    %428 = arith.addf %427, %426 : vector<8x128xf32>
    %429 = arith.divf %427, %428 : vector<8x128xf32>
    %430 = vector.extract_strided_slice %423 {offsets = [0, 128], sizes = [8, 128], strides = [1, 1]} : vector<8x512xf32> to vector<8x128xf32>
    %431 = arith.negf %430 : vector<8x128xf32>
    %432 = math.exp %431 : vector<8x128xf32>
    %cst_106 = arith.constant 1.000000e+00 : f32
    %433 = vector.broadcast %cst_106 : f32 to vector<8x128xf32>
    %434 = arith.addf %433, %432 : vector<8x128xf32>
    %435 = arith.divf %433, %434 : vector<8x128xf32>
    %436 = vector.extract_strided_slice %423 {offsets = [0, 256], sizes = [8, 128], strides = [1, 1]} : vector<8x512xf32> to vector<8x128xf32>
    %437 = math.tanh %436 : vector<8x128xf32>
    %438 = vector.extract_strided_slice %423 {offsets = [0, 384], sizes = [8, 128], strides = [1, 1]} : vector<8x512xf32> to vector<8x128xf32>
    %439 = arith.negf %438 : vector<8x128xf32>
    %440 = math.exp %439 : vector<8x128xf32>
    %cst_107 = arith.constant 1.000000e+00 : f32
    %441 = vector.broadcast %cst_107 : f32 to vector<8x128xf32>
    %442 = arith.addf %441, %440 : vector<8x128xf32>
    %443 = arith.divf %441, %442 : vector<8x128xf32>
    %444 = arith.mulf %435, %416 : vector<8x128xf32>
    %445 = arith.mulf %429, %437 : vector<8x128xf32>
    %446 = arith.addf %444, %445 : vector<8x128xf32>
    %447 = math.tanh %446 : vector<8x128xf32>
    %448 = arith.mulf %443, %447 : vector<8x128xf32>
    %c40_108 = arith.constant 40 : index
    %c0_109 = arith.constant 0 : index
    %449 = vector.load %arg18[%c40_108, %c0_109] : memref<64x128xf32, #tpu.memory_space<vmem>>, vector<8x128xf32>
    tpu.vector_store %arg18[%c40_108, %c0_109], %448 {strides = array<i32>} : memref<64x128xf32, #tpu.memory_space<vmem>>, vector<8x128xf32>,
    %450 = vector.extract_strided_slice %265 {offsets = [48, 0], sizes = [8, 512], strides = [1, 1]} : vector<64x512xf32> to vector<8x512xf32>
    %451 = arith.truncf %448 : vector<8x128xf32> to vector<8x128xbf16>
    %cst_110 = arith.constant dense<0.000000e+00> : vector<8x512xf32>
    %452 = tpu.matmul %451, %260, %cst_110 {dimension_numbers = #tpu.dot_dimension_numbers<[1], [0], [0], [1], [0, 0, 1, 1], [], []>} : vector<8x128xbf16>, vector<128x512xbf16>, vector<8x512xf32> -> vector<8x512xf32>
    %453 = arith.addf %450, %452 : vector<8x512xf32>
    %454 = vector.extract_strided_slice %453 {offsets = [0, 0], sizes = [8, 128], strides = [1, 1]} : vector<8x512xf32> to vector<8x128xf32>
    %455 = arith.negf %454 : vector<8x128xf32>
    %456 = math.exp %455 : vector<8x128xf32>
    %cst_111 = arith.constant 1.000000e+00 : f32
    %457 = vector.broadcast %cst_111 : f32 to vector<8x128xf32>
    %458 = arith.addf %457, %456 : vector<8x128xf32>
    %459 = arith.divf %457, %458 : vector<8x128xf32>
    %460 = vector.extract_strided_slice %453 {offsets = [0, 128], sizes = [8, 128], strides = [1, 1]} : vector<8x512xf32> to vector<8x128xf32>
    %461 = arith.negf %460 : vector<8x128xf32>
    %462 = math.exp %461 : vector<8x128xf32>
    %cst_112 = arith.constant 1.000000e+00 : f32
    %463 = vector.broadcast %cst_112 : f32 to vector<8x128xf32>
    %464 = arith.addf %463, %462 : vector<8x128xf32>
    %465 = arith.divf %463, %464 : vector<8x128xf32>
    %466 = vector.extract_strided_slice %453 {offsets = [0, 256], sizes = [8, 128], strides = [1, 1]} : vector<8x512xf32> to vector<8x128xf32>
    %467 = math.tanh %466 : vector<8x128xf32>
    %468 = vector.extract_strided_slice %453 {offsets = [0, 384], sizes = [8, 128], strides = [1, 1]} : vector<8x512xf32> to vector<8x128xf32>
    %469 = arith.negf %468 : vector<8x128xf32>
    %470 = math.exp %469 : vector<8x128xf32>
    %cst_113 = arith.constant 1.000000e+00 : f32
    %471 = vector.broadcast %cst_113 : f32 to vector<8x128xf32>
    %472 = arith.addf %471, %470 : vector<8x128xf32>
    %473 = arith.divf %471, %472 : vector<8x128xf32>
    %474 = arith.mulf %465, %446 : vector<8x128xf32>
    %475 = arith.mulf %459, %467 : vector<8x128xf32>
    %476 = arith.addf %474, %475 : vector<8x128xf32>
    %477 = math.tanh %476 : vector<8x128xf32>
    %478 = arith.mulf %473, %477 : vector<8x128xf32>
    %c48_114 = arith.constant 48 : index
    %c0_115 = arith.constant 0 : index
    %479 = vector.load %arg18[%c48_114, %c0_115] : memref<64x128xf32, #tpu.memory_space<vmem>>, vector<8x128xf32>
    tpu.vector_store %arg18[%c48_114, %c0_115], %478 {strides = array<i32>} : memref<64x128xf32, #tpu.memory_space<vmem>>, vector<8x128xf32>,
    %480 = vector.extract_strided_slice %265 {offsets = [56, 0], sizes = [8, 512], strides = [1, 1]} : vector<64x512xf32> to vector<8x512xf32>
    %481 = arith.truncf %478 : vector<8x128xf32> to vector<8x128xbf16>
    %cst_116 = arith.constant dense<0.000000e+00> : vector<8x512xf32>
    %482 = tpu.matmul %481, %260, %cst_116 {dimension_numbers = #tpu.dot_dimension_numbers<[1], [0], [0], [1], [0, 0, 1, 1], [], []>} : vector<8x128xbf16>, vector<128x512xbf16>, vector<8x512xf32> -> vector<8x512xf32>
    %483 = arith.addf %480, %482 : vector<8x512xf32>
    %484 = vector.extract_strided_slice %483 {offsets = [0, 0], sizes = [8, 128], strides = [1, 1]} : vector<8x512xf32> to vector<8x128xf32>
    %485 = arith.negf %484 : vector<8x128xf32>
    %486 = math.exp %485 : vector<8x128xf32>
    %cst_117 = arith.constant 1.000000e+00 : f32
    %487 = vector.broadcast %cst_117 : f32 to vector<8x128xf32>
    %488 = arith.addf %487, %486 : vector<8x128xf32>
    %489 = arith.divf %487, %488 : vector<8x128xf32>
    %490 = vector.extract_strided_slice %483 {offsets = [0, 128], sizes = [8, 128], strides = [1, 1]} : vector<8x512xf32> to vector<8x128xf32>
    %491 = arith.negf %490 : vector<8x128xf32>
    %492 = math.exp %491 : vector<8x128xf32>
    %cst_118 = arith.constant 1.000000e+00 : f32
    %493 = vector.broadcast %cst_118 : f32 to vector<8x128xf32>
    %494 = arith.addf %493, %492 : vector<8x128xf32>
    %495 = arith.divf %493, %494 : vector<8x128xf32>
    %496 = vector.extract_strided_slice %483 {offsets = [0, 256], sizes = [8, 128], strides = [1, 1]} : vector<8x512xf32> to vector<8x128xf32>
    %497 = math.tanh %496 : vector<8x128xf32>
    %498 = vector.extract_strided_slice %483 {offsets = [0, 384], sizes = [8, 128], strides = [1, 1]} : vector<8x512xf32> to vector<8x128xf32>
    %499 = arith.negf %498 : vector<8x128xf32>
    %500 = math.exp %499 : vector<8x128xf32>
    %cst_119 = arith.constant 1.000000e+00 : f32
    %501 = vector.broadcast %cst_119 : f32 to vector<8x128xf32>
    %502 = arith.addf %501, %500 : vector<8x128xf32>
    %503 = arith.divf %501, %502 : vector<8x128xf32>
    %504 = arith.mulf %495, %476 : vector<8x128xf32>
    %505 = arith.mulf %489, %497 : vector<8x128xf32>
    %506 = arith.addf %504, %505 : vector<8x128xf32>
    %507 = math.tanh %506 : vector<8x128xf32>
    %508 = arith.mulf %503, %507 : vector<8x128xf32>
    %c56_120 = arith.constant 56 : index
    %c0_121 = arith.constant 0 : index
    %509 = vector.load %arg18[%c56_120, %c0_121] : memref<64x128xf32, #tpu.memory_space<vmem>>, vector<8x128xf32>
    tpu.vector_store %arg18[%c56_120, %c0_121], %508 {strides = array<i32>} : memref<64x128xf32, #tpu.memory_space<vmem>>, vector<8x128xf32>,
    %c1_122 = arith.constant 1 : index
    %c0_123 = arith.constant 0 : index
    %c0_124 = arith.constant 0 : index
    %510 = vector.load %arg16[%c1_122, %c0_123, %c0_124] : memref<3x8x128xf32, #tpu.memory_space<vmem>>, vector<1x8x128xf32>
    %511 = vector.shape_cast %510 : vector<1x8x128xf32> to vector<8x128xf32>
    %512 = vector.shape_cast %508 : vector<8x128xf32> to vector<1x8x128xf32>
    tpu.vector_store %arg16[%c1_122, %c0_123, %c0_124], %512 {strides = array<i32>} : memref<3x8x128xf32, #tpu.memory_space<vmem>>, vector<1x8x128xf32>,
    %c1_125 = arith.constant 1 : index
    %c0_126 = arith.constant 0 : index
    %c0_127 = arith.constant 0 : index
    %513 = vector.load %arg17[%c1_125, %c0_126, %c0_127] : memref<3x8x128xf32, #tpu.memory_space<vmem>>, vector<1x8x128xf32>
    %514 = vector.shape_cast %513 : vector<1x8x128xf32> to vector<8x128xf32>
    %515 = vector.shape_cast %506 : vector<8x128xf32> to vector<1x8x128xf32>
    tpu.vector_store %arg17[%c1_125, %c0_126, %c0_127], %515 {strides = array<i32>} : memref<3x8x128xf32, #tpu.memory_space<vmem>>, vector<1x8x128xf32>,
    %c0_128 = arith.constant 0 : index
    %c0_129 = arith.constant 0 : index
    %516 = vector.load %arg18[%c0_128, %c0_129] : memref<64x128xf32, #tpu.memory_space<vmem>>, vector<64x128xf32>
    %c0_130 = arith.constant 0 : index
    %c0_131 = arith.constant 0 : index
    %517 = vector.load %arg10[%c0_130, %c0_131] : memref<128x512xbf16, #tpu.memory_space<vmem>>, vector<128x512xbf16>
    %c0_132 = arith.constant 0 : index
    %c0_133 = arith.constant 0 : index
    %518 = vector.load %arg11[%c0_132, %c0_133] : memref<128x512xbf16, #tpu.memory_space<vmem>>, vector<128x512xbf16>
    %c0_134 = arith.constant 0 : index
    %c0_135 = arith.constant 0 : index
    %519 = vector.load %arg12[%c0_134, %c0_135] : memref<1x512xf32, #tpu.memory_space<vmem>>, vector<1x512xf32>
    %520 = arith.truncf %516 : vector<64x128xf32> to vector<64x128xbf16>
    %cst_136 = arith.constant dense<0.000000e+00> : vector<64x512xf32>
    %521 = tpu.matmul %520, %517, %cst_136 {dimension_numbers = #tpu.dot_dimension_numbers<[1], [0], [0], [1], [0, 0, 1, 1], [], []>} : vector<64x128xbf16>, vector<128x512xbf16>, vector<64x512xf32> -> vector<64x512xf32>
    %522 = vector.broadcast %519 : vector<1x512xf32> to vector<64x512xf32>
    %523 = arith.addf %521, %522 : vector<64x512xf32>
    %c2 = arith.constant 2 : index
    %c0_137 = arith.constant 0 : index
    %c0_138 = arith.constant 0 : index
    %524 = vector.load %arg2[%c2, %c0_137, %c0_138] : memref<3x8x128xf32, #tpu.memory_space<vmem>>, vector<1x8x128xf32>
    %525 = vector.shape_cast %524 : vector<1x8x128xf32> to vector<8x128xf32>
    %c2_139 = arith.constant 2 : index
    %c0_140 = arith.constant 0 : index
    %c0_141 = arith.constant 0 : index
    %526 = vector.load %arg3[%c2_139, %c0_140, %c0_141] : memref<3x8x128xf32, #tpu.memory_space<vmem>>, vector<1x8x128xf32>
    %527 = vector.shape_cast %526 : vector<1x8x128xf32> to vector<8x128xf32>
    %528 = vector.extract_strided_slice %523 {offsets = [0, 0], sizes = [8, 512], strides = [1, 1]} : vector<64x512xf32> to vector<8x512xf32>
    %529 = arith.truncf %525 : vector<8x128xf32> to vector<8x128xbf16>
    %cst_142 = arith.constant dense<0.000000e+00> : vector<8x512xf32>
    %530 = tpu.matmul %529, %518, %cst_142 {dimension_numbers = #tpu.dot_dimension_numbers<[1], [0], [0], [1], [0, 0, 1, 1], [], []>} : vector<8x128xbf16>, vector<128x512xbf16>, vector<8x512xf32> -> vector<8x512xf32>
    %531 = arith.addf %528, %530 : vector<8x512xf32>
    %532 = vector.extract_strided_slice %531 {offsets = [0, 0], sizes = [8, 128], strides = [1, 1]} : vector<8x512xf32> to vector<8x128xf32>
    %533 = arith.negf %532 : vector<8x128xf32>
    %534 = math.exp %533 : vector<8x128xf32>
    %cst_143 = arith.constant 1.000000e+00 : f32
    %535 = vector.broadcast %cst_143 : f32 to vector<8x128xf32>
    %536 = arith.addf %535, %534 : vector<8x128xf32>
    %537 = arith.divf %535, %536 : vector<8x128xf32>
    %538 = vector.extract_strided_slice %531 {offsets = [0, 128], sizes = [8, 128], strides = [1, 1]} : vector<8x512xf32> to vector<8x128xf32>
    %539 = arith.negf %538 : vector<8x128xf32>
    %540 = math.exp %539 : vector<8x128xf32>
    %cst_144 = arith.constant 1.000000e+00 : f32
    %541 = vector.broadcast %cst_144 : f32 to vector<8x128xf32>
    %542 = arith.addf %541, %540 : vector<8x128xf32>
    %543 = arith.divf %541, %542 : vector<8x128xf32>
    %544 = vector.extract_strided_slice %531 {offsets = [0, 256], sizes = [8, 128], strides = [1, 1]} : vector<8x512xf32> to vector<8x128xf32>
    %545 = math.tanh %544 : vector<8x128xf32>
    %546 = vector.extract_strided_slice %531 {offsets = [0, 384], sizes = [8, 128], strides = [1, 1]} : vector<8x512xf32> to vector<8x128xf32>
    %547 = arith.negf %546 : vector<8x128xf32>
    %548 = math.exp %547 : vector<8x128xf32>
    %cst_145 = arith.constant 1.000000e+00 : f32
    %549 = vector.broadcast %cst_145 : f32 to vector<8x128xf32>
    %550 = arith.addf %549, %548 : vector<8x128xf32>
    %551 = arith.divf %549, %550 : vector<8x128xf32>
    %552 = arith.mulf %543, %527 : vector<8x128xf32>
    %553 = arith.mulf %537, %545 : vector<8x128xf32>
    %554 = arith.addf %552, %553 : vector<8x128xf32>
    %555 = math.tanh %554 : vector<8x128xf32>
    %556 = arith.mulf %551, %555 : vector<8x128xf32>
    %c0_146 = arith.constant 0 : index
    %c0_147 = arith.constant 0 : index
    %557 = vector.load %arg18[%c0_146, %c0_147] : memref<64x128xf32, #tpu.memory_space<vmem>>, vector<8x128xf32>
    tpu.vector_store %arg18[%c0_146, %c0_147], %556 {strides = array<i32>} : memref<64x128xf32, #tpu.memory_space<vmem>>, vector<8x128xf32>,
    %558 = vector.extract_strided_slice %523 {offsets = [8, 0], sizes = [8, 512], strides = [1, 1]} : vector<64x512xf32> to vector<8x512xf32>
    %559 = arith.truncf %556 : vector<8x128xf32> to vector<8x128xbf16>
    %cst_148 = arith.constant dense<0.000000e+00> : vector<8x512xf32>
    %560 = tpu.matmul %559, %518, %cst_148 {dimension_numbers = #tpu.dot_dimension_numbers<[1], [0], [0], [1], [0, 0, 1, 1], [], []>} : vector<8x128xbf16>, vector<128x512xbf16>, vector<8x512xf32> -> vector<8x512xf32>
    %561 = arith.addf %558, %560 : vector<8x512xf32>
    %562 = vector.extract_strided_slice %561 {offsets = [0, 0], sizes = [8, 128], strides = [1, 1]} : vector<8x512xf32> to vector<8x128xf32>
    %563 = arith.negf %562 : vector<8x128xf32>
    %564 = math.exp %563 : vector<8x128xf32>
    %cst_149 = arith.constant 1.000000e+00 : f32
    %565 = vector.broadcast %cst_149 : f32 to vector<8x128xf32>
    %566 = arith.addf %565, %564 : vector<8x128xf32>
    %567 = arith.divf %565, %566 : vector<8x128xf32>
    %568 = vector.extract_strided_slice %561 {offsets = [0, 128], sizes = [8, 128], strides = [1, 1]} : vector<8x512xf32> to vector<8x128xf32>
    %569 = arith.negf %568 : vector<8x128xf32>
    %570 = math.exp %569 : vector<8x128xf32>
    %cst_150 = arith.constant 1.000000e+00 : f32
    %571 = vector.broadcast %cst_150 : f32 to vector<8x128xf32>
    %572 = arith.addf %571, %570 : vector<8x128xf32>
    %573 = arith.divf %571, %572 : vector<8x128xf32>
    %574 = vector.extract_strided_slice %561 {offsets = [0, 256], sizes = [8, 128], strides = [1, 1]} : vector<8x512xf32> to vector<8x128xf32>
    %575 = math.tanh %574 : vector<8x128xf32>
    %576 = vector.extract_strided_slice %561 {offsets = [0, 384], sizes = [8, 128], strides = [1, 1]} : vector<8x512xf32> to vector<8x128xf32>
    %577 = arith.negf %576 : vector<8x128xf32>
    %578 = math.exp %577 : vector<8x128xf32>
    %cst_151 = arith.constant 1.000000e+00 : f32
    %579 = vector.broadcast %cst_151 : f32 to vector<8x128xf32>
    %580 = arith.addf %579, %578 : vector<8x128xf32>
    %581 = arith.divf %579, %580 : vector<8x128xf32>
    %582 = arith.mulf %573, %554 : vector<8x128xf32>
    %583 = arith.mulf %567, %575 : vector<8x128xf32>
    %584 = arith.addf %582, %583 : vector<8x128xf32>
    %585 = math.tanh %584 : vector<8x128xf32>
    %586 = arith.mulf %581, %585 : vector<8x128xf32>
    %c8_152 = arith.constant 8 : index
    %c0_153 = arith.constant 0 : index
    %587 = vector.load %arg18[%c8_152, %c0_153] : memref<64x128xf32, #tpu.memory_space<vmem>>, vector<8x128xf32>
    tpu.vector_store %arg18[%c8_152, %c0_153], %586 {strides = array<i32>} : memref<64x128xf32, #tpu.memory_space<vmem>>, vector<8x128xf32>,
    %588 = vector.extract_strided_slice %523 {offsets = [16, 0], sizes = [8, 512], strides = [1, 1]} : vector<64x512xf32> to vector<8x512xf32>
    %589 = arith.truncf %586 : vector<8x128xf32> to vector<8x128xbf16>
    %cst_154 = arith.constant dense<0.000000e+00> : vector<8x512xf32>
    %590 = tpu.matmul %589, %518, %cst_154 {dimension_numbers = #tpu.dot_dimension_numbers<[1], [0], [0], [1], [0, 0, 1, 1], [], []>} : vector<8x128xbf16>, vector<128x512xbf16>, vector<8x512xf32> -> vector<8x512xf32>
    %591 = arith.addf %588, %590 : vector<8x512xf32>
    %592 = vector.extract_strided_slice %591 {offsets = [0, 0], sizes = [8, 128], strides = [1, 1]} : vector<8x512xf32> to vector<8x128xf32>
    %593 = arith.negf %592 : vector<8x128xf32>
    %594 = math.exp %593 : vector<8x128xf32>
    %cst_155 = arith.constant 1.000000e+00 : f32
    %595 = vector.broadcast %cst_155 : f32 to vector<8x128xf32>
    %596 = arith.addf %595, %594 : vector<8x128xf32>
    %597 = arith.divf %595, %596 : vector<8x128xf32>
    %598 = vector.extract_strided_slice %591 {offsets = [0, 128], sizes = [8, 128], strides = [1, 1]} : vector<8x512xf32> to vector<8x128xf32>
    %599 = arith.negf %598 : vector<8x128xf32>
    %600 = math.exp %599 : vector<8x128xf32>
    %cst_156 = arith.constant 1.000000e+00 : f32
    %601 = vector.broadcast %cst_156 : f32 to vector<8x128xf32>
    %602 = arith.addf %601, %600 : vector<8x128xf32>
    %603 = arith.divf %601, %602 : vector<8x128xf32>
    %604 = vector.extract_strided_slice %591 {offsets = [0, 256], sizes = [8, 128], strides = [1, 1]} : vector<8x512xf32> to vector<8x128xf32>
    %605 = math.tanh %604 : vector<8x128xf32>
    %606 = vector.extract_strided_slice %591 {offsets = [0, 384], sizes = [8, 128], strides = [1, 1]} : vector<8x512xf32> to vector<8x128xf32>
    %607 = arith.negf %606 : vector<8x128xf32>
    %608 = math.exp %607 : vector<8x128xf32>
    %cst_157 = arith.constant 1.000000e+00 : f32
    %609 = vector.broadcast %cst_157 : f32 to vector<8x128xf32>
    %610 = arith.addf %609, %608 : vector<8x128xf32>
    %611 = arith.divf %609, %610 : vector<8x128xf32>
    %612 = arith.mulf %603, %584 : vector<8x128xf32>
    %613 = arith.mulf %597, %605 : vector<8x128xf32>
    %614 = arith.addf %612, %613 : vector<8x128xf32>
    %615 = math.tanh %614 : vector<8x128xf32>
    %616 = arith.mulf %611, %615 : vector<8x128xf32>
    %c16_158 = arith.constant 16 : index
    %c0_159 = arith.constant 0 : index
    %617 = vector.load %arg18[%c16_158, %c0_159] : memref<64x128xf32, #tpu.memory_space<vmem>>, vector<8x128xf32>
    tpu.vector_store %arg18[%c16_158, %c0_159], %616 {strides = array<i32>} : memref<64x128xf32, #tpu.memory_space<vmem>>, vector<8x128xf32>,
    %618 = vector.extract_strided_slice %523 {offsets = [24, 0], sizes = [8, 512], strides = [1, 1]} : vector<64x512xf32> to vector<8x512xf32>
    %619 = arith.truncf %616 : vector<8x128xf32> to vector<8x128xbf16>
    %cst_160 = arith.constant dense<0.000000e+00> : vector<8x512xf32>
    %620 = tpu.matmul %619, %518, %cst_160 {dimension_numbers = #tpu.dot_dimension_numbers<[1], [0], [0], [1], [0, 0, 1, 1], [], []>} : vector<8x128xbf16>, vector<128x512xbf16>, vector<8x512xf32> -> vector<8x512xf32>
    %621 = arith.addf %618, %620 : vector<8x512xf32>
    %622 = vector.extract_strided_slice %621 {offsets = [0, 0], sizes = [8, 128], strides = [1, 1]} : vector<8x512xf32> to vector<8x128xf32>
    %623 = arith.negf %622 : vector<8x128xf32>
    %624 = math.exp %623 : vector<8x128xf32>
    %cst_161 = arith.constant 1.000000e+00 : f32
    %625 = vector.broadcast %cst_161 : f32 to vector<8x128xf32>
    %626 = arith.addf %625, %624 : vector<8x128xf32>
    %627 = arith.divf %625, %626 : vector<8x128xf32>
    %628 = vector.extract_strided_slice %621 {offsets = [0, 128], sizes = [8, 128], strides = [1, 1]} : vector<8x512xf32> to vector<8x128xf32>
    %629 = arith.negf %628 : vector<8x128xf32>
    %630 = math.exp %629 : vector<8x128xf32>
    %cst_162 = arith.constant 1.000000e+00 : f32
    %631 = vector.broadcast %cst_162 : f32 to vector<8x128xf32>
    %632 = arith.addf %631, %630 : vector<8x128xf32>
    %633 = arith.divf %631, %632 : vector<8x128xf32>
    %634 = vector.extract_strided_slice %621 {offsets = [0, 256], sizes = [8, 128], strides = [1, 1]} : vector<8x512xf32> to vector<8x128xf32>
    %635 = math.tanh %634 : vector<8x128xf32>
    %636 = vector.extract_strided_slice %621 {offsets = [0, 384], sizes = [8, 128], strides = [1, 1]} : vector<8x512xf32> to vector<8x128xf32>
    %637 = arith.negf %636 : vector<8x128xf32>
    %638 = math.exp %637 : vector<8x128xf32>
    %cst_163 = arith.constant 1.000000e+00 : f32
    %639 = vector.broadcast %cst_163 : f32 to vector<8x128xf32>
    %640 = arith.addf %639, %638 : vector<8x128xf32>
    %641 = arith.divf %639, %640 : vector<8x128xf32>
    %642 = arith.mulf %633, %614 : vector<8x128xf32>
    %643 = arith.mulf %627, %635 : vector<8x128xf32>
    %644 = arith.addf %642, %643 : vector<8x128xf32>
    %645 = math.tanh %644 : vector<8x128xf32>
    %646 = arith.mulf %641, %645 : vector<8x128xf32>
    %c24_164 = arith.constant 24 : index
    %c0_165 = arith.constant 0 : index
    %647 = vector.load %arg18[%c24_164, %c0_165] : memref<64x128xf32, #tpu.memory_space<vmem>>, vector<8x128xf32>
    tpu.vector_store %arg18[%c24_164, %c0_165], %646 {strides = array<i32>} : memref<64x128xf32, #tpu.memory_space<vmem>>, vector<8x128xf32>,
    %648 = vector.extract_strided_slice %523 {offsets = [32, 0], sizes = [8, 512], strides = [1, 1]} : vector<64x512xf32> to vector<8x512xf32>
    %649 = arith.truncf %646 : vector<8x128xf32> to vector<8x128xbf16>
    %cst_166 = arith.constant dense<0.000000e+00> : vector<8x512xf32>
    %650 = tpu.matmul %649, %518, %cst_166 {dimension_numbers = #tpu.dot_dimension_numbers<[1], [0], [0], [1], [0, 0, 1, 1], [], []>} : vector<8x128xbf16>, vector<128x512xbf16>, vector<8x512xf32> -> vector<8x512xf32>
    %651 = arith.addf %648, %650 : vector<8x512xf32>
    %652 = vector.extract_strided_slice %651 {offsets = [0, 0], sizes = [8, 128], strides = [1, 1]} : vector<8x512xf32> to vector<8x128xf32>
    %653 = arith.negf %652 : vector<8x128xf32>
    %654 = math.exp %653 : vector<8x128xf32>
    %cst_167 = arith.constant 1.000000e+00 : f32
    %655 = vector.broadcast %cst_167 : f32 to vector<8x128xf32>
    %656 = arith.addf %655, %654 : vector<8x128xf32>
    %657 = arith.divf %655, %656 : vector<8x128xf32>
    %658 = vector.extract_strided_slice %651 {offsets = [0, 128], sizes = [8, 128], strides = [1, 1]} : vector<8x512xf32> to vector<8x128xf32>
    %659 = arith.negf %658 : vector<8x128xf32>
    %660 = math.exp %659 : vector<8x128xf32>
    %cst_168 = arith.constant 1.000000e+00 : f32
    %661 = vector.broadcast %cst_168 : f32 to vector<8x128xf32>
    %662 = arith.addf %661, %660 : vector<8x128xf32>
    %663 = arith.divf %661, %662 : vector<8x128xf32>
    %664 = vector.extract_strided_slice %651 {offsets = [0, 256], sizes = [8, 128], strides = [1, 1]} : vector<8x512xf32> to vector<8x128xf32>
    %665 = math.tanh %664 : vector<8x128xf32>
    %666 = vector.extract_strided_slice %651 {offsets = [0, 384], sizes = [8, 128], strides = [1, 1]} : vector<8x512xf32> to vector<8x128xf32>
    %667 = arith.negf %666 : vector<8x128xf32>
    %668 = math.exp %667 : vector<8x128xf32>
    %cst_169 = arith.constant 1.000000e+00 : f32
    %669 = vector.broadcast %cst_169 : f32 to vector<8x128xf32>
    %670 = arith.addf %669, %668 : vector<8x128xf32>
    %671 = arith.divf %669, %670 : vector<8x128xf32>
    %672 = arith.mulf %663, %644 : vector<8x128xf32>
    %673 = arith.mulf %657, %665 : vector<8x128xf32>
    %674 = arith.addf %672, %673 : vector<8x128xf32>
    %675 = math.tanh %674 : vector<8x128xf32>
    %676 = arith.mulf %671, %675 : vector<8x128xf32>
    %c32_170 = arith.constant 32 : index
    %c0_171 = arith.constant 0 : index
    %677 = vector.load %arg18[%c32_170, %c0_171] : memref<64x128xf32, #tpu.memory_space<vmem>>, vector<8x128xf32>
    tpu.vector_store %arg18[%c32_170, %c0_171], %676 {strides = array<i32>} : memref<64x128xf32, #tpu.memory_space<vmem>>, vector<8x128xf32>,
    %678 = vector.extract_strided_slice %523 {offsets = [40, 0], sizes = [8, 512], strides = [1, 1]} : vector<64x512xf32> to vector<8x512xf32>
    %679 = arith.truncf %676 : vector<8x128xf32> to vector<8x128xbf16>
    %cst_172 = arith.constant dense<0.000000e+00> : vector<8x512xf32>
    %680 = tpu.matmul %679, %518, %cst_172 {dimension_numbers = #tpu.dot_dimension_numbers<[1], [0], [0], [1], [0, 0, 1, 1], [], []>} : vector<8x128xbf16>, vector<128x512xbf16>, vector<8x512xf32> -> vector<8x512xf32>
    %681 = arith.addf %678, %680 : vector<8x512xf32>
    %682 = vector.extract_strided_slice %681 {offsets = [0, 0], sizes = [8, 128], strides = [1, 1]} : vector<8x512xf32> to vector<8x128xf32>
    %683 = arith.negf %682 : vector<8x128xf32>
    %684 = math.exp %683 : vector<8x128xf32>
    %cst_173 = arith.constant 1.000000e+00 : f32
    %685 = vector.broadcast %cst_173 : f32 to vector<8x128xf32>
    %686 = arith.addf %685, %684 : vector<8x128xf32>
    %687 = arith.divf %685, %686 : vector<8x128xf32>
    %688 = vector.extract_strided_slice %681 {offsets = [0, 128], sizes = [8, 128], strides = [1, 1]} : vector<8x512xf32> to vector<8x128xf32>
    %689 = arith.negf %688 : vector<8x128xf32>
    %690 = math.exp %689 : vector<8x128xf32>
    %cst_174 = arith.constant 1.000000e+00 : f32
    %691 = vector.broadcast %cst_174 : f32 to vector<8x128xf32>
    %692 = arith.addf %691, %690 : vector<8x128xf32>
    %693 = arith.divf %691, %692 : vector<8x128xf32>
    %694 = vector.extract_strided_slice %681 {offsets = [0, 256], sizes = [8, 128], strides = [1, 1]} : vector<8x512xf32> to vector<8x128xf32>
    %695 = math.tanh %694 : vector<8x128xf32>
    %696 = vector.extract_strided_slice %681 {offsets = [0, 384], sizes = [8, 128], strides = [1, 1]} : vector<8x512xf32> to vector<8x128xf32>
    %697 = arith.negf %696 : vector<8x128xf32>
    %698 = math.exp %697 : vector<8x128xf32>
    %cst_175 = arith.constant 1.000000e+00 : f32
    %699 = vector.broadcast %cst_175 : f32 to vector<8x128xf32>
    %700 = arith.addf %699, %698 : vector<8x128xf32>
    %701 = arith.divf %699, %700 : vector<8x128xf32>
    %702 = arith.mulf %693, %674 : vector<8x128xf32>
    %703 = arith.mulf %687, %695 : vector<8x128xf32>
    %704 = arith.addf %702, %703 : vector<8x128xf32>
    %705 = math.tanh %704 : vector<8x128xf32>
    %706 = arith.mulf %701, %705 : vector<8x128xf32>
    %c40_176 = arith.constant 40 : index
    %c0_177 = arith.constant 0 : index
    %707 = vector.load %arg18[%c40_176, %c0_177] : memref<64x128xf32, #tpu.memory_space<vmem>>, vector<8x128xf32>
    tpu.vector_store %arg18[%c40_176, %c0_177], %706 {strides = array<i32>} : memref<64x128xf32, #tpu.memory_space<vmem>>, vector<8x128xf32>,
    %708 = vector.extract_strided_slice %523 {offsets = [48, 0], sizes = [8, 512], strides = [1, 1]} : vector<64x512xf32> to vector<8x512xf32>
    %709 = arith.truncf %706 : vector<8x128xf32> to vector<8x128xbf16>
    %cst_178 = arith.constant dense<0.000000e+00> : vector<8x512xf32>
    %710 = tpu.matmul %709, %518, %cst_178 {dimension_numbers = #tpu.dot_dimension_numbers<[1], [0], [0], [1], [0, 0, 1, 1], [], []>} : vector<8x128xbf16>, vector<128x512xbf16>, vector<8x512xf32> -> vector<8x512xf32>
    %711 = arith.addf %708, %710 : vector<8x512xf32>
    %712 = vector.extract_strided_slice %711 {offsets = [0, 0], sizes = [8, 128], strides = [1, 1]} : vector<8x512xf32> to vector<8x128xf32>
    %713 = arith.negf %712 : vector<8x128xf32>
    %714 = math.exp %713 : vector<8x128xf32>
    %cst_179 = arith.constant 1.000000e+00 : f32
    %715 = vector.broadcast %cst_179 : f32 to vector<8x128xf32>
    %716 = arith.addf %715, %714 : vector<8x128xf32>
    %717 = arith.divf %715, %716 : vector<8x128xf32>
    %718 = vector.extract_strided_slice %711 {offsets = [0, 128], sizes = [8, 128], strides = [1, 1]} : vector<8x512xf32> to vector<8x128xf32>
    %719 = arith.negf %718 : vector<8x128xf32>
    %720 = math.exp %719 : vector<8x128xf32>
    %cst_180 = arith.constant 1.000000e+00 : f32
    %721 = vector.broadcast %cst_180 : f32 to vector<8x128xf32>
    %722 = arith.addf %721, %720 : vector<8x128xf32>
    %723 = arith.divf %721, %722 : vector<8x128xf32>
    %724 = vector.extract_strided_slice %711 {offsets = [0, 256], sizes = [8, 128], strides = [1, 1]} : vector<8x512xf32> to vector<8x128xf32>
    %725 = math.tanh %724 : vector<8x128xf32>
    %726 = vector.extract_strided_slice %711 {offsets = [0, 384], sizes = [8, 128], strides = [1, 1]} : vector<8x512xf32> to vector<8x128xf32>
    %727 = arith.negf %726 : vector<8x128xf32>
    %728 = math.exp %727 : vector<8x128xf32>
    %cst_181 = arith.constant 1.000000e+00 : f32
    %729 = vector.broadcast %cst_181 : f32 to vector<8x128xf32>
    %730 = arith.addf %729, %728 : vector<8x128xf32>
    %731 = arith.divf %729, %730 : vector<8x128xf32>
    %732 = arith.mulf %723, %704 : vector<8x128xf32>
    %733 = arith.mulf %717, %725 : vector<8x128xf32>
    %734 = arith.addf %732, %733 : vector<8x128xf32>
    %735 = math.tanh %734 : vector<8x128xf32>
    %736 = arith.mulf %731, %735 : vector<8x128xf32>
    %c48_182 = arith.constant 48 : index
    %c0_183 = arith.constant 0 : index
    %737 = vector.load %arg18[%c48_182, %c0_183] : memref<64x128xf32, #tpu.memory_space<vmem>>, vector<8x128xf32>
    tpu.vector_store %arg18[%c48_182, %c0_183], %736 {strides = array<i32>} : memref<64x128xf32, #tpu.memory_space<vmem>>, vector<8x128xf32>,
    %738 = vector.extract_strided_slice %523 {offsets = [56, 0], sizes = [8, 512], strides = [1, 1]} : vector<64x512xf32> to vector<8x512xf32>
    %739 = arith.truncf %736 : vector<8x128xf32> to vector<8x128xbf16>
    %cst_184 = arith.constant dense<0.000000e+00> : vector<8x512xf32>
    %740 = tpu.matmul %739, %518, %cst_184 {dimension_numbers = #tpu.dot_dimension_numbers<[1], [0], [0], [1], [0, 0, 1, 1], [], []>} : vector<8x128xbf16>, vector<128x512xbf16>, vector<8x512xf32> -> vector<8x512xf32>
    %741 = arith.addf %738, %740 : vector<8x512xf32>
    %742 = vector.extract_strided_slice %741 {offsets = [0, 0], sizes = [8, 128], strides = [1, 1]} : vector<8x512xf32> to vector<8x128xf32>
    %743 = arith.negf %742 : vector<8x128xf32>
    %744 = math.exp %743 : vector<8x128xf32>
    %cst_185 = arith.constant 1.000000e+00 : f32
    %745 = vector.broadcast %cst_185 : f32 to vector<8x128xf32>
    %746 = arith.addf %745, %744 : vector<8x128xf32>
    %747 = arith.divf %745, %746 : vector<8x128xf32>
    %748 = vector.extract_strided_slice %741 {offsets = [0, 128], sizes = [8, 128], strides = [1, 1]} : vector<8x512xf32> to vector<8x128xf32>
    %749 = arith.negf %748 : vector<8x128xf32>
    %750 = math.exp %749 : vector<8x128xf32>
    %cst_186 = arith.constant 1.000000e+00 : f32
    %751 = vector.broadcast %cst_186 : f32 to vector<8x128xf32>
    %752 = arith.addf %751, %750 : vector<8x128xf32>
    %753 = arith.divf %751, %752 : vector<8x128xf32>
    %754 = vector.extract_strided_slice %741 {offsets = [0, 256], sizes = [8, 128], strides = [1, 1]} : vector<8x512xf32> to vector<8x128xf32>
    %755 = math.tanh %754 : vector<8x128xf32>
    %756 = vector.extract_strided_slice %741 {offsets = [0, 384], sizes = [8, 128], strides = [1, 1]} : vector<8x512xf32> to vector<8x128xf32>
    %757 = arith.negf %756 : vector<8x128xf32>
    %758 = math.exp %757 : vector<8x128xf32>
    %cst_187 = arith.constant 1.000000e+00 : f32
    %759 = vector.broadcast %cst_187 : f32 to vector<8x128xf32>
    %760 = arith.addf %759, %758 : vector<8x128xf32>
    %761 = arith.divf %759, %760 : vector<8x128xf32>
    %762 = arith.mulf %753, %734 : vector<8x128xf32>
    %763 = arith.mulf %747, %755 : vector<8x128xf32>
    %764 = arith.addf %762, %763 : vector<8x128xf32>
    %765 = math.tanh %764 : vector<8x128xf32>
    %766 = arith.mulf %761, %765 : vector<8x128xf32>
    %c56_188 = arith.constant 56 : index
    %c0_189 = arith.constant 0 : index
    %767 = vector.load %arg18[%c56_188, %c0_189] : memref<64x128xf32, #tpu.memory_space<vmem>>, vector<8x128xf32>
    tpu.vector_store %arg18[%c56_188, %c0_189], %766 {strides = array<i32>} : memref<64x128xf32, #tpu.memory_space<vmem>>, vector<8x128xf32>,
    %c2_190 = arith.constant 2 : index
    %c0_191 = arith.constant 0 : index
    %c0_192 = arith.constant 0 : index
    %768 = vector.load %arg16[%c2_190, %c0_191, %c0_192] : memref<3x8x128xf32, #tpu.memory_space<vmem>>, vector<1x8x128xf32>
    %769 = vector.shape_cast %768 : vector<1x8x128xf32> to vector<8x128xf32>
    %770 = vector.shape_cast %766 : vector<8x128xf32> to vector<1x8x128xf32>
    tpu.vector_store %arg16[%c2_190, %c0_191, %c0_192], %770 {strides = array<i32>} : memref<3x8x128xf32, #tpu.memory_space<vmem>>, vector<1x8x128xf32>,
    %c2_193 = arith.constant 2 : index
    %c0_194 = arith.constant 0 : index
    %c0_195 = arith.constant 0 : index
    %771 = vector.load %arg17[%c2_193, %c0_194, %c0_195] : memref<3x8x128xf32, #tpu.memory_space<vmem>>, vector<1x8x128xf32>
    %772 = vector.shape_cast %771 : vector<1x8x128xf32> to vector<8x128xf32>
    %773 = vector.shape_cast %764 : vector<8x128xf32> to vector<1x8x128xf32>
    tpu.vector_store %arg17[%c2_193, %c0_194, %c0_195], %773 {strides = array<i32>} : memref<3x8x128xf32, #tpu.memory_space<vmem>>, vector<1x8x128xf32>,
    %c0_196 = arith.constant 0 : index
    %c0_197 = arith.constant 0 : index
    %774 = vector.load %arg18[%c0_196, %c0_197] : memref<64x128xf32, #tpu.memory_space<vmem>>, vector<64x128xf32>
    %775 = arith.truncf %774 : vector<64x128xf32> to vector<64x128xbf16>
    %c0_198 = arith.constant 0 : index
    %c0_199 = arith.constant 0 : index
    %776 = vector.load %arg13[%c0_198, %c0_199] : memref<128x128xbf16, #tpu.memory_space<vmem>>, vector<128x128xbf16>
    %cst_200 = arith.constant dense<0.000000e+00> : vector<64x128xf32>
    %777 = tpu.matmul %775, %776, %cst_200 {dimension_numbers = #tpu.dot_dimension_numbers<[1], [0], [0], [1], [0, 0, 1, 1], [], []>} : vector<64x128xbf16>, vector<128x128xbf16>, vector<64x128xf32> -> vector<64x128xf32>
    %c0_201 = arith.constant 0 : index
    %c0_202 = arith.constant 0 : index
    %778 = vector.load %arg14[%c0_201, %c0_202] : memref<1x128xf32, #tpu.memory_space<vmem>>, vector<1x128xf32>
    %779 = vector.broadcast %778 : vector<1x128xf32> to vector<64x128xf32>
    %780 = arith.addf %777, %779 : vector<64x128xf32>
    %c0_203 = arith.constant 0 : index
    %c0_204 = arith.constant 0 : index
    %781 = vector.load %arg15[%c0_203, %c0_204] : memref<64x128xf32, #tpu.memory_space<vmem>>, vector<64x128xf32>
    tpu.vector_store %arg15[%c0_203, %c0_204], %780 {strides = array<i32>} : memref<64x128xf32, #tpu.memory_space<vmem>>, vector<64x128xf32>,
    return
  }
  func.func @transform_0(%arg0: i32) -> (i32, i32) {
    %c0_i32 = arith.constant 0 : i32
    %c0_i32_0 = arith.constant 0 : i32
    %c0_i32_1 = arith.constant 0 : i32
    return %c0_i32, %c0_i32_0 : i32, i32
  }
  func.func @transform_1(%arg0: i32) -> (i32, i32, i32) {
    %c0_i32 = arith.constant 0 : i32
    %c0_i32_0 = arith.constant 0 : i32
    %c0_i32_1 = arith.constant 0 : i32
    %c0_i32_2 = arith.constant 0 : i32
    return %c0_i32, %c0_i32_0, %c0_i32_1 : i32, i32, i32
  }
  func.func @transform_2(%arg0: i32) -> (i32, i32, i32) {
    %c0_i32 = arith.constant 0 : i32
    %c0_i32_0 = arith.constant 0 : i32
    %c0_i32_1 = arith.constant 0 : i32
    %c0_i32_2 = arith.constant 0 : i32
    return %c0_i32, %c0_i32_0, %c0_i32_1 : i32, i32, i32
  }
  func.func @transform_3(%arg0: i32) -> (i32, i32) {
    %c0_i32 = arith.constant 0 : i32
    %c0_i32_0 = arith.constant 0 : i32
    %c0_i32_1 = arith.constant 0 : i32
    return %c0_i32, %c0_i32_0 : i32, i32
  }
  func.func @transform_4(%arg0: i32) -> (i32, i32) {
    %c0_i32 = arith.constant 0 : i32
    %c0_i32_0 = arith.constant 0 : i32
    %c0_i32_1 = arith.constant 0 : i32
    return %c0_i32, %c0_i32_0 : i32, i32
  }
  func.func @transform_5(%arg0: i32) -> (i32, i32) {
    %c0_i32 = arith.constant 0 : i32
    %c0_i32_0 = arith.constant 0 : i32
    %c0_i32_1 = arith.constant 0 : i32
    return %c0_i32, %c0_i32_0 : i32, i32
  }
  func.func @transform_6(%arg0: i32) -> (i32, i32) {
    %c0_i32 = arith.constant 0 : i32
    %c0_i32_0 = arith.constant 0 : i32
    %c0_i32_1 = arith.constant 0 : i32
    return %c0_i32, %c0_i32_0 : i32, i32
  }
  func.func @transform_7(%arg0: i32) -> (i32, i32) {
    %c0_i32 = arith.constant 0 : i32
    %c0_i32_0 = arith.constant 0 : i32
    %c0_i32_1 = arith.constant 0 : i32
    return %c0_i32, %c0_i32_0 : i32, i32
  }
  func.func @transform_8(%arg0: i32) -> (i32, i32) {
    %c0_i32 = arith.constant 0 : i32
    %c0_i32_0 = arith.constant 0 : i32
    %c0_i32_1 = arith.constant 0 : i32
    return %c0_i32, %c0_i32_0 : i32, i32
  }
  func.func @transform_9(%arg0: i32) -> (i32, i32) {
    %c0_i32 = arith.constant 0 : i32
    %c0_i32_0 = arith.constant 0 : i32
    %c0_i32_1 = arith.constant 0 : i32
    return %c0_i32, %c0_i32_0 : i32, i32
  }
  func.func @transform_10(%arg0: i32) -> (i32, i32) {
    %c0_i32 = arith.constant 0 : i32
    %c0_i32_0 = arith.constant 0 : i32
    %c0_i32_1 = arith.constant 0 : i32
    return %c0_i32, %c0_i32_0 : i32, i32
  }
  func.func @transform_11(%arg0: i32) -> (i32, i32) {
    %c0_i32 = arith.constant 0 : i32
    %c0_i32_0 = arith.constant 0 : i32
    %c0_i32_1 = arith.constant 0 : i32
    return %c0_i32, %c0_i32_0 : i32, i32
  }
  func.func @transform_12(%arg0: i32) -> (i32, i32) {
    %c0_i32 = arith.constant 0 : i32
    %c0_i32_0 = arith.constant 0 : i32
    %c0_i32_1 = arith.constant 0 : i32
    return %c0_i32, %c0_i32_0 : i32, i32
  }
  func.func @transform_13(%arg0: i32) -> (i32, i32) {
    %c0_i32 = arith.constant 0 : i32
    %c0_i32_0 = arith.constant 0 : i32
    %c0_i32_1 = arith.constant 0 : i32
    return %c0_i32, %c0_i32_0 : i32, i32
  }
  func.func @transform_14(%arg0: i32) -> (i32, i32) {
    %c0_i32 = arith.constant 0 : i32
    %c0_i32_0 = arith.constant 0 : i32
    %c0_i32_1 = arith.constant 0 : i32
    return %c0_i32, %c0_i32_0 : i32, i32
  }
  func.func @transform_15(%arg0: i32) -> (i32, i32, i32) {
    %c0_i32 = arith.constant 0 : i32
    %c0_i32_0 = arith.constant 0 : i32
    %c0_i32_1 = arith.constant 0 : i32
    %c0_i32_2 = arith.constant 0 : i32
    return %c0_i32, %c0_i32_0, %c0_i32_1 : i32, i32, i32
  }
  func.func @transform_16(%arg0: i32) -> (i32, i32, i32) {
    %c0_i32 = arith.constant 0 : i32
    %c0_i32_0 = arith.constant 0 : i32
    %c0_i32_1 = arith.constant 0 : i32
    %c0_i32_2 = arith.constant 0 : i32
    return %c0_i32, %c0_i32_0, %c0_i32_1 : i32, i32, i32
  }
}

</mosaic_0001>

<llo_original>
// kernel: lstm_model_simple_forward.1
$region0: #{lstm_model_simple_forward.1}
  #allocation0 [shape = 'u32[]', space=smem, size = 0x4, offset = 0x4, fixed_abs, tag = 'smem constant byte address 0x4 - core index']
  #allocation1 [shape = 'u32[72,128]{1,0:T(1,128)}', space=vmem, size = 0x9000, scoped, tag = 'internal scratch']
  #allocation2 [shape = 'f32[64,128]{1,0:T(8,128)}', space=vmem, size = 0x8000, scoped, tag = 'scratch operand']
  %s0 = inlined_call_operand.vmem [shape: f32[64,192], index: 0, kind: input, shape index: {}]
  %s1 = inlined_call_operand.vmem [shape: f32[3,8,128], index: 1, kind: input, shape index: {}]
  %s2 = inlined_call_operand.vmem [shape: f32[3,8,128], index: 2, kind: input, shape index: {}]
  %s3 = inlined_call_operand.hbm [shape: bf16[192,512], index: 3, kind: input, shape index: {}]
  %s4 = inlined_call_operand.hbm [shape: bf16[128,512], index: 4, kind: input, shape index: {}]
  %s5 = inlined_call_operand.vmem [shape: f32[1,512], index: 5, kind: input, shape index: {}]
  %s6 = inlined_call_operand.hbm [shape: bf16[128,512], index: 6, kind: input, shape index: {}]
  %s7 = inlined_call_operand.hbm [shape: bf16[128,512], index: 7, kind: input, shape index: {}]
  %s8 = inlined_call_operand.vmem [shape: f32[1,512], index: 8, kind: input, shape index: {}]
  %s9 = inlined_call_operand.hbm [shape: bf16[128,512], index: 9, kind: input, shape index: {}]
  %s10 = inlined_call_operand.hbm [shape: bf16[128,512], index: 10, kind: input, shape index: {}]
  %s11 = inlined_call_operand.vmem [shape: f32[1,512], index: 11, kind: input, shape index: {}]
  %s12 = inlined_call_operand.vmem [shape: bf16[128,128], index: 12, kind: input, shape index: {}]
  %s13 = inlined_call_operand.vmem [shape: f32[1,128], index: 13, kind: input, shape index: {}]
  %s14 = inlined_call_operand.vmem [shape: f32[64,128], index: 14, kind: output, shape index: {0}]
  %s15 = inlined_call_operand.vmem [shape: f32[3,8,128], index: 15, kind: output, shape index: {1}]
  %s16 = inlined_call_operand.vmem [shape: f32[3,8,128], index: 16, kind: output, shape index: {2}]
  %17 = xla_tuple %s14, %s15, %s16
  %s18 = sld [smem:[#allocation0]]
  $region106: #{lstm_model_simple_forward.1} parent=0
    _
  %s20 = ssub.s32 1, %s18
  %s21 = scalar_select 0, %s20, %s18
  $region1: #{lstm_model_simple_forward.1} parent=0
    #allocation3 [shape = 'u8[196608]{0}', space=vmem, size = 0x30000, scoped, tag = 'input window, operand 3, single buffered']
    #allocation4 [shape = 's32[1]{0}', space=sflag, size = 0x4, scoped, tag = 'scoped memory for lstm_model_simple_forward.1']
    #allocation5 [shape = 'u8[131072]{0}', space=vmem, size = 0x20000, scoped, tag = 'input window, operand 4, single buffered']
    #allocation6 [shape = 's32[1]{0}', space=sflag, size = 0x4, scoped, tag = 'scoped memory for lstm_model_simple_forward.1']
    #allocation7 [shape = 'u8[131072]{0}', space=vmem, size = 0x20000, scoped, tag = 'input window, operand 6, single buffered']
    #allocation8 [shape = 'u8[131072]{0}', space=vmem, size = 0x20000, scoped, tag = 'input window, operand 7, single buffered']
    #allocation9 [shape = 's32[1]{0}', space=sflag, size = 0x4, scoped, tag = 'scoped memory for lstm_model_simple_forward.1']
    #allocation10 [shape = 'u8[131072]{0}', space=vmem, size = 0x20000, scoped, tag = 'input window, operand 9, single buffered']
    #allocation11 [shape = 'u8[131072]{0}', space=vmem, size = 0x20000, scoped, tag = 'input window, operand 10, single buffered']
    #allocation12 [shape = 's32[1]{0}', space=sflag, size = 0x4, scoped, tag = 'scoped memory for lstm_model_simple_forward.1']
    %22 = vsyncpa [#allocation4], 0
    %23 = vsyncpa [#allocation6], 0
    %24 = vsyncpa [#allocation9], 0
    %25 = vsyncpa [#allocation12], 0
    // Predicated region
    $region2: #{lstm_model_simple_forward.1} parent=1 // pred_check
      _
    $region3: #{lstm_model_simple_forward.1} parent=1 // pred_check_branch
      %27 = sbr.rel (0) target = $region5
    $region4: #{lstm_model_simple_forward.1} parent=1 // pred_region
      _
    $region5: #{lstm_model_simple_forward.1} parent=1 // pred_fallthru
      _
    // Predicated region
    $region6: #{lstm_model_simple_forward.1} parent=1 // pred_check
      _
    $region7: #{lstm_model_simple_forward.1} parent=1 // pred_check_branch
      %29 = sbr.rel (0) target = $region9
    $region8: #{lstm_model_simple_forward.1} parent=1 // pred_region
      _
    $region9: #{lstm_model_simple_forward.1} parent=1 // pred_fallthru
      _
    // Predicated region
    $region10: #{lstm_model_simple_forward.1} parent=1 // pred_check
      _
    $region11: #{lstm_model_simple_forward.1} parent=1 // pred_check_branch
      %31 = sbr.rel (0) target = $region13
    $region12: #{lstm_model_simple_forward.1} parent=1 // pred_region
      _
    $region13: #{lstm_model_simple_forward.1} parent=1 // pred_fallthru
      _
    // Predicated region
    $region14: #{lstm_model_simple_forward.1} parent=1 // pred_check
      _
    $region15: #{lstm_model_simple_forward.1} parent=1 // pred_check_branch
      %33 = sbr.rel (0) target = $region17
    $region16: #{lstm_model_simple_forward.1} parent=1 // pred_region
      %35 = vsyncadd [#allocation4], 0
      %s36 = sshll.u32 %s3, 4
      %s37 = int_to_ptr.hbm [resolvable:$true] %s36
      %s38 = sshll.u32 [#allocation3], 4
      %s39 = int_to_ptr.vmem [resolvable:$true] %s38
      %44 = dma.hbm_to_vmem [thread:$0]  %s37, 6144, %s39, [#allocation4], 256, 256, 16
    $region17: #{lstm_model_simple_forward.1} parent=1 // pred_fallthru
      _
    // Predicated region
    $region18: #{lstm_model_simple_forward.1} parent=1 // pred_check
      _
    $region19: #{lstm_model_simple_forward.1} parent=1 // pred_check_branch
      %46 = sbr.rel (0) target = $region21
    $region20: #{lstm_model_simple_forward.1} parent=1 // pred_region
      %48 = vsyncadd [#allocation6], 0
      %s49 = sshll.u32 %s4, 4
      %s50 = int_to_ptr.hbm [resolvable:$true] %s49
      %s51 = sshll.u32 [#allocation5], 4
      %s52 = int_to_ptr.vmem [resolvable:$true] %s51
      %57 = dma.hbm_to_vmem [thread:$0]  %s50, 4096, %s52, [#allocation6], 256, 256, 16
    $region21: #{lstm_model_simple_forward.1} parent=1 // pred_fallthru
      _
    // Predicated region
    $region22: #{lstm_model_simple_forward.1} parent=1 // pred_check
      _
    $region23: #{lstm_model_simple_forward.1} parent=1 // pred_check_branch
      %59 = sbr.rel (0) target = $region25
    $region24: #{lstm_model_simple_forward.1} parent=1 // pred_region
      _
    $region25: #{lstm_model_simple_forward.1} parent=1 // pred_fallthru
      _
    // Predicated region
    $region26: #{lstm_model_simple_forward.1} parent=1 // pred_check
      _
    $region27: #{lstm_model_simple_forward.1} parent=1 // pred_check_branch
      %61 = sbr.rel (0) target = $region29
    $region28: #{lstm_model_simple_forward.1} parent=1 // pred_region
      %63 = vsyncadd [#allocation6], 0
      %s64 = sshll.u32 %s6, 4
      %s65 = int_to_ptr.hbm [resolvable:$true] %s64
      %s66 = sshll.u32 [#allocation7], 4
      %s67 = int_to_ptr.vmem [resolvable:$true] %s66
      %72 = dma.hbm_to_vmem [thread:$0]  %s65, 4096, %s67, [#allocation6], 256, 256, 16
    $region29: #{lstm_model_simple_forward.1} parent=1 // pred_fallthru
      _
    // Predicated region
    $region30: #{lstm_model_simple_forward.1} parent=1 // pred_check
      _
    $region31: #{lstm_model_simple_forward.1} parent=1 // pred_check_branch
      %74 = sbr.rel (0) target = $region33
    $region32: #{lstm_model_simple_forward.1} parent=1 // pred_region
      %76 = vsyncadd [#allocation9], 0
      %s77 = sshll.u32 %s7, 4
      %s78 = int_to_ptr.hbm [resolvable:$true] %s77
      %s79 = sshll.u32 [#allocation8], 4
      %s80 = int_to_ptr.vmem [resolvable:$true] %s79
      %85 = dma.hbm_to_vmem [thread:$0]  %s78, 4096, %s80, [#allocation9], 256, 256, 16
    $region33: #{lstm_model_simple_forward.1} parent=1 // pred_fallthru
      _
    // Predicated region
    $region34: #{lstm_model_simple_forward.1} parent=1 // pred_check
      _
    $region35: #{lstm_model_simple_forward.1} parent=1 // pred_check_branch
      %87 = sbr.rel (0) target = $region37
    $region36: #{lstm_model_simple_forward.1} parent=1 // pred_region
      _
    $region37: #{lstm_model_simple_forward.1} parent=1 // pred_fallthru
      _
    // Predicated region
    $region38: #{lstm_model_simple_forward.1} parent=1 // pred_check
      _
    $region39: #{lstm_model_simple_forward.1} parent=1 // pred_check_branch
      %89 = sbr.rel (0) target = $region41
    $region40: #{lstm_model_simple_forward.1} parent=1 // pred_region
      %91 = vsyncadd [#allocation9], 0
      %s92 = sshll.u32 %s9, 4
      %s93 = int_to_ptr.hbm [resolvable:$true] %s92
      %s94 = sshll.u32 [#allocation10], 4
      %s95 = int_to_ptr.vmem [resolvable:$true] %s94
      %100 = dma.hbm_to_vmem [thread:$0]  %s93, 4096, %s95, [#allocation9], 256, 256, 16
    $region41: #{lstm_model_simple_forward.1} parent=1 // pred_fallthru
      _
    // Predicated region
    $region42: #{lstm_model_simple_forward.1} parent=1 // pred_check
      _
    $region43: #{lstm_model_simple_forward.1} parent=1 // pred_check_branch
      %102 = sbr.rel (0) target = $region45
    $region44: #{lstm_model_simple_forward.1} parent=1 // pred_region
      %104 = vsyncadd [#allocation12], 0
      %s105 = sshll.u32 %s10, 4
      %s106 = int_to_ptr.hbm [resolvable:$true] %s105
      %s107 = sshll.u32 [#allocation11], 4
      %s108 = int_to_ptr.vmem [resolvable:$true] %s107
      %113 = dma.hbm_to_vmem [thread:$0]  %s106, 4096, %s108, [#allocation12], 256, 256, 16
    $region45: #{lstm_model_simple_forward.1} parent=1 // pred_fallthru
      _
    // Predicated region
    $region46: #{lstm_model_simple_forward.1} parent=1 // pred_check
      _
    $region47: #{lstm_model_simple_forward.1} parent=1 // pred_check_branch
      %115 = sbr.rel (0) target = $region49
    $region48: #{lstm_model_simple_forward.1} parent=1 // pred_region
      _
    $region49: #{lstm_model_simple_forward.1} parent=1 // pred_fallthru
      _
    // Predicated region
    $region50: #{lstm_model_simple_forward.1} parent=1 // pred_check
      _
    $region51: #{lstm_model_simple_forward.1} parent=1 // pred_check_branch
      %117 = sbr.rel (0) target = $region53
    $region52: #{lstm_model_simple_forward.1} parent=1 // pred_region
      _
    $region53: #{lstm_model_simple_forward.1} parent=1 // pred_fallthru
      _
    // Predicated region
    $region54: #{lstm_model_simple_forward.1} parent=1 // pred_check
      _
    $region55: #{lstm_model_simple_forward.1} parent=1 // pred_check_branch
      %119 = sbr.rel (0) target = $region57
    $region56: #{lstm_model_simple_forward.1} parent=1 // pred_region
      _
    $region57: #{lstm_model_simple_forward.1} parent=1 // pred_fallthru
      _
    // Predicated region
    $region58: #{lstm_model_simple_forward.1} parent=1 // pred_check
      _
    $region59: #{lstm_model_simple_forward.1} parent=1 // pred_check_branch
      %121 = sbr.rel (0) target = $region61
    $region60: #{lstm_model_simple_forward.1} parent=1 // pred_region
      %123 = dma.done [#allocation4], 6144
    $region61: #{lstm_model_simple_forward.1} parent=1 // pred_fallthru
      _
    // Predicated region
    $region62: #{lstm_model_simple_forward.1} parent=1 // pred_check
      _
    $region63: #{lstm_model_simple_forward.1} parent=1 // pred_check_branch
      %125 = sbr.rel (0) target = $region65
    $region64: #{lstm_model_simple_forward.1} parent=1 // pred_region
      %127 = dma.done [#allocation6], 4096
    $region65: #{lstm_model_simple_forward.1} parent=1 // pred_fallthru
      _
    // Predicated region
    $region66: #{lstm_model_simple_forward.1} parent=1 // pred_check
      _
    $region67: #{lstm_model_simple_forward.1} parent=1 // pred_check_branch
      %129 = sbr.rel (0) target = $region69
    $region68: #{lstm_model_simple_forward.1} parent=1 // pred_region
      %131 = dma.done [#allocation6], 4096
    $region69: #{lstm_model_simple_forward.1} parent=1 // pred_fallthru
      _
    // Predicated region
    $region70: #{lstm_model_simple_forward.1} parent=1 // pred_check
      _
    $region71: #{lstm_model_simple_forward.1} parent=1 // pred_check_branch
      %133 = sbr.rel (0) target = $region73
    $region72: #{lstm_model_simple_forward.1} parent=1 // pred_region
      %135 = dma.done [#allocation9], 4096
    $region73: #{lstm_model_simple_forward.1} parent=1 // pred_fallthru
      _
    // Predicated region
    $region74: #{lstm_model_simple_forward.1} parent=1 // pred_check
      _
    $region75: #{lstm_model_simple_forward.1} parent=1 // pred_check_branch
      %137 = sbr.rel (0) target = $region77
    $region76: #{lstm_model_simple_forward.1} parent=1 // pred_region
      %139 = dma.done [#allocation9], 4096
    $region77: #{lstm_model_simple_forward.1} parent=1 // pred_fallthru
      _
    // Predicated region
    $region78: #{lstm_model_simple_forward.1} parent=1 // pred_check
      _
    $region79: #{lstm_model_simple_forward.1} parent=1 // pred_check_branch
      %141 = sbr.rel (0) target = $region81
    $region80: #{lstm_model_simple_forward.1} parent=1 // pred_region
      %143 = dma.done [#allocation12], 4096
    $region81: #{lstm_model_simple_forward.1} parent=1 // pred_fallthru
      _
    %v145 = vld [vmem:[%s0] sm:$0xff]
    %v146 = vld [vmem:[%s0 + $0x8] sm:$0xff]
    %v147 = vld [vmem:[%s0 + $0x10] sm:$0xff]
    %v148 = vld [vmem:[%s0 + $0x18] sm:$0xff]
    %v149 = vld [vmem:[%s0 + $0x20] sm:$0xff]
    %v150 = vld [vmem:[%s0 + $0x28] sm:$0xff]
    %v151 = vld [vmem:[%s0 + $0x30] sm:$0xff]
    %v152 = vld [vmem:[%s0 + $0x38] sm:$0xff]
    %v153 = vld [vmem:[%s0 + $0x40] sm:$0xff]
    %v154 = vld [vmem:[%s0 + $0x48] sm:$0xff]
    %v155 = vld [vmem:[%s0 + $0x50] sm:$0xff]
    %v156 = vld [vmem:[%s0 + $0x58] sm:$0xff]
    %v157 = vld [vmem:[%s0 + $0x60] sm:$0xff]
    %v158 = vld [vmem:[%s0 + $0x68] sm:$0xff]
    %v159 = vld [vmem:[%s0 + $0x70] sm:$0xff]
    %v160 = vld [vmem:[%s0 + $0x78] sm:$0xff]
    %v161 = vld [vmem:[#allocation3] sm:$0xff]
    %v162 = vld [vmem:[#allocation3 + $0x8] sm:$0xff]
    %v163 = vld [vmem:[#allocation3 + $0x10] sm:$0xff]
    %v164 = vld [vmem:[#allocation3 + $0x18] sm:$0xff]
    %v165 = vld [vmem:[#allocation3 + $0x20] sm:$0xff]
    %v166 = vld [vmem:[#allocation3 + $0x28] sm:$0xff]
    %v167 = vld [vmem:[#allocation3 + $0x30] sm:$0xff]
    %v168 = vld [vmem:[#allocation3 + $0x38] sm:$0xff]
    %v169 = vld [vmem:[#allocation3 + $0x40] sm:$0xff]
    %v170 = vld [vmem:[#allocation3 + $0x48] sm:$0xff]
    %v171 = vld [vmem:[#allocation3 + $0x50] sm:$0xff]
    %v172 = vld [vmem:[#allocation3 + $0x58] sm:$0xff]
    %v173 = vld [vmem:[#allocation3 + $0x60] sm:$0xff]
    %v174 = vld [vmem:[#allocation3 + $0x68] sm:$0xff]
    %v175 = vld [vmem:[#allocation3 + $0x70] sm:$0xff]
    %v176 = vld [vmem:[#allocation3 + $0x78] sm:$0xff]
    %v177 = vld [vmem:[#allocation3 + $0x80] sm:$0xff]
    %v178 = vld [vmem:[#allocation3 + $0x88] sm:$0xff]
    %v179 = vld [vmem:[#allocation3 + $0x90] sm:$0xff]
    %v180 = vld [vmem:[#allocation3 + $0x98] sm:$0xff]
    %v181 = vld [vmem:[#allocation3 + $0xa0] sm:$0xff]
    %v182 = vld [vmem:[#allocation3 + $0xa8] sm:$0xff]
    %v183 = vld [vmem:[#allocation3 + $0xb0] sm:$0xff]
    %v184 = vld [vmem:[#allocation3 + $0xb8] sm:$0xff]
    %v185 = vld [vmem:[#allocation3 + $0xc0] sm:$0xff]
    %v186 = vld [vmem:[#allocation3 + $0xc8] sm:$0xff]
    %v187 = vld [vmem:[#allocation3 + $0xd0] sm:$0xff]
    %v188 = vld [vmem:[#allocation3 + $0xd8] sm:$0xff]
    %v189 = vld [vmem:[#allocation3 + $0xe0] sm:$0xff]
    %v190 = vld [vmem:[#allocation3 + $0xe8] sm:$0xff]
    %v191 = vld [vmem:[#allocation3 + $0xf0] sm:$0xff]
    %v192 = vld [vmem:[#allocation3 + $0xf8] sm:$0xff]
    %v193 = vld [vmem:[#allocation3 + $0x100] sm:$0xff]
    %v194 = vld [vmem:[#allocation3 + $0x108] sm:$0xff]
    %v195 = vld [vmem:[#allocation3 + $0x110] sm:$0xff]
    %v196 = vld [vmem:[#allocation3 + $0x118] sm:$0xff]
    %v197 = vld [vmem:[#allocation3 + $0x120] sm:$0xff]
    %v198 = vld [vmem:[#allocation3 + $0x128] sm:$0xff]
    %v199 = vld [vmem:[#allocation3 + $0x130] sm:$0xff]
    %v200 = vld [vmem:[#allocation3 + $0x138] sm:$0xff]
    %v201 = vld [vmem:[#allocation3 + $0x140] sm:$0xff]
    %v202 = vld [vmem:[#allocation3 + $0x148] sm:$0xff]
    %v203 = vld [vmem:[#allocation3 + $0x150] sm:$0xff]
    %v204 = vld [vmem:[#allocation3 + $0x158] sm:$0xff]
    %v205 = vld [vmem:[#allocation3 + $0x160] sm:$0xff]
    %v206 = vld [vmem:[#allocation3 + $0x168] sm:$0xff]
    %v207 = vld [vmem:[#allocation3 + $0x170] sm:$0xff]
    %v208 = vld [vmem:[#allocation3 + $0x178] sm:$0xff]
    %v209 = vld [vmem:[#allocation5] sm:$0xff]
    %v210 = vld [vmem:[#allocation5 + $0x8] sm:$0xff]
    %v211 = vld [vmem:[#allocation5 + $0x10] sm:$0xff]
    %v212 = vld [vmem:[#allocation5 + $0x18] sm:$0xff]
    %v213 = vld [vmem:[#allocation5 + $0x20] sm:$0xff]
    %v214 = vld [vmem:[#allocation5 + $0x28] sm:$0xff]
    %v215 = vld [vmem:[#allocation5 + $0x30] sm:$0xff]
    %v216 = vld [vmem:[#allocation5 + $0x38] sm:$0xff]
    %v217 = vld [vmem:[#allocation5 + $0x40] sm:$0xff]
    %v218 = vld [vmem:[#allocation5 + $0x48] sm:$0xff]
    %v219 = vld [vmem:[#allocation5 + $0x50] sm:$0xff]
    %v220 = vld [vmem:[#allocation5 + $0x58] sm:$0xff]
    %v221 = vld [vmem:[#allocation5 + $0x60] sm:$0xff]
    %v222 = vld [vmem:[#allocation5 + $0x68] sm:$0xff]
    %v223 = vld [vmem:[#allocation5 + $0x70] sm:$0xff]
    %v224 = vld [vmem:[#allocation5 + $0x78] sm:$0xff]
    %v225 = vld [vmem:[#allocation5 + $0x80] sm:$0xff]
    %v226 = vld [vmem:[#allocation5 + $0x88] sm:$0xff]
    %v227 = vld [vmem:[#allocation5 + $0x90] sm:$0xff]
    %v228 = vld [vmem:[#allocation5 + $0x98] sm:$0xff]
    %v229 = vld [vmem:[#allocation5 + $0xa0] sm:$0xff]
    %v230 = vld [vmem:[#allocation5 + $0xa8] sm:$0xff]
    %v231 = vld [vmem:[#allocation5 + $0xb0] sm:$0xff]
    %v232 = vld [vmem:[#allocation5 + $0xb8] sm:$0xff]
    %v233 = vld [vmem:[#allocation5 + $0xc0] sm:$0xff]
    %v234 = vld [vmem:[#allocation5 + $0xc8] sm:$0xff]
    %v235 = vld [vmem:[#allocation5 + $0xd0] sm:$0xff]
    %v236 = vld [vmem:[#allocation5 + $0xd8] sm:$0xff]
    %v237 = vld [vmem:[#allocation5 + $0xe0] sm:$0xff]
    %v238 = vld [vmem:[#allocation5 + $0xe8] sm:$0xff]
    %v239 = vld [vmem:[#allocation5 + $0xf0] sm:$0xff]
    %v240 = vld [vmem:[#allocation5 + $0xf8] sm:$0xff]
    %v241 = vld [vmem:[%s5] sm:$0xf]
    %v242 = vpack.c.bf16 %v147, %v145
    %v243 = vpack.c.bf16 %v148, %v146
    %v244 = vpack.c.bf16 %v151, %v149
    %v245 = vpack.c.bf16 %v152, %v150
    %v246 = vpack.c.bf16 %v155, %v153
    %v247 = vpack.c.bf16 %v156, %v154
    %v248 = vpack.c.bf16 %v159, %v157
    %v249 = vpack.c.bf16 %v160, %v158
    %v251 = vperm.slane %v241, 0
    %v252 = vperm.slane %v241, 1
    %v253 = vperm.slane %v241, 2
    %v254 = vperm.slane %v241, 3
    %v307 = vunpack.c.l.b16 %v161
    %v308 = vunpack.c.h.b16 %v161
    %v309 = vunpack.c.l.b16 %v162
    %v310 = vunpack.c.h.b16 %v162
    %v311 = vunpack.c.l.b16 %v163
    %v312 = vunpack.c.h.b16 %v163
    %v313 = vunpack.c.l.b16 %v164
    %v314 = vunpack.c.h.b16 %v164
    %v315 = vunpack.c.l.b16 %v165
    %v316 = vunpack.c.h.b16 %v165
    %v317 = vunpack.c.l.b16 %v166
    %v318 = vunpack.c.h.b16 %v166
    %v319 = vunpack.c.l.b16 %v167
    %v320 = vunpack.c.h.b16 %v167
    %v321 = vunpack.c.l.b16 %v168
    %v322 = vunpack.c.h.b16 %v168
    %v323 = vunpack.c.l.b16 %v169
    %v324 = vunpack.c.h.b16 %v169
    %v325 = vunpack.c.l.b16 %v170
    %v326 = vunpack.c.h.b16 %v170
    %v327 = vunpack.c.l.b16 %v171
    %v328 = vunpack.c.h.b16 %v171
    %v329 = vunpack.c.l.b16 %v172
    %v330 = vunpack.c.h.b16 %v172
    %v331 = vunpack.c.l.b16 %v173
    %v332 = vunpack.c.h.b16 %v173
    %v333 = vunpack.c.l.b16 %v174
    %v334 = vunpack.c.h.b16 %v174
    %v335 = vunpack.c.l.b16 %v175
    %v336 = vunpack.c.h.b16 %v175
    %v337 = vunpack.c.l.b16 %v176
    %v338 = vunpack.c.h.b16 %v176
    %v339 = vunpack.c.l.b16 %v177
    %v340 = vunpack.c.h.b16 %v177
    %v341 = vunpack.c.l.b16 %v178
    %v342 = vunpack.c.h.b16 %v178
    %v343 = vunpack.c.l.b16 %v179
    %v344 = vunpack.c.h.b16 %v179
    %v345 = vunpack.c.l.b16 %v180
    %v346 = vunpack.c.h.b16 %v180
    %v347 = vunpack.c.l.b16 %v181
    %v348 = vunpack.c.h.b16 %v181
    %v349 = vunpack.c.l.b16 %v182
    %v350 = vunpack.c.h.b16 %v182
    %v351 = vunpack.c.l.b16 %v183
    %v352 = vunpack.c.h.b16 %v183
    %v353 = vunpack.c.l.b16 %v184
    %v354 = vunpack.c.h.b16 %v184
    %v355 = vunpack.c.l.b16 %v185
    %v356 = vunpack.c.h.b16 %v185
    %v357 = vunpack.c.l.b16 %v186
    %v358 = vunpack.c.h.b16 %v186
    %v359 = vunpack.c.l.b16 %v187
    %v360 = vunpack.c.h.b16 %v187
    %v361 = vunpack.c.l.b16 %v188
    %v362 = vunpack.c.h.b16 %v188
    %v363 = vunpack.c.l.b16 %v189
    %v364 = vunpack.c.h.b16 %v189
    %v365 = vunpack.c.l.b16 %v190
    %v366 = vunpack.c.h.b16 %v190
    %v367 = vunpack.c.l.b16 %v191
    %v368 = vunpack.c.h.b16 %v191
    %v369 = vunpack.c.l.b16 %v192
    %v370 = vunpack.c.h.b16 %v192
    %v371 = vunpack.c.l.b16 %v193
    %v372 = vunpack.c.h.b16 %v193
    %v373 = vunpack.c.l.b16 %v194
    %v374 = vunpack.c.h.b16 %v194
    %v375 = vunpack.c.l.b16 %v195
    %v376 = vunpack.c.h.b16 %v195
    %v377 = vunpack.c.l.b16 %v196
    %v378 = vunpack.c.h.b16 %v196
    %v379 = vunpack.c.l.b16 %v197
    %v380 = vunpack.c.h.b16 %v197
    %v381 = vunpack.c.l.b16 %v198
    %v382 = vunpack.c.h.b16 %v198
    %v383 = vunpack.c.l.b16 %v199
    %v384 = vunpack.c.h.b16 %v199
    %v385 = vunpack.c.l.b16 %v200
    %v386 = vunpack.c.h.b16 %v200
    %v387 = vunpack.c.l.b16 %v201
    %v388 = vunpack.c.h.b16 %v201
    %v389 = vunpack.c.l.b16 %v202
    %v390 = vunpack.c.h.b16 %v202
    %v391 = vunpack.c.l.b16 %v203
    %v392 = vunpack.c.h.b16 %v203
    %v393 = vunpack.c.l.b16 %v204
    %v394 = vunpack.c.h.b16 %v204
    %v395 = vunpack.c.l.b16 %v205
    %v396 = vunpack.c.h.b16 %v205
    %v397 = vunpack.c.l.b16 %v206
    %v398 = vunpack.c.h.b16 %v206
    %v399 = vunpack.c.l.b16 %v207
    %v400 = vunpack.c.h.b16 %v207
    %v401 = vunpack.c.l.b16 %v208
    %v402 = vunpack.c.h.b16 %v208
    %v403 = vpack.c.b16 %v311, %v307
    %v404 = vpack.c.b16 %v312, %v308
    %v405 = vpack.c.b16 %v313, %v309
    %v406 = vpack.c.b16 %v314, %v310
    %v407 = vpack.c.b16 %v319, %v315
    %v408 = vpack.c.b16 %v320, %v316
    %v409 = vpack.c.b16 %v321, %v317
    %v410 = vpack.c.b16 %v322, %v318
    %v411 = vpack.c.b16 %v327, %v323
    %v412 = vpack.c.b16 %v328, %v324
    %v413 = vpack.c.b16 %v329, %v325
    %v414 = vpack.c.b16 %v330, %v326
    %v415 = vpack.c.b16 %v335, %v331
    %v416 = vpack.c.b16 %v336, %v332
    %v417 = vpack.c.b16 %v337, %v333
    %v418 = vpack.c.b16 %v338, %v334
    %v419 = vpack.c.b16 %v343, %v339
    %v420 = vpack.c.b16 %v344, %v340
    %v421 = vpack.c.b16 %v345, %v341
    %v422 = vpack.c.b16 %v346, %v342
    %v423 = vpack.c.b16 %v351, %v347
    %v424 = vpack.c.b16 %v352, %v348
    %v425 = vpack.c.b16 %v353, %v349
    %v426 = vpack.c.b16 %v354, %v350
    %v427 = vpack.c.b16 %v359, %v355
    %v428 = vpack.c.b16 %v360, %v356
    %v429 = vpack.c.b16 %v361, %v357
    %v430 = vpack.c.b16 %v362, %v358
    %v431 = vpack.c.b16 %v367, %v363
    %v432 = vpack.c.b16 %v368, %v364
    %v433 = vpack.c.b16 %v369, %v365
    %v434 = vpack.c.b16 %v370, %v366
    %v435 = vpack.c.b16 %v375, %v371
    %v436 = vpack.c.b16 %v376, %v372
    %v437 = vpack.c.b16 %v377, %v373
    %v438 = vpack.c.b16 %v378, %v374
    %v439 = vpack.c.b16 %v383, %v379
    %v440 = vpack.c.b16 %v384, %v380
    %v441 = vpack.c.b16 %v385, %v381
    %v442 = vpack.c.b16 %v386, %v382
    %v443 = vpack.c.b16 %v391, %v387
    %v444 = vpack.c.b16 %v392, %v388
    %v445 = vpack.c.b16 %v393, %v389
    %v446 = vpack.c.b16 %v394, %v390
    %v447 = vpack.c.b16 %v399, %v395
    %v448 = vpack.c.b16 %v400, %v396
    %v449 = vpack.c.b16 %v401, %v397
    %v450 = vpack.c.b16 %v402, %v398
    %vm499 = vcmask 523264
    %v501 = vsel %vm499, %v243, 0
    %v504 = vsel %vm499, %v245, 0
    %v507 = vsel %vm499, %v247, 0
    %v510 = vsel %vm499, %v249, 0
    %512 = vmatpush.bf16.msra.mxu0 %v431
    %513 = vmatpush.bf16.msra.mxu0 %v427
    %514 = vmatpush.bf16.msra.mxu0 %v423
    %515 = vmatpush.bf16.msra.mxu0 %v419
    %516 = vmatpush.bf16.msra.mxu0 %v415
    %517 = vmatpush.bf16.msra.mxu0 %v411
    %518 = vmatpush.bf16.msra.mxu0 %v407
    %519 = vmatpush.bf16.msra.mxu0 %v403
    %520 = vmatmul.bf16.gmra.mxu0 %v242
    %v521 = vpop.f32.mrf.mxu0
    %v522 = vadd.f32 %v251, %v521
    %v523 = vpop.f32.mrf.mxu0
    %v524 = vadd.f32 %v251, %v523
    %525 = vmatmul.bf16.gmra.mxu0 %v244
    %v526 = vpop.f32.mrf.mxu0
    %v527 = vadd.f32 %v251, %v526
    %v528 = vpop.f32.mrf.mxu0
    %v529 = vadd.f32 %v251, %v528
    %530 = vmatmul.bf16.gmra.mxu0 %v246
    %v531 = vpop.f32.mrf.mxu0
    %v532 = vadd.f32 %v251, %v531
    %v533 = vpop.f32.mrf.mxu0
    %v534 = vadd.f32 %v251, %v533
    %535 = vmatmul.bf16.gmra.mxu0 %v248
    %v536 = vpop.f32.mrf.mxu0
    %v537 = vadd.f32 %v251, %v536
    %v538 = vpop.f32.mrf.mxu0
    %v539 = vadd.f32 %v251, %v538
    %540 = vdwg.mxu0
    %541 = vmatpush.bf16.msra.mxu0 0
    %542 = vmatpush.bf16.msra.mxu0 0
    %543 = vmatpush.bf16.msra.mxu0 0
    %544 = vmatpush.bf16.msra.mxu0 0
    %545 = vmatpush.bf16.msra.mxu0 %v447
    %546 = vmatpush.bf16.msra.mxu0 %v443
    %547 = vmatpush.bf16.msra.mxu0 %v439
    %548 = vmatpush.bf16.msra.mxu0 %v435
    %549 = vmatmul.bf16.gmra.mxu0 %v501
    %v550 = vpop.f32.mrf.mxu0
    %v551 = vadd.f32 %v522, %v550
    %v552 = vpop.f32.mrf.mxu0
    %v553 = vadd.f32 %v524, %v552
    %554 = vmatmul.bf16.gmra.mxu0 %v504
    %v555 = vpop.f32.mrf.mxu0
    %v556 = vadd.f32 %v527, %v555
    %v557 = vpop.f32.mrf.mxu0
    %v558 = vadd.f32 %v529, %v557
    %559 = vmatmul.bf16.gmra.mxu0 %v507
    %v560 = vpop.f32.mrf.mxu0
    %v561 = vadd.f32 %v532, %v560
    %v562 = vpop.f32.mrf.mxu0
    %v563 = vadd.f32 %v534, %v562
    %564 = vmatmul.bf16.gmra.mxu0 %v510
    %v565 = vpop.f32.mrf.mxu0
    %v566 = vadd.f32 %v537, %v565
    %v567 = vpop.f32.mrf.mxu0
    %v568 = vadd.f32 %v539, %v567
    %569 = vdwg.mxu0
    %570 = vmatpush.bf16.msra.mxu0 %v432
    %571 = vmatpush.bf16.msra.mxu0 %v428
    %572 = vmatpush.bf16.msra.mxu0 %v424
    %573 = vmatpush.bf16.msra.mxu0 %v420
    %574 = vmatpush.bf16.msra.mxu0 %v416
    %575 = vmatpush.bf16.msra.mxu0 %v412
    %576 = vmatpush.bf16.msra.mxu0 %v408
    %577 = vmatpush.bf16.msra.mxu0 %v404
    %578 = vmatmul.bf16.gmra.mxu0 %v242
    %v579 = vpop.f32.mrf.mxu0
    %v580 = vadd.f32 %v252, %v579
    %v581 = vpop.f32.mrf.mxu0
    %v582 = vadd.f32 %v252, %v581
    %583 = vmatmul.bf16.gmra.mxu0 %v244
    %v584 = vpop.f32.mrf.mxu0
    %v585 = vadd.f32 %v252, %v584
    %v586 = vpop.f32.mrf.mxu0
    %v587 = vadd.f32 %v252, %v586
    %588 = vmatmul.bf16.gmra.mxu0 %v246
    %v589 = vpop.f32.mrf.mxu0
    %v590 = vadd.f32 %v252, %v589
    %v591 = vpop.f32.mrf.mxu0
    %v592 = vadd.f32 %v252, %v591
    %593 = vmatmul.bf16.gmra.mxu0 %v248
    %v594 = vpop.f32.mrf.mxu0
    %v595 = vadd.f32 %v252, %v594
    %v596 = vpop.f32.mrf.mxu0
    %v597 = vadd.f32 %v252, %v596
    %598 = vdwg.mxu0
    %599 = vmatpush.bf16.msra.mxu0 0
    %600 = vmatpush.bf16.msra.mxu0 0
    %601 = vmatpush.bf16.msra.mxu0 0
    %602 = vmatpush.bf16.msra.mxu0 0
    %603 = vmatpush.bf16.msra.mxu0 %v448
    %604 = vmatpush.bf16.msra.mxu0 %v444
    %605 = vmatpush.bf16.msra.mxu0 %v440
    %606 = vmatpush.bf16.msra.mxu0 %v436
    %607 = vmatmul.bf16.gmra.mxu0 %v501
    %v608 = vpop.f32.mrf.mxu0
    %v609 = vadd.f32 %v580, %v608
    %v610 = vpop.f32.mrf.mxu0
    %v611 = vadd.f32 %v582, %v610
    %612 = vmatmul.bf16.gmra.mxu0 %v504
    %v613 = vpop.f32.mrf.mxu0
    %v614 = vadd.f32 %v585, %v613
    %v615 = vpop.f32.mrf.mxu0
    %v616 = vadd.f32 %v587, %v615
    %617 = vmatmul.bf16.gmra.mxu0 %v507
    %v618 = vpop.f32.mrf.mxu0
    %v619 = vadd.f32 %v590, %v618
    %v620 = vpop.f32.mrf.mxu0
    %v621 = vadd.f32 %v592, %v620
    %622 = vmatmul.bf16.gmra.mxu0 %v510
    %v623 = vpop.f32.mrf.mxu0
    %v624 = vadd.f32 %v595, %v623
    %v625 = vpop.f32.mrf.mxu0
    %v626 = vadd.f32 %v597, %v625
    %627 = vdwg.mxu0
    %628 = vmatpush.bf16.msra.mxu0 %v433
    %629 = vmatpush.bf16.msra.mxu0 %v429
    %630 = vmatpush.bf16.msra.mxu0 %v425
    %631 = vmatpush.bf16.msra.mxu0 %v421
    %632 = vmatpush.bf16.msra.mxu0 %v417
    %633 = vmatpush.bf16.msra.mxu0 %v413
    %634 = vmatpush.bf16.msra.mxu0 %v409
    %635 = vmatpush.bf16.msra.mxu0 %v405
    %636 = vmatmul.bf16.gmra.mxu0 %v242
    %v637 = vpop.f32.mrf.mxu0
    %v638 = vadd.f32 %v253, %v637
    %v639 = vpop.f32.mrf.mxu0
    %v640 = vadd.f32 %v253, %v639
    %641 = vmatmul.bf16.gmra.mxu0 %v244
    %v642 = vpop.f32.mrf.mxu0
    %v643 = vadd.f32 %v253, %v642
    %v644 = vpop.f32.mrf.mxu0
    %v645 = vadd.f32 %v253, %v644
    %646 = vmatmul.bf16.gmra.mxu0 %v246
    %v647 = vpop.f32.mrf.mxu0
    %v648 = vadd.f32 %v253, %v647
    %v649 = vpop.f32.mrf.mxu0
    %v650 = vadd.f32 %v253, %v649
    %651 = vmatmul.bf16.gmra.mxu0 %v248
    %v652 = vpop.f32.mrf.mxu0
    %v653 = vadd.f32 %v253, %v652
    %v654 = vpop.f32.mrf.mxu0
    %v655 = vadd.f32 %v253, %v654
    %656 = vdwg.mxu0
    %657 = vmatpush.bf16.msra.mxu0 0
    %658 = vmatpush.bf16.msra.mxu0 0
    %659 = vmatpush.bf16.msra.mxu0 0
    %660 = vmatpush.bf16.msra.mxu0 0
    %661 = vmatpush.bf16.msra.mxu0 %v449
    %662 = vmatpush.bf16.msra.mxu0 %v445
    %663 = vmatpush.bf16.msra.mxu0 %v441
    %664 = vmatpush.bf16.msra.mxu0 %v437
    %665 = vmatmul.bf16.gmra.mxu0 %v501
    %v666 = vpop.f32.mrf.mxu0
    %v667 = vadd.f32 %v638, %v666
    %v668 = vpop.f32.mrf.mxu0
    %v669 = vadd.f32 %v640, %v668
    %670 = vmatmul.bf16.gmra.mxu0 %v504
    %v671 = vpop.f32.mrf.mxu0
    %v672 = vadd.f32 %v643, %v671
    %v673 = vpop.f32.mrf.mxu0
    %v674 = vadd.f32 %v645, %v673
    %675 = vmatmul.bf16.gmra.mxu0 %v507
    %v676 = vpop.f32.mrf.mxu0
    %v677 = vadd.f32 %v648, %v676
    %v678 = vpop.f32.mrf.mxu0
    %v679 = vadd.f32 %v650, %v678
    %680 = vmatmul.bf16.gmra.mxu0 %v510
    %v681 = vpop.f32.mrf.mxu0
    %v682 = vadd.f32 %v653, %v681
    %v683 = vpop.f32.mrf.mxu0
    %v684 = vadd.f32 %v655, %v683
    %685 = vdwg.mxu0
    %686 = vmatpush.bf16.msra.mxu0 %v434
    %687 = vmatpush.bf16.msra.mxu0 %v430
    %688 = vmatpush.bf16.msra.mxu0 %v426
    %689 = vmatpush.bf16.msra.mxu0 %v422
    %690 = vmatpush.bf16.msra.mxu0 %v418
    %691 = vmatpush.bf16.msra.mxu0 %v414
    %692 = vmatpush.bf16.msra.mxu0 %v410
    %693 = vmatpush.bf16.msra.mxu0 %v406
    %694 = vmatmul.bf16.gmra.mxu0 %v242
    %v695 = vpop.f32.mrf.mxu0
    %v696 = vadd.f32 %v254, %v695
    %v697 = vpop.f32.mrf.mxu0
    %v698 = vadd.f32 %v254, %v697
    %699 = vmatmul.bf16.gmra.mxu0 %v244
    %v700 = vpop.f32.mrf.mxu0
    %v701 = vadd.f32 %v254, %v700
    %v702 = vpop.f32.mrf.mxu0
    %v703 = vadd.f32 %v254, %v702
    %704 = vmatmul.bf16.gmra.mxu0 %v246
    %v705 = vpop.f32.mrf.mxu0
    %v706 = vadd.f32 %v254, %v705
    %v707 = vpop.f32.mrf.mxu0
    %v708 = vadd.f32 %v254, %v707
    %709 = vmatmul.bf16.gmra.mxu0 %v248
    %v710 = vpop.f32.mrf.mxu0
    %v711 = vadd.f32 %v254, %v710
    %v712 = vpop.f32.mrf.mxu0
    %v713 = vadd.f32 %v254, %v712
    %714 = vdwg.mxu0
    %715 = vmatpush.bf16.msra.mxu0 0
    %716 = vmatpush.bf16.msra.mxu0 0
    %717 = vmatpush.bf16.msra.mxu0 0
    %718 = vmatpush.bf16.msra.mxu0 0
    %719 = vmatpush.bf16.msra.mxu0 %v450
    %720 = vmatpush.bf16.msra.mxu0 %v446
    %721 = vmatpush.bf16.msra.mxu0 %v442
    %722 = vmatpush.bf16.msra.mxu0 %v438
    %723 = vmatmul.bf16.gmra.mxu0 %v501
    %v724 = vpop.f32.mrf.mxu0
    %v725 = vadd.f32 %v696, %v724
    %v726 = vpop.f32.mrf.mxu0
    %v727 = vadd.f32 %v698, %v726
    %728 = vmatmul.bf16.gmra.mxu0 %v504
    %v729 = vpop.f32.mrf.mxu0
    %v730 = vadd.f32 %v701, %v729
    %v731 = vpop.f32.mrf.mxu0
    %v732 = vadd.f32 %v703, %v731
    %733 = vmatmul.bf16.gmra.mxu0 %v507
    %v734 = vpop.f32.mrf.mxu0
    %v735 = vadd.f32 %v706, %v734
    %v736 = vpop.f32.mrf.mxu0
    %v737 = vadd.f32 %v708, %v736
    %738 = vmatmul.bf16.gmra.mxu0 %v510
    %v739 = vpop.f32.mrf.mxu0
    %v740 = vadd.f32 %v711, %v739
    %v741 = vpop.f32.mrf.mxu0
    %v742 = vadd.f32 %v713, %v741
    %743 = vdwg.mxu0
    %v744 = vld [vmem:[%s1] sm:$0xff]
    %v745 = vld [vmem:[%s2] sm:$0xff]
    %v746 = vpack.c.bf16 %v744, %v744
    %v779 = vunpack.c.l.b16 %v209
    %v780 = vunpack.c.h.b16 %v209
    %v781 = vunpack.c.l.b16 %v210
    %v782 = vunpack.c.h.b16 %v210
    %v783 = vunpack.c.l.b16 %v211
    %v784 = vunpack.c.h.b16 %v211
    %v785 = vunpack.c.l.b16 %v212
    %v786 = vunpack.c.h.b16 %v212
    %v787 = vunpack.c.l.b16 %v213
    %v788 = vunpack.c.h.b16 %v213
    %v789 = vunpack.c.l.b16 %v214
    %v790 = vunpack.c.h.b16 %v214
    %v791 = vunpack.c.l.b16 %v215
    %v792 = vunpack.c.h.b16 %v215
    %v793 = vunpack.c.l.b16 %v216
    %v794 = vunpack.c.h.b16 %v216
    %v795 = vunpack.c.l.b16 %v217
    %v796 = vunpack.c.h.b16 %v217
    %v797 = vunpack.c.l.b16 %v218
    %v798 = vunpack.c.h.b16 %v218
    %v799 = vunpack.c.l.b16 %v219
    %v800 = vunpack.c.h.b16 %v219
    %v801 = vunpack.c.l.b16 %v220
    %v802 = vunpack.c.h.b16 %v220
    %v803 = vunpack.c.l.b16 %v221
    %v804 = vunpack.c.h.b16 %v221
    %v805 = vunpack.c.l.b16 %v222
    %v806 = vunpack.c.h.b16 %v222
    %v807 = vunpack.c.l.b16 %v223
    %v808 = vunpack.c.h.b16 %v223
    %v809 = vunpack.c.l.b16 %v224
    %v810 = vunpack.c.h.b16 %v224
    %v811 = vunpack.c.l.b16 %v225
    %v812 = vunpack.c.h.b16 %v225
    %v813 = vunpack.c.l.b16 %v226
    %v814 = vunpack.c.h.b16 %v226
    %v815 = vunpack.c.l.b16 %v227
    %v816 = vunpack.c.h.b16 %v227
    %v817 = vunpack.c.l.b16 %v228
    %v818 = vunpack.c.h.b16 %v228
    %v819 = vunpack.c.l.b16 %v229
    %v820 = vunpack.c.h.b16 %v229
    %v821 = vunpack.c.l.b16 %v230
    %v822 = vunpack.c.h.b16 %v230
    %v823 = vunpack.c.l.b16 %v231
    %v824 = vunpack.c.h.b16 %v231
    %v825 = vunpack.c.l.b16 %v232
    %v826 = vunpack.c.h.b16 %v232
    %v827 = vunpack.c.l.b16 %v233
    %v828 = vunpack.c.h.b16 %v233
    %v829 = vunpack.c.l.b16 %v234
    %v830 = vunpack.c.h.b16 %v234
    %v831 = vunpack.c.l.b16 %v235
    %v832 = vunpack.c.h.b16 %v235
    %v833 = vunpack.c.l.b16 %v236
    %v834 = vunpack.c.h.b16 %v236
    %v835 = vunpack.c.l.b16 %v237
    %v836 = vunpack.c.h.b16 %v237
    %v837 = vunpack.c.l.b16 %v238
    %v838 = vunpack.c.h.b16 %v238
    %v839 = vunpack.c.l.b16 %v239
    %v840 = vunpack.c.h.b16 %v239
    %v841 = vunpack.c.l.b16 %v240
    %v842 = vunpack.c.h.b16 %v240
    %v843 = vpack.c.b16 %v783, %v779
    %v844 = vpack.c.b16 %v784, %v780
    %v845 = vpack.c.b16 %v785, %v781
    %v846 = vpack.c.b16 %v786, %v782
    %v847 = vpack.c.b16 %v791, %v787
    %v848 = vpack.c.b16 %v792, %v788
    %v849 = vpack.c.b16 %v793, %v789
    %v850 = vpack.c.b16 %v794, %v790
    %v851 = vpack.c.b16 %v799, %v795
    %v852 = vpack.c.b16 %v800, %v796
    %v853 = vpack.c.b16 %v801, %v797
    %v854 = vpack.c.b16 %v802, %v798
    %v855 = vpack.c.b16 %v807, %v803
    %v856 = vpack.c.b16 %v808, %v804
    %v857 = vpack.c.b16 %v809, %v805
    %v858 = vpack.c.b16 %v810, %v806
    %v859 = vpack.c.b16 %v815, %v811
    %v860 = vpack.c.b16 %v816, %v812
    %v861 = vpack.c.b16 %v817, %v813
    %v862 = vpack.c.b16 %v818, %v814
    %v863 = vpack.c.b16 %v823, %v819
    %v864 = vpack.c.b16 %v824, %v820
    %v865 = vpack.c.b16 %v825, %v821
    %v866 = vpack.c.b16 %v826, %v822
    %v867 = vpack.c.b16 %v831, %v827
    %v868 = vpack.c.b16 %v832, %v828
    %v869 = vpack.c.b16 %v833, %v829
    %v870 = vpack.c.b16 %v834, %v830
    %v871 = vpack.c.b16 %v839, %v835
    %v872 = vpack.c.b16 %v840, %v836
    %v873 = vpack.c.b16 %v841, %v837
    %v874 = vpack.c.b16 %v842, %v838
    %907 = vmatpush.bf16.msra.mxu0 %v871
    %908 = vmatpush.bf16.msra.mxu0 %v867
    %909 = vmatpush.bf16.msra.mxu0 %v863
    %910 = vmatpush.bf16.msra.mxu0 %v859
    %911 = vmatpush.bf16.msra.mxu0 %v855
    %912 = vmatpush.bf16.msra.mxu0 %v851
    %913 = vmatpush.bf16.msra.mxu0 %v847
    %914 = vmatpush.bf16.msra.mxu0 %v843
    %915 = vmatmul.bf16.gmra.mxu0 %v746
    %v916 = vpop.f32.mrf.mxu0
    %v917 = vadd.f32 0.0, %v916
    %v918 = vpop.f32.mrf.mxu0
    %919 = vdwg.mxu0
    %920 = vmatpush.bf16.msra.mxu0 %v872
    %921 = vmatpush.bf16.msra.mxu0 %v868
    %922 = vmatpush.bf16.msra.mxu0 %v864
    %923 = vmatpush.bf16.msra.mxu0 %v860
    %924 = vmatpush.bf16.msra.mxu0 %v856
    %925 = vmatpush.bf16.msra.mxu0 %v852
    %926 = vmatpush.bf16.msra.mxu0 %v848
    %927 = vmatpush.bf16.msra.mxu0 %v844
    %928 = vmatmul.bf16.gmra.mxu0 %v746
    %v929 = vpop.f32.mrf.mxu0
    %v930 = vadd.f32 0.0, %v929
    %v931 = vpop.f32.mrf.mxu0
    %932 = vdwg.mxu0
    %933 = vmatpush.bf16.msra.mxu0 %v873
    %934 = vmatpush.bf16.msra.mxu0 %v869
    %935 = vmatpush.bf16.msra.mxu0 %v865
    %936 = vmatpush.bf16.msra.mxu0 %v861
    %937 = vmatpush.bf16.msra.mxu0 %v857
    %938 = vmatpush.bf16.msra.mxu0 %v853
    %939 = vmatpush.bf16.msra.mxu0 %v849
    %940 = vmatpush.bf16.msra.mxu0 %v845
    %941 = vmatmul.bf16.gmra.mxu0 %v746
    %v942 = vpop.f32.mrf.mxu0
    %v943 = vadd.f32 0.0, %v942
    %v944 = vpop.f32.mrf.mxu0
    %945 = vdwg.mxu0
    %946 = vmatpush.bf16.msra.mxu0 %v874
    %947 = vmatpush.bf16.msra.mxu0 %v870
    %948 = vmatpush.bf16.msra.mxu0 %v866
    %949 = vmatpush.bf16.msra.mxu0 %v862
    %950 = vmatpush.bf16.msra.mxu0 %v858
    %951 = vmatpush.bf16.msra.mxu0 %v854
    %952 = vmatpush.bf16.msra.mxu0 %v850
    %953 = vmatpush.bf16.msra.mxu0 %v846
    %954 = vmatmul.bf16.gmra.mxu0 %v746
    %v955 = vpop.f32.mrf.mxu0
    %v956 = vadd.f32 0.0, %v955
    %v957 = vpop.f32.mrf.mxu0
    %958 = vdwg.mxu0
    %v959 = vadd.f32 %v551, %v917
    %v960 = vadd.f32 %v609, %v930
    %v961 = vadd.f32 %v667, %v943
    %v962 = vadd.f32 %v725, %v956
    %v963 = vxor.u32 %v959, 2147483648
    %v964 = vmul.f32 %v963, 1.442695
    %v965 = vpow.pop %v964
    %v966 = vadd.f32 %v965, 1.0
    %v967 = vrcp.pop %v966
    %v968 = vmul.f32 %v966, %v967
    %v969 = vsub.f32 1.0, %v968
    %v970 = vmul.f32 %v967, %v969
    %v971 = vadd.f32 %v967, %v970
    %vm972 = vweird.f32 %v966
    %vm973 = vweird.f32 %v967
    %vm974 = vmor %vm972, %vm973
    %v975 = vsel %vm974, %v967, %v971
    %v976 = vand.u32 2147483647, %v966
    %vm977 = vcmp.eq.f32.partialorder %v976, 8.507059e+37
    %v978 = vand.u32 %v966, 2147483648
    %v979 = vor.u32 1.1754944e-38, %v978
    %v980 = vsel %vm977, %v979, %v975
    %v981 = vmul.f32 1.0, %v980
    %v982 = vxor.u32 %v960, 2147483648
    %v983 = vmul.f32 %v982, 1.442695
    %v984 = vpow.pop %v983
    %v985 = vadd.f32 %v984, 1.0
    %v986 = vrcp.pop %v985
    %v987 = vmul.f32 %v985, %v986
    %v988 = vsub.f32 1.0, %v987
    %v989 = vmul.f32 %v986, %v988
    %v990 = vadd.f32 %v986, %v989
    %vm991 = vweird.f32 %v985
    %vm992 = vweird.f32 %v986
    %vm993 = vmor %vm991, %vm992
    %v994 = vsel %vm993, %v986, %v990
    %v995 = vand.u32 2147483647, %v985
    %vm996 = vcmp.eq.f32.partialorder %v995, 8.507059e+37
    %v997 = vand.u32 %v985, 2147483648
    %v998 = vor.u32 1.1754944e-38, %v997
    %v999 = vsel %vm996, %v998, %v994
    %v1000 = vmul.f32 1.0, %v999
    %v1001 = vtanh.pop %v961
    %v1002 = vxor.u32 %v962, 2147483648
    %v1003 = vmul.f32 %v1002, 1.442695
    %v1004 = vpow.pop %v1003
    %v1005 = vadd.f32 %v1004, 1.0
    %v1006 = vrcp.pop %v1005
    %v1007 = vmul.f32 %v1005, %v1006
    %v1008 = vsub.f32 1.0, %v1007
    %v1009 = vmul.f32 %v1006, %v1008
    %v1010 = vadd.f32 %v1006, %v1009
    %vm1011 = vweird.f32 %v1005
    %vm1012 = vweird.f32 %v1006
    %vm1013 = vmor %vm1011, %vm1012
    %v1014 = vsel %vm1013, %v1006, %v1010
    %v1015 = vand.u32 2147483647, %v1005
    %vm1016 = vcmp.eq.f32.partialorder %v1015, 8.507059e+37
    %v1017 = vand.u32 %v1005, 2147483648
    %v1018 = vor.u32 1.1754944e-38, %v1017
    %v1019 = vsel %vm1016, %v1018, %v1014
    %v1020 = vmul.f32 1.0, %v1019
    %v1021 = vmul.f32 %v1000, %v745
    %v1022 = vmul.f32 %v981, %v1001
    %v1023 = vadd.f32 %v1021, %v1022
    %v1024 = vtanh.pop %v1023
    %v1025 = vmul.f32 %v1020, %v1024
    %1026 = vst [vmem:[#allocation2] sm:$0xff] %v1025
    %v1027 = vpack.c.bf16 %v1025, %v1025
    %1028 = vmatpush.bf16.msra.mxu0 %v871
    %1029 = vmatpush.bf16.msra.mxu0 %v867
    %1030 = vmatpush.bf16.msra.mxu0 %v863
    %1031 = vmatpush.bf16.msra.mxu0 %v859
    %1032 = vmatpush.bf16.msra.mxu0 %v855
    %1033 = vmatpush.bf16.msra.mxu0 %v851
    %1034 = vmatpush.bf16.msra.mxu0 %v847
    %1035 = vmatpush.bf16.msra.mxu0 %v843
    %1036 = vmatmul.bf16.gmra.mxu0 %v1027
    %v1037 = vpop.f32.mrf.mxu0
    %v1038 = vadd.f32 0.0, %v1037
    %v1039 = vpop.f32.mrf.mxu0
    %1040 = vdwg.mxu0
    %1041 = vmatpush.bf16.msra.mxu0 %v872
    %1042 = vmatpush.bf16.msra.mxu0 %v868
    %1043 = vmatpush.bf16.msra.mxu0 %v864
    %1044 = vmatpush.bf16.msra.mxu0 %v860
    %1045 = vmatpush.bf16.msra.mxu0 %v856
    %1046 = vmatpush.bf16.msra.mxu0 %v852
    %1047 = vmatpush.bf16.msra.mxu0 %v848
    %1048 = vmatpush.bf16.msra.mxu0 %v844
    %1049 = vmatmul.bf16.gmra.mxu0 %v1027
    %v1050 = vpop.f32.mrf.mxu0
    %v1051 = vadd.f32 0.0, %v1050
    %v1052 = vpop.f32.mrf.mxu0
    %1053 = vdwg.mxu0
    %1054 = vmatpush.bf16.msra.mxu0 %v873
    %1055 = vmatpush.bf16.msra.mxu0 %v869
    %1056 = vmatpush.bf16.msra.mxu0 %v865
    %1057 = vmatpush.bf16.msra.mxu0 %v861
    %1058 = vmatpush.bf16.msra.mxu0 %v857
    %1059 = vmatpush.bf16.msra.mxu0 %v853
    %1060 = vmatpush.bf16.msra.mxu0 %v849
    %1061 = vmatpush.bf16.msra.mxu0 %v845
    %1062 = vmatmul.bf16.gmra.mxu0 %v1027
    %v1063 = vpop.f32.mrf.mxu0
    %v1064 = vadd.f32 0.0, %v1063
    %v1065 = vpop.f32.mrf.mxu0
    %1066 = vdwg.mxu0
    %1067 = vmatpush.bf16.msra.mxu0 %v874
    %1068 = vmatpush.bf16.msra.mxu0 %v870
    %1069 = vmatpush.bf16.msra.mxu0 %v866
    %1070 = vmatpush.bf16.msra.mxu0 %v862
    %1071 = vmatpush.bf16.msra.mxu0 %v858
    %1072 = vmatpush.bf16.msra.mxu0 %v854
    %1073 = vmatpush.bf16.msra.mxu0 %v850
    %1074 = vmatpush.bf16.msra.mxu0 %v846
    %1075 = vmatmul.bf16.gmra.mxu0 %v1027
    %v1076 = vpop.f32.mrf.mxu0
    %v1077 = vadd.f32 0.0, %v1076
    %v1078 = vpop.f32.mrf.mxu0
    %1079 = vdwg.mxu0
    %v1080 = vadd.f32 %v553, %v1038
    %v1081 = vadd.f32 %v611, %v1051
    %v1082 = vadd.f32 %v669, %v1064
    %v1083 = vadd.f32 %v727, %v1077
    %v1084 = vxor.u32 %v1080, 2147483648
    %v1085 = vmul.f32 %v1084, 1.442695
    %v1086 = vpow.pop %v1085
    %v1087 = vadd.f32 %v1086, 1.0
    %v1088 = vrcp.pop %v1087
    %v1089 = vmul.f32 %v1087, %v1088
    %v1090 = vsub.f32 1.0, %v1089
    %v1091 = vmul.f32 %v1088, %v1090
    %v1092 = vadd.f32 %v1088, %v1091
    %vm1093 = vweird.f32 %v1087
    %vm1094 = vweird.f32 %v1088
    %vm1095 = vmor %vm1093, %vm1094
    %v1096 = vsel %vm1095, %v1088, %v1092
    %v1097 = vand.u32 2147483647, %v1087
    %vm1098 = vcmp.eq.f32.partialorder %v1097, 8.507059e+37
    %v1099 = vand.u32 %v1087, 2147483648
    %v1100 = vor.u32 1.1754944e-38, %v1099
    %v1101 = vsel %vm1098, %v1100, %v1096
    %v1102 = vmul.f32 1.0, %v1101
    %v1103 = vxor.u32 %v1081, 2147483648
    %v1104 = vmul.f32 %v1103, 1.442695
    %v1105 = vpow.pop %v1104
    %v1106 = vadd.f32 %v1105, 1.0
    %v1107 = vrcp.pop %v1106
    %v1108 = vmul.f32 %v1106, %v1107
    %v1109 = vsub.f32 1.0, %v1108
    %v1110 = vmul.f32 %v1107, %v1109
    %v1111 = vadd.f32 %v1107, %v1110
    %vm1112 = vweird.f32 %v1106
    %vm1113 = vweird.f32 %v1107
    %vm1114 = vmor %vm1112, %vm1113
    %v1115 = vsel %vm1114, %v1107, %v1111
    %v1116 = vand.u32 2147483647, %v1106
    %vm1117 = vcmp.eq.f32.partialorder %v1116, 8.507059e+37
    %v1118 = vand.u32 %v1106, 2147483648
    %v1119 = vor.u32 1.1754944e-38, %v1118
    %v1120 = vsel %vm1117, %v1119, %v1115
    %v1121 = vmul.f32 1.0, %v1120
    %v1122 = vtanh.pop %v1082
    %v1123 = vxor.u32 %v1083, 2147483648
    %v1124 = vmul.f32 %v1123, 1.442695
    %v1125 = vpow.pop %v1124
    %v1126 = vadd.f32 %v1125, 1.0
    %v1127 = vrcp.pop %v1126
    %v1128 = vmul.f32 %v1126, %v1127
    %v1129 = vsub.f32 1.0, %v1128
    %v1130 = vmul.f32 %v1127, %v1129
    %v1131 = vadd.f32 %v1127, %v1130
    %vm1132 = vweird.f32 %v1126
    %vm1133 = vweird.f32 %v1127
    %vm1134 = vmor %vm1132, %vm1133
    %v1135 = vsel %vm1134, %v1127, %v1131
    %v1136 = vand.u32 2147483647, %v1126
    %vm1137 = vcmp.eq.f32.partialorder %v1136, 8.507059e+37
    %v1138 = vand.u32 %v1126, 2147483648
    %v1139 = vor.u32 1.1754944e-38, %v1138
    %v1140 = vsel %vm1137, %v1139, %v1135
    %v1141 = vmul.f32 1.0, %v1140
    %v1142 = vmul.f32 %v1121, %v1023
    %v1143 = vmul.f32 %v1102, %v1122
    %v1144 = vadd.f32 %v1142, %v1143
    %v1145 = vtanh.pop %v1144
    %v1146 = vmul.f32 %v1141, %v1145
    %1147 = vst [vmem:[#allocation2 + $0x8] sm:$0xff] %v1146
    %v1148 = vpack.c.bf16 %v1146, %v1146
    %1149 = vmatpush.bf16.msra.mxu0 %v871
    %1150 = vmatpush.bf16.msra.mxu0 %v867
    %1151 = vmatpush.bf16.msra.mxu0 %v863
    %1152 = vmatpush.bf16.msra.mxu0 %v859
    %1153 = vmatpush.bf16.msra.mxu0 %v855
    %1154 = vmatpush.bf16.msra.mxu0 %v851
    %1155 = vmatpush.bf16.msra.mxu0 %v847
    %1156 = vmatpush.bf16.msra.mxu0 %v843
    %1157 = vmatmul.bf16.gmra.mxu0 %v1148
    %v1158 = vpop.f32.mrf.mxu0
    %v1159 = vadd.f32 0.0, %v1158
    %v1160 = vpop.f32.mrf.mxu0
    %1161 = vdwg.mxu0
    %1162 = vmatpush.bf16.msra.mxu0 %v872
    %1163 = vmatpush.bf16.msra.mxu0 %v868
    %1164 = vmatpush.bf16.msra.mxu0 %v864
    %1165 = vmatpush.bf16.msra.mxu0 %v860
    %1166 = vmatpush.bf16.msra.mxu0 %v856
    %1167 = vmatpush.bf16.msra.mxu0 %v852
    %1168 = vmatpush.bf16.msra.mxu0 %v848
    %1169 = vmatpush.bf16.msra.mxu0 %v844
    %1170 = vmatmul.bf16.gmra.mxu0 %v1148
    %v1171 = vpop.f32.mrf.mxu0
    %v1172 = vadd.f32 0.0, %v1171
    %v1173 = vpop.f32.mrf.mxu0
    %1174 = vdwg.mxu0
    %1175 = vmatpush.bf16.msra.mxu0 %v873
    %1176 = vmatpush.bf16.msra.mxu0 %v869
    %1177 = vmatpush.bf16.msra.mxu0 %v865
    %1178 = vmatpush.bf16.msra.mxu0 %v861
    %1179 = vmatpush.bf16.msra.mxu0 %v857
    %1180 = vmatpush.bf16.msra.mxu0 %v853
    %1181 = vmatpush.bf16.msra.mxu0 %v849
    %1182 = vmatpush.bf16.msra.mxu0 %v845
    %1183 = vmatmul.bf16.gmra.mxu0 %v1148
    %v1184 = vpop.f32.mrf.mxu0
    %v1185 = vadd.f32 0.0, %v1184
    %v1186 = vpop.f32.mrf.mxu0
    %1187 = vdwg.mxu0
    %1188 = vmatpush.bf16.msra.mxu0 %v874
    %1189 = vmatpush.bf16.msra.mxu0 %v870
    %1190 = vmatpush.bf16.msra.mxu0 %v866
    %1191 = vmatpush.bf16.msra.mxu0 %v862
    %1192 = vmatpush.bf16.msra.mxu0 %v858
    %1193 = vmatpush.bf16.msra.mxu0 %v854
    %1194 = vmatpush.bf16.msra.mxu0 %v850
    %1195 = vmatpush.bf16.msra.mxu0 %v846
    %1196 = vmatmul.bf16.gmra.mxu0 %v1148
    %v1197 = vpop.f32.mrf.mxu0
    %v1198 = vadd.f32 0.0, %v1197
    %v1199 = vpop.f32.mrf.mxu0
    %1200 = vdwg.mxu0
    %v1201 = vadd.f32 %v556, %v1159
    %v1202 = vadd.f32 %v614, %v1172
    %v1203 = vadd.f32 %v672, %v1185
    %v1204 = vadd.f32 %v730, %v1198
    %v1205 = vxor.u32 %v1201, 2147483648
    %v1206 = vmul.f32 %v1205, 1.442695
    %v1207 = vpow.pop %v1206
    %v1208 = vadd.f32 %v1207, 1.0
    %v1209 = vrcp.pop %v1208
    %v1210 = vmul.f32 %v1208, %v1209
    %v1211 = vsub.f32 1.0, %v1210
    %v1212 = vmul.f32 %v1209, %v1211
    %v1213 = vadd.f32 %v1209, %v1212
    %vm1214 = vweird.f32 %v1208
    %vm1215 = vweird.f32 %v1209
    %vm1216 = vmor %vm1214, %vm1215
    %v1217 = vsel %vm1216, %v1209, %v1213
    %v1218 = vand.u32 2147483647, %v1208
    %vm1219 = vcmp.eq.f32.partialorder %v1218, 8.507059e+37
    %v1220 = vand.u32 %v1208, 2147483648
    %v1221 = vor.u32 1.1754944e-38, %v1220
    %v1222 = vsel %vm1219, %v1221, %v1217
    %v1223 = vmul.f32 1.0, %v1222
    %v1224 = vxor.u32 %v1202, 2147483648
    %v1225 = vmul.f32 %v1224, 1.442695
    %v1226 = vpow.pop %v1225
    %v1227 = vadd.f32 %v1226, 1.0
    %v1228 = vrcp.pop %v1227
    %v1229 = vmul.f32 %v1227, %v1228
    %v1230 = vsub.f32 1.0, %v1229
    %v1231 = vmul.f32 %v1228, %v1230
    %v1232 = vadd.f32 %v1228, %v1231
    %vm1233 = vweird.f32 %v1227
    %vm1234 = vweird.f32 %v1228
    %vm1235 = vmor %vm1233, %vm1234
    %v1236 = vsel %vm1235, %v1228, %v1232
    %v1237 = vand.u32 2147483647, %v1227
    %vm1238 = vcmp.eq.f32.partialorder %v1237, 8.507059e+37
    %v1239 = vand.u32 %v1227, 2147483648
    %v1240 = vor.u32 1.1754944e-38, %v1239
    %v1241 = vsel %vm1238, %v1240, %v1236
    %v1242 = vmul.f32 1.0, %v1241
    %v1243 = vtanh.pop %v1203
    %v1244 = vxor.u32 %v1204, 2147483648
    %v1245 = vmul.f32 %v1244, 1.442695
    %v1246 = vpow.pop %v1245
    %v1247 = vadd.f32 %v1246, 1.0
    %v1248 = vrcp.pop %v1247
    %v1249 = vmul.f32 %v1247, %v1248
    %v1250 = vsub.f32 1.0, %v1249
    %v1251 = vmul.f32 %v1248, %v1250
    %v1252 = vadd.f32 %v1248, %v1251
    %vm1253 = vweird.f32 %v1247
    %vm1254 = vweird.f32 %v1248
    %vm1255 = vmor %vm1253, %vm1254
    %v1256 = vsel %vm1255, %v1248, %v1252
    %v1257 = vand.u32 2147483647, %v1247
    %vm1258 = vcmp.eq.f32.partialorder %v1257, 8.507059e+37
    %v1259 = vand.u32 %v1247, 2147483648
    %v1260 = vor.u32 1.1754944e-38, %v1259
    %v1261 = vsel %vm1258, %v1260, %v1256
    %v1262 = vmul.f32 1.0, %v1261
    %v1263 = vmul.f32 %v1242, %v1144
    %v1264 = vmul.f32 %v1223, %v1243
    %v1265 = vadd.f32 %v1263, %v1264
    %v1266 = vtanh.pop %v1265
    %v1267 = vmul.f32 %v1262, %v1266
    %1268 = vst [vmem:[#allocation2 + $0x10] sm:$0xff] %v1267
    %v1269 = vpack.c.bf16 %v1267, %v1267
    %1270 = vmatpush.bf16.msra.mxu0 %v871
    %1271 = vmatpush.bf16.msra.mxu0 %v867
    %1272 = vmatpush.bf16.msra.mxu0 %v863
    %1273 = vmatpush.bf16.msra.mxu0 %v859
    %1274 = vmatpush.bf16.msra.mxu0 %v855
    %1275 = vmatpush.bf16.msra.mxu0 %v851
    %1276 = vmatpush.bf16.msra.mxu0 %v847
    %1277 = vmatpush.bf16.msra.mxu0 %v843
    %1278 = vmatmul.bf16.gmra.mxu0 %v1269
    %v1279 = vpop.f32.mrf.mxu0
    %v1280 = vadd.f32 0.0, %v1279
    %v1281 = vpop.f32.mrf.mxu0
    %1282 = vdwg.mxu0
    %1283 = vmatpush.bf16.msra.mxu0 %v872
    %1284 = vmatpush.bf16.msra.mxu0 %v868
    %1285 = vmatpush.bf16.msra.mxu0 %v864
    %1286 = vmatpush.bf16.msra.mxu0 %v860
    %1287 = vmatpush.bf16.msra.mxu0 %v856
    %1288 = vmatpush.bf16.msra.mxu0 %v852
    %1289 = vmatpush.bf16.msra.mxu0 %v848
    %1290 = vmatpush.bf16.msra.mxu0 %v844
    %1291 = vmatmul.bf16.gmra.mxu0 %v1269
    %v1292 = vpop.f32.mrf.mxu0
    %v1293 = vadd.f32 0.0, %v1292
    %v1294 = vpop.f32.mrf.mxu0
    %1295 = vdwg.mxu0
    %1296 = vmatpush.bf16.msra.mxu0 %v873
    %1297 = vmatpush.bf16.msra.mxu0 %v869
    %1298 = vmatpush.bf16.msra.mxu0 %v865
    %1299 = vmatpush.bf16.msra.mxu0 %v861
    %1300 = vmatpush.bf16.msra.mxu0 %v857
    %1301 = vmatpush.bf16.msra.mxu0 %v853
    %1302 = vmatpush.bf16.msra.mxu0 %v849
    %1303 = vmatpush.bf16.msra.mxu0 %v845
    %1304 = vmatmul.bf16.gmra.mxu0 %v1269
    %v1305 = vpop.f32.mrf.mxu0
    %v1306 = vadd.f32 0.0, %v1305
    %v1307 = vpop.f32.mrf.mxu0
    %1308 = vdwg.mxu0
    %1309 = vmatpush.bf16.msra.mxu0 %v874
    %1310 = vmatpush.bf16.msra.mxu0 %v870
    %1311 = vmatpush.bf16.msra.mxu0 %v866
    %1312 = vmatpush.bf16.msra.mxu0 %v862
    %1313 = vmatpush.bf16.msra.mxu0 %v858
    %1314 = vmatpush.bf16.msra.mxu0 %v854
    %1315 = vmatpush.bf16.msra.mxu0 %v850
    %1316 = vmatpush.bf16.msra.mxu0 %v846
    %1317 = vmatmul.bf16.gmra.mxu0 %v1269
    %v1318 = vpop.f32.mrf.mxu0
    %v1319 = vadd.f32 0.0, %v1318
    %v1320 = vpop.f32.mrf.mxu0
    %1321 = vdwg.mxu0
    %v1322 = vadd.f32 %v558, %v1280
    %v1323 = vadd.f32 %v616, %v1293
    %v1324 = vadd.f32 %v674, %v1306
    %v1325 = vadd.f32 %v732, %v1319
    %v1326 = vxor.u32 %v1322, 2147483648
    %v1327 = vmul.f32 %v1326, 1.442695
    %v1328 = vpow.pop %v1327
    %v1329 = vadd.f32 %v1328, 1.0
    %v1330 = vrcp.pop %v1329
    %v1331 = vmul.f32 %v1329, %v1330
    %v1332 = vsub.f32 1.0, %v1331
    %v1333 = vmul.f32 %v1330, %v1332
    %v1334 = vadd.f32 %v1330, %v1333
    %vm1335 = vweird.f32 %v1329
    %vm1336 = vweird.f32 %v1330
    %vm1337 = vmor %vm1335, %vm1336
    %v1338 = vsel %vm1337, %v1330, %v1334
    %v1339 = vand.u32 2147483647, %v1329
    %vm1340 = vcmp.eq.f32.partialorder %v1339, 8.507059e+37
    %v1341 = vand.u32 %v1329, 2147483648
    %v1342 = vor.u32 1.1754944e-38, %v1341
    %v1343 = vsel %vm1340, %v1342, %v1338
    %v1344 = vmul.f32 1.0, %v1343
    %v1345 = vxor.u32 %v1323, 2147483648
    %v1346 = vmul.f32 %v1345, 1.442695
    %v1347 = vpow.pop %v1346
    %v1348 = vadd.f32 %v1347, 1.0
    %v1349 = vrcp.pop %v1348
    %v1350 = vmul.f32 %v1348, %v1349
    %v1351 = vsub.f32 1.0, %v1350
    %v1352 = vmul.f32 %v1349, %v1351
    %v1353 = vadd.f32 %v1349, %v1352
    %vm1354 = vweird.f32 %v1348
    %vm1355 = vweird.f32 %v1349
    %vm1356 = vmor %vm1354, %vm1355
    %v1357 = vsel %vm1356, %v1349, %v1353
    %v1358 = vand.u32 2147483647, %v1348
    %vm1359 = vcmp.eq.f32.partialorder %v1358, 8.507059e+37
    %v1360 = vand.u32 %v1348, 2147483648
    %v1361 = vor.u32 1.1754944e-38, %v1360
    %v1362 = vsel %vm1359, %v1361, %v1357
    %v1363 = vmul.f32 1.0, %v1362
    %v1364 = vtanh.pop %v1324
    %v1365 = vxor.u32 %v1325, 2147483648
    %v1366 = vmul.f32 %v1365, 1.442695
    %v1367 = vpow.pop %v1366
    %v1368 = vadd.f32 %v1367, 1.0
    %v1369 = vrcp.pop %v1368
    %v1370 = vmul.f32 %v1368, %v1369
    %v1371 = vsub.f32 1.0, %v1370
    %v1372 = vmul.f32 %v1369, %v1371
    %v1373 = vadd.f32 %v1369, %v1372
    %vm1374 = vweird.f32 %v1368
    %vm1375 = vweird.f32 %v1369
    %vm1376 = vmor %vm1374, %vm1375
    %v1377 = vsel %vm1376, %v1369, %v1373
    %v1378 = vand.u32 2147483647, %v1368
    %vm1379 = vcmp.eq.f32.partialorder %v1378, 8.507059e+37
    %v1380 = vand.u32 %v1368, 2147483648
    %v1381 = vor.u32 1.1754944e-38, %v1380
    %v1382 = vsel %vm1379, %v1381, %v1377
    %v1383 = vmul.f32 1.0, %v1382
    %v1384 = vmul.f32 %v1363, %v1265
    %v1385 = vmul.f32 %v1344, %v1364
    %v1386 = vadd.f32 %v1384, %v1385
    %v1387 = vtanh.pop %v1386
    %v1388 = vmul.f32 %v1383, %v1387
    %1389 = vst [vmem:[#allocation2 + $0x18] sm:$0xff] %v1388
    %v1390 = vpack.c.bf16 %v1388, %v1388
    %1391 = vmatpush.bf16.msra.mxu0 %v871
    %1392 = vmatpush.bf16.msra.mxu0 %v867
    %1393 = vmatpush.bf16.msra.mxu0 %v863
    %1394 = vmatpush.bf16.msra.mxu0 %v859
    %1395 = vmatpush.bf16.msra.mxu0 %v855
    %1396 = vmatpush.bf16.msra.mxu0 %v851
    %1397 = vmatpush.bf16.msra.mxu0 %v847
    %1398 = vmatpush.bf16.msra.mxu0 %v843
    %1399 = vmatmul.bf16.gmra.mxu0 %v1390
    %v1400 = vpop.f32.mrf.mxu0
    %v1401 = vadd.f32 0.0, %v1400
    %v1402 = vpop.f32.mrf.mxu0
    %1403 = vdwg.mxu0
    %1404 = vmatpush.bf16.msra.mxu0 %v872
    %1405 = vmatpush.bf16.msra.mxu0 %v868
    %1406 = vmatpush.bf16.msra.mxu0 %v864
    %1407 = vmatpush.bf16.msra.mxu0 %v860
    %1408 = vmatpush.bf16.msra.mxu0 %v856
    %1409 = vmatpush.bf16.msra.mxu0 %v852
    %1410 = vmatpush.bf16.msra.mxu0 %v848
    %1411 = vmatpush.bf16.msra.mxu0 %v844
    %1412 = vmatmul.bf16.gmra.mxu0 %v1390
    %v1413 = vpop.f32.mrf.mxu0
    %v1414 = vadd.f32 0.0, %v1413
    %v1415 = vpop.f32.mrf.mxu0
    %1416 = vdwg.mxu0
    %1417 = vmatpush.bf16.msra.mxu0 %v873
    %1418 = vmatpush.bf16.msra.mxu0 %v869
    %1419 = vmatpush.bf16.msra.mxu0 %v865
    %1420 = vmatpush.bf16.msra.mxu0 %v861
    %1421 = vmatpush.bf16.msra.mxu0 %v857
    %1422 = vmatpush.bf16.msra.mxu0 %v853
    %1423 = vmatpush.bf16.msra.mxu0 %v849
    %1424 = vmatpush.bf16.msra.mxu0 %v845
    %1425 = vmatmul.bf16.gmra.mxu0 %v1390
    %v1426 = vpop.f32.mrf.mxu0
    %v1427 = vadd.f32 0.0, %v1426
    %v1428 = vpop.f32.mrf.mxu0
    %1429 = vdwg.mxu0
    %1430 = vmatpush.bf16.msra.mxu0 %v874
    %1431 = vmatpush.bf16.msra.mxu0 %v870
    %1432 = vmatpush.bf16.msra.mxu0 %v866
    %1433 = vmatpush.bf16.msra.mxu0 %v862
    %1434 = vmatpush.bf16.msra.mxu0 %v858
    %1435 = vmatpush.bf16.msra.mxu0 %v854
    %1436 = vmatpush.bf16.msra.mxu0 %v850
    %1437 = vmatpush.bf16.msra.mxu0 %v846
    %1438 = vmatmul.bf16.gmra.mxu0 %v1390
    %v1439 = vpop.f32.mrf.mxu0
    %v1440 = vadd.f32 0.0, %v1439
    %v1441 = vpop.f32.mrf.mxu0
    %1442 = vdwg.mxu0
    %v1443 = vadd.f32 %v561, %v1401
    %v1444 = vadd.f32 %v619, %v1414
    %v1445 = vadd.f32 %v677, %v1427
    %v1446 = vadd.f32 %v735, %v1440
    %v1447 = vxor.u32 %v1443, 2147483648
    %v1448 = vmul.f32 %v1447, 1.442695
    %v1449 = vpow.pop %v1448
    %v1450 = vadd.f32 %v1449, 1.0
    %v1451 = vrcp.pop %v1450
    %v1452 = vmul.f32 %v1450, %v1451
    %v1453 = vsub.f32 1.0, %v1452
    %v1454 = vmul.f32 %v1451, %v1453
    %v1455 = vadd.f32 %v1451, %v1454
    %vm1456 = vweird.f32 %v1450
    %vm1457 = vweird.f32 %v1451
    %vm1458 = vmor %vm1456, %vm1457
    %v1459 = vsel %vm1458, %v1451, %v1455
    %v1460 = vand.u32 2147483647, %v1450
    %vm1461 = vcmp.eq.f32.partialorder %v1460, 8.507059e+37
    %v1462 = vand.u32 %v1450, 2147483648
    %v1463 = vor.u32 1.1754944e-38, %v1462
    %v1464 = vsel %vm1461, %v1463, %v1459
    %v1465 = vmul.f32 1.0, %v1464
    %v1466 = vxor.u32 %v1444, 2147483648
    %v1467 = vmul.f32 %v1466, 1.442695
    %v1468 = vpow.pop %v1467
    %v1469 = vadd.f32 %v1468, 1.0
    %v1470 = vrcp.pop %v1469
    %v1471 = vmul.f32 %v1469, %v1470
    %v1472 = vsub.f32 1.0, %v1471
    %v1473 = vmul.f32 %v1470, %v1472
    %v1474 = vadd.f32 %v1470, %v1473
    %vm1475 = vweird.f32 %v1469
    %vm1476 = vweird.f32 %v1470
    %vm1477 = vmor %vm1475, %vm1476
    %v1478 = vsel %vm1477, %v1470, %v1474
    %v1479 = vand.u32 2147483647, %v1469
    %vm1480 = vcmp.eq.f32.partialorder %v1479, 8.507059e+37
    %v1481 = vand.u32 %v1469, 2147483648
    %v1482 = vor.u32 1.1754944e-38, %v1481
    %v1483 = vsel %vm1480, %v1482, %v1478
    %v1484 = vmul.f32 1.0, %v1483
    %v1485 = vtanh.pop %v1445
    %v1486 = vxor.u32 %v1446, 2147483648
    %v1487 = vmul.f32 %v1486, 1.442695
    %v1488 = vpow.pop %v1487
    %v1489 = vadd.f32 %v1488, 1.0
    %v1490 = vrcp.pop %v1489
    %v1491 = vmul.f32 %v1489, %v1490
    %v1492 = vsub.f32 1.0, %v1491
    %v1493 = vmul.f32 %v1490, %v1492
    %v1494 = vadd.f32 %v1490, %v1493
    %vm1495 = vweird.f32 %v1489
    %vm1496 = vweird.f32 %v1490
    %vm1497 = vmor %vm1495, %vm1496
    %v1498 = vsel %vm1497, %v1490, %v1494
    %v1499 = vand.u32 2147483647, %v1489
    %vm1500 = vcmp.eq.f32.partialorder %v1499, 8.507059e+37
    %v1501 = vand.u32 %v1489, 2147483648
    %v1502 = vor.u32 1.1754944e-38, %v1501
    %v1503 = vsel %vm1500, %v1502, %v1498
    %v1504 = vmul.f32 1.0, %v1503
    %v1505 = vmul.f32 %v1484, %v1386
    %v1506 = vmul.f32 %v1465, %v1485
    %v1507 = vadd.f32 %v1505, %v1506
    %v1508 = vtanh.pop %v1507
    %v1509 = vmul.f32 %v1504, %v1508
    %1510 = vst [vmem:[#allocation2 + $0x20] sm:$0xff] %v1509
    %v1511 = vpack.c.bf16 %v1509, %v1509
    %1512 = vmatpush.bf16.msra.mxu0 %v871
    %1513 = vmatpush.bf16.msra.mxu0 %v867
    %1514 = vmatpush.bf16.msra.mxu0 %v863
    %1515 = vmatpush.bf16.msra.mxu0 %v859
    %1516 = vmatpush.bf16.msra.mxu0 %v855
    %1517 = vmatpush.bf16.msra.mxu0 %v851
    %1518 = vmatpush.bf16.msra.mxu0 %v847
    %1519 = vmatpush.bf16.msra.mxu0 %v843
    %1520 = vmatmul.bf16.gmra.mxu0 %v1511
    %v1521 = vpop.f32.mrf.mxu0
    %v1522 = vadd.f32 0.0, %v1521
    %v1523 = vpop.f32.mrf.mxu0
    %1524 = vdwg.mxu0
    %1525 = vmatpush.bf16.msra.mxu0 %v872
    %1526 = vmatpush.bf16.msra.mxu0 %v868
    %1527 = vmatpush.bf16.msra.mxu0 %v864
    %1528 = vmatpush.bf16.msra.mxu0 %v860
    %1529 = vmatpush.bf16.msra.mxu0 %v856
    %1530 = vmatpush.bf16.msra.mxu0 %v852
    %1531 = vmatpush.bf16.msra.mxu0 %v848
    %1532 = vmatpush.bf16.msra.mxu0 %v844
    %1533 = vmatmul.bf16.gmra.mxu0 %v1511
    %v1534 = vpop.f32.mrf.mxu0
    %v1535 = vadd.f32 0.0, %v1534
    %v1536 = vpop.f32.mrf.mxu0
    %1537 = vdwg.mxu0
    %1538 = vmatpush.bf16.msra.mxu0 %v873
    %1539 = vmatpush.bf16.msra.mxu0 %v869
    %1540 = vmatpush.bf16.msra.mxu0 %v865
    %1541 = vmatpush.bf16.msra.mxu0 %v861
    %1542 = vmatpush.bf16.msra.mxu0 %v857
    %1543 = vmatpush.bf16.msra.mxu0 %v853
    %1544 = vmatpush.bf16.msra.mxu0 %v849
    %1545 = vmatpush.bf16.msra.mxu0 %v845
    %1546 = vmatmul.bf16.gmra.mxu0 %v1511
    %v1547 = vpop.f32.mrf.mxu0
    %v1548 = vadd.f32 0.0, %v1547
    %v1549 = vpop.f32.mrf.mxu0
    %1550 = vdwg.mxu0
    %1551 = vmatpush.bf16.msra.mxu0 %v874
    %1552 = vmatpush.bf16.msra.mxu0 %v870
    %1553 = vmatpush.bf16.msra.mxu0 %v866
    %1554 = vmatpush.bf16.msra.mxu0 %v862
    %1555 = vmatpush.bf16.msra.mxu0 %v858
    %1556 = vmatpush.bf16.msra.mxu0 %v854
    %1557 = vmatpush.bf16.msra.mxu0 %v850
    %1558 = vmatpush.bf16.msra.mxu0 %v846
    %1559 = vmatmul.bf16.gmra.mxu0 %v1511
    %v1560 = vpop.f32.mrf.mxu0
    %v1561 = vadd.f32 0.0, %v1560
    %v1562 = vpop.f32.mrf.mxu0
    %1563 = vdwg.mxu0
    %v1564 = vadd.f32 %v563, %v1522
    %v1565 = vadd.f32 %v621, %v1535
    %v1566 = vadd.f32 %v679, %v1548
    %v1567 = vadd.f32 %v737, %v1561
    %v1568 = vxor.u32 %v1564, 2147483648
    %v1569 = vmul.f32 %v1568, 1.442695
    %v1570 = vpow.pop %v1569
    %v1571 = vadd.f32 %v1570, 1.0
    %v1572 = vrcp.pop %v1571
    %v1573 = vmul.f32 %v1571, %v1572
    %v1574 = vsub.f32 1.0, %v1573
    %v1575 = vmul.f32 %v1572, %v1574
    %v1576 = vadd.f32 %v1572, %v1575
    %vm1577 = vweird.f32 %v1571
    %vm1578 = vweird.f32 %v1572
    %vm1579 = vmor %vm1577, %vm1578
    %v1580 = vsel %vm1579, %v1572, %v1576
    %v1581 = vand.u32 2147483647, %v1571
    %vm1582 = vcmp.eq.f32.partialorder %v1581, 8.507059e+37
    %v1583 = vand.u32 %v1571, 2147483648
    %v1584 = vor.u32 1.1754944e-38, %v1583
    %v1585 = vsel %vm1582, %v1584, %v1580
    %v1586 = vmul.f32 1.0, %v1585
    %v1587 = vxor.u32 %v1565, 2147483648
    %v1588 = vmul.f32 %v1587, 1.442695
    %v1589 = vpow.pop %v1588
    %v1590 = vadd.f32 %v1589, 1.0
    %v1591 = vrcp.pop %v1590
    %v1592 = vmul.f32 %v1590, %v1591
    %v1593 = vsub.f32 1.0, %v1592
    %v1594 = vmul.f32 %v1591, %v1593
    %v1595 = vadd.f32 %v1591, %v1594
    %vm1596 = vweird.f32 %v1590
    %vm1597 = vweird.f32 %v1591
    %vm1598 = vmor %vm1596, %vm1597
    %v1599 = vsel %vm1598, %v1591, %v1595
    %v1600 = vand.u32 2147483647, %v1590
    %vm1601 = vcmp.eq.f32.partialorder %v1600, 8.507059e+37
    %v1602 = vand.u32 %v1590, 2147483648
    %v1603 = vor.u32 1.1754944e-38, %v1602
    %v1604 = vsel %vm1601, %v1603, %v1599
    %v1605 = vmul.f32 1.0, %v1604
    %v1606 = vtanh.pop %v1566
    %v1607 = vxor.u32 %v1567, 2147483648
    %v1608 = vmul.f32 %v1607, 1.442695
    %v1609 = vpow.pop %v1608
    %v1610 = vadd.f32 %v1609, 1.0
    %v1611 = vrcp.pop %v1610
    %v1612 = vmul.f32 %v1610, %v1611
    %v1613 = vsub.f32 1.0, %v1612
    %v1614 = vmul.f32 %v1611, %v1613
    %v1615 = vadd.f32 %v1611, %v1614
    %vm1616 = vweird.f32 %v1610
    %vm1617 = vweird.f32 %v1611
    %vm1618 = vmor %vm1616, %vm1617
    %v1619 = vsel %vm1618, %v1611, %v1615
    %v1620 = vand.u32 2147483647, %v1610
    %vm1621 = vcmp.eq.f32.partialorder %v1620, 8.507059e+37
    %v1622 = vand.u32 %v1610, 2147483648
    %v1623 = vor.u32 1.1754944e-38, %v1622
    %v1624 = vsel %vm1621, %v1623, %v1619
    %v1625 = vmul.f32 1.0, %v1624
    %v1626 = vmul.f32 %v1605, %v1507
    %v1627 = vmul.f32 %v1586, %v1606
    %v1628 = vadd.f32 %v1626, %v1627
    %v1629 = vtanh.pop %v1628
    %v1630 = vmul.f32 %v1625, %v1629
    %1631 = vst [vmem:[#allocation2 + $0x28] sm:$0xff] %v1630
    %v1632 = vpack.c.bf16 %v1630, %v1630
    %1633 = vmatpush.bf16.msra.mxu0 %v871
    %1634 = vmatpush.bf16.msra.mxu0 %v867
    %1635 = vmatpush.bf16.msra.mxu0 %v863
    %1636 = vmatpush.bf16.msra.mxu0 %v859
    %1637 = vmatpush.bf16.msra.mxu0 %v855
    %1638 = vmatpush.bf16.msra.mxu0 %v851
    %1639 = vmatpush.bf16.msra.mxu0 %v847
    %1640 = vmatpush.bf16.msra.mxu0 %v843
    %1641 = vmatmul.bf16.gmra.mxu0 %v1632
    %v1642 = vpop.f32.mrf.mxu0
    %v1643 = vadd.f32 0.0, %v1642
    %v1644 = vpop.f32.mrf.mxu0
    %1645 = vdwg.mxu0
    %1646 = vmatpush.bf16.msra.mxu0 %v872
    %1647 = vmatpush.bf16.msra.mxu0 %v868
    %1648 = vmatpush.bf16.msra.mxu0 %v864
    %1649 = vmatpush.bf16.msra.mxu0 %v860
    %1650 = vmatpush.bf16.msra.mxu0 %v856
    %1651 = vmatpush.bf16.msra.mxu0 %v852
    %1652 = vmatpush.bf16.msra.mxu0 %v848
    %1653 = vmatpush.bf16.msra.mxu0 %v844
    %1654 = vmatmul.bf16.gmra.mxu0 %v1632
    %v1655 = vpop.f32.mrf.mxu0
    %v1656 = vadd.f32 0.0, %v1655
    %v1657 = vpop.f32.mrf.mxu0
    %1658 = vdwg.mxu0
    %1659 = vmatpush.bf16.msra.mxu0 %v873
    %1660 = vmatpush.bf16.msra.mxu0 %v869
    %1661 = vmatpush.bf16.msra.mxu0 %v865
    %1662 = vmatpush.bf16.msra.mxu0 %v861
    %1663 = vmatpush.bf16.msra.mxu0 %v857
    %1664 = vmatpush.bf16.msra.mxu0 %v853
    %1665 = vmatpush.bf16.msra.mxu0 %v849
    %1666 = vmatpush.bf16.msra.mxu0 %v845
    %1667 = vmatmul.bf16.gmra.mxu0 %v1632
    %v1668 = vpop.f32.mrf.mxu0
    %v1669 = vadd.f32 0.0, %v1668
    %v1670 = vpop.f32.mrf.mxu0
    %1671 = vdwg.mxu0
    %1672 = vmatpush.bf16.msra.mxu0 %v874
    %1673 = vmatpush.bf16.msra.mxu0 %v870
    %1674 = vmatpush.bf16.msra.mxu0 %v866
    %1675 = vmatpush.bf16.msra.mxu0 %v862
    %1676 = vmatpush.bf16.msra.mxu0 %v858
    %1677 = vmatpush.bf16.msra.mxu0 %v854
    %1678 = vmatpush.bf16.msra.mxu0 %v850
    %1679 = vmatpush.bf16.msra.mxu0 %v846
    %1680 = vmatmul.bf16.gmra.mxu0 %v1632
    %v1681 = vpop.f32.mrf.mxu0
    %v1682 = vadd.f32 0.0, %v1681
    %v1683 = vpop.f32.mrf.mxu0
    %1684 = vdwg.mxu0
    %v1685 = vadd.f32 %v566, %v1643
    %v1686 = vadd.f32 %v624, %v1656
    %v1687 = vadd.f32 %v682, %v1669
    %v1688 = vadd.f32 %v740, %v1682
    %v1689 = vxor.u32 %v1685, 2147483648
    %v1690 = vmul.f32 %v1689, 1.442695
    %v1691 = vpow.pop %v1690
    %v1692 = vadd.f32 %v1691, 1.0
    %v1693 = vrcp.pop %v1692
    %v1694 = vmul.f32 %v1692, %v1693
    %v1695 = vsub.f32 1.0, %v1694
    %v1696 = vmul.f32 %v1693, %v1695
    %v1697 = vadd.f32 %v1693, %v1696
    %vm1698 = vweird.f32 %v1692
    %vm1699 = vweird.f32 %v1693
    %vm1700 = vmor %vm1698, %vm1699
    %v1701 = vsel %vm1700, %v1693, %v1697
    %v1702 = vand.u32 2147483647, %v1692
    %vm1703 = vcmp.eq.f32.partialorder %v1702, 8.507059e+37
    %v1704 = vand.u32 %v1692, 2147483648
    %v1705 = vor.u32 1.1754944e-38, %v1704
    %v1706 = vsel %vm1703, %v1705, %v1701
    %v1707 = vmul.f32 1.0, %v1706
    %v1708 = vxor.u32 %v1686, 2147483648
    %v1709 = vmul.f32 %v1708, 1.442695
    %v1710 = vpow.pop %v1709
    %v1711 = vadd.f32 %v1710, 1.0
    %v1712 = vrcp.pop %v1711
    %v1713 = vmul.f32 %v1711, %v1712
    %v1714 = vsub.f32 1.0, %v1713
    %v1715 = vmul.f32 %v1712, %v1714
    %v1716 = vadd.f32 %v1712, %v1715
    %vm1717 = vweird.f32 %v1711
    %vm1718 = vweird.f32 %v1712
    %vm1719 = vmor %vm1717, %vm1718
    %v1720 = vsel %vm1719, %v1712, %v1716
    %v1721 = vand.u32 2147483647, %v1711
    %vm1722 = vcmp.eq.f32.partialorder %v1721, 8.507059e+37
    %v1723 = vand.u32 %v1711, 2147483648
    %v1724 = vor.u32 1.1754944e-38, %v1723
    %v1725 = vsel %vm1722, %v1724, %v1720
    %v1726 = vmul.f32 1.0, %v1725
    %v1727 = vtanh.pop %v1687
    %v1728 = vxor.u32 %v1688, 2147483648
    %v1729 = vmul.f32 %v1728, 1.442695
    %v1730 = vpow.pop %v1729
    %v1731 = vadd.f32 %v1730, 1.0
    %v1732 = vrcp.pop %v1731
    %v1733 = vmul.f32 %v1731, %v1732
    %v1734 = vsub.f32 1.0, %v1733
    %v1735 = vmul.f32 %v1732, %v1734
    %v1736 = vadd.f32 %v1732, %v1735
    %vm1737 = vweird.f32 %v1731
    %vm1738 = vweird.f32 %v1732
    %vm1739 = vmor %vm1737, %vm1738
    %v1740 = vsel %vm1739, %v1732, %v1736
    %v1741 = vand.u32 2147483647, %v1731
    %vm1742 = vcmp.eq.f32.partialorder %v1741, 8.507059e+37
    %v1743 = vand.u32 %v1731, 2147483648
    %v1744 = vor.u32 1.1754944e-38, %v1743
    %v1745 = vsel %vm1742, %v1744, %v1740
    %v1746 = vmul.f32 1.0, %v1745
    %v1747 = vmul.f32 %v1726, %v1628
    %v1748 = vmul.f32 %v1707, %v1727
    %v1749 = vadd.f32 %v1747, %v1748
    %v1750 = vtanh.pop %v1749
    %v1751 = vmul.f32 %v1746, %v1750
    %1752 = vst [vmem:[#allocation2 + $0x30] sm:$0xff] %v1751
    %v1753 = vpack.c.bf16 %v1751, %v1751
    %1754 = vmatpush.bf16.msra.mxu0 %v871
    %1755 = vmatpush.bf16.msra.mxu0 %v867
    %1756 = vmatpush.bf16.msra.mxu0 %v863
    %1757 = vmatpush.bf16.msra.mxu0 %v859
    %1758 = vmatpush.bf16.msra.mxu0 %v855
    %1759 = vmatpush.bf16.msra.mxu0 %v851
    %1760 = vmatpush.bf16.msra.mxu0 %v847
    %1761 = vmatpush.bf16.msra.mxu0 %v843
    %1762 = vmatmul.bf16.gmra.mxu0 %v1753
    %v1763 = vpop.f32.mrf.mxu0
    %v1764 = vadd.f32 0.0, %v1763
    %v1765 = vpop.f32.mrf.mxu0
    %1766 = vdwg.mxu0
    %1767 = vmatpush.bf16.msra.mxu0 %v872
    %1768 = vmatpush.bf16.msra.mxu0 %v868
    %1769 = vmatpush.bf16.msra.mxu0 %v864
    %1770 = vmatpush.bf16.msra.mxu0 %v860
    %1771 = vmatpush.bf16.msra.mxu0 %v856
    %1772 = vmatpush.bf16.msra.mxu0 %v852
    %1773 = vmatpush.bf16.msra.mxu0 %v848
    %1774 = vmatpush.bf16.msra.mxu0 %v844
    %1775 = vmatmul.bf16.gmra.mxu0 %v1753
    %v1776 = vpop.f32.mrf.mxu0
    %v1777 = vadd.f32 0.0, %v1776
    %v1778 = vpop.f32.mrf.mxu0
    %1779 = vdwg.mxu0
    %1780 = vmatpush.bf16.msra.mxu0 %v873
    %1781 = vmatpush.bf16.msra.mxu0 %v869
    %1782 = vmatpush.bf16.msra.mxu0 %v865
    %1783 = vmatpush.bf16.msra.mxu0 %v861
    %1784 = vmatpush.bf16.msra.mxu0 %v857
    %1785 = vmatpush.bf16.msra.mxu0 %v853
    %1786 = vmatpush.bf16.msra.mxu0 %v849
    %1787 = vmatpush.bf16.msra.mxu0 %v845
    %1788 = vmatmul.bf16.gmra.mxu0 %v1753
    %v1789 = vpop.f32.mrf.mxu0
    %v1790 = vadd.f32 0.0, %v1789
    %v1791 = vpop.f32.mrf.mxu0
    %1792 = vdwg.mxu0
    %1793 = vmatpush.bf16.msra.mxu0 %v874
    %1794 = vmatpush.bf16.msra.mxu0 %v870
    %1795 = vmatpush.bf16.msra.mxu0 %v866
    %1796 = vmatpush.bf16.msra.mxu0 %v862
    %1797 = vmatpush.bf16.msra.mxu0 %v858
    %1798 = vmatpush.bf16.msra.mxu0 %v854
    %1799 = vmatpush.bf16.msra.mxu0 %v850
    %1800 = vmatpush.bf16.msra.mxu0 %v846
    %1801 = vmatmul.bf16.gmra.mxu0 %v1753
    %v1802 = vpop.f32.mrf.mxu0
    %v1803 = vadd.f32 0.0, %v1802
    %v1804 = vpop.f32.mrf.mxu0
    %1805 = vdwg.mxu0
    %v1806 = vadd.f32 %v568, %v1764
    %v1807 = vadd.f32 %v626, %v1777
    %v1808 = vadd.f32 %v684, %v1790
    %v1809 = vadd.f32 %v742, %v1803
    %v1810 = vxor.u32 %v1806, 2147483648
    %v1811 = vmul.f32 %v1810, 1.442695
    %v1812 = vpow.pop %v1811
    %v1813 = vadd.f32 %v1812, 1.0
    %v1814 = vrcp.pop %v1813
    %v1815 = vmul.f32 %v1813, %v1814
    %v1816 = vsub.f32 1.0, %v1815
    %v1817 = vmul.f32 %v1814, %v1816
    %v1818 = vadd.f32 %v1814, %v1817
    %vm1819 = vweird.f32 %v1813
    %vm1820 = vweird.f32 %v1814
    %vm1821 = vmor %vm1819, %vm1820
    %v1822 = vsel %vm1821, %v1814, %v1818
    %v1823 = vand.u32 2147483647, %v1813
    %vm1824 = vcmp.eq.f32.partialorder %v1823, 8.507059e+37
    %v1825 = vand.u32 %v1813, 2147483648
    %v1826 = vor.u32 1.1754944e-38, %v1825
    %v1827 = vsel %vm1824, %v1826, %v1822
    %v1828 = vmul.f32 1.0, %v1827
    %v1829 = vxor.u32 %v1807, 2147483648
    %v1830 = vmul.f32 %v1829, 1.442695
    %v1831 = vpow.pop %v1830
    %v1832 = vadd.f32 %v1831, 1.0
    %v1833 = vrcp.pop %v1832
    %v1834 = vmul.f32 %v1832, %v1833
    %v1835 = vsub.f32 1.0, %v1834
    %v1836 = vmul.f32 %v1833, %v1835
    %v1837 = vadd.f32 %v1833, %v1836
    %vm1838 = vweird.f32 %v1832
    %vm1839 = vweird.f32 %v1833
    %vm1840 = vmor %vm1838, %vm1839
    %v1841 = vsel %vm1840, %v1833, %v1837
    %v1842 = vand.u32 2147483647, %v1832
    %vm1843 = vcmp.eq.f32.partialorder %v1842, 8.507059e+37
    %v1844 = vand.u32 %v1832, 2147483648
    %v1845 = vor.u32 1.1754944e-38, %v1844
    %v1846 = vsel %vm1843, %v1845, %v1841
    %v1847 = vmul.f32 1.0, %v1846
    %v1848 = vtanh.pop %v1808
    %v1849 = vxor.u32 %v1809, 2147483648
    %v1850 = vmul.f32 %v1849, 1.442695
    %v1851 = vpow.pop %v1850
    %v1852 = vadd.f32 %v1851, 1.0
    %v1853 = vrcp.pop %v1852
    %v1854 = vmul.f32 %v1852, %v1853
    %v1855 = vsub.f32 1.0, %v1854
    %v1856 = vmul.f32 %v1853, %v1855
    %v1857 = vadd.f32 %v1853, %v1856
    %vm1858 = vweird.f32 %v1852
    %vm1859 = vweird.f32 %v1853
    %vm1860 = vmor %vm1858, %vm1859
    %v1861 = vsel %vm1860, %v1853, %v1857
    %v1862 = vand.u32 2147483647, %v1852
    %vm1863 = vcmp.eq.f32.partialorder %v1862, 8.507059e+37
    %v1864 = vand.u32 %v1852, 2147483648
    %v1865 = vor.u32 1.1754944e-38, %v1864
    %v1866 = vsel %vm1863, %v1865, %v1861
    %v1867 = vmul.f32 1.0, %v1866
    %v1868 = vmul.f32 %v1847, %v1749
    %v1869 = vmul.f32 %v1828, %v1848
    %v1870 = vadd.f32 %v1868, %v1869
    %v1871 = vtanh.pop %v1870
    %v1872 = vmul.f32 %v1867, %v1871
    %1873 = vst [vmem:[#allocation2 + $0x38] sm:$0xff] %v1872
    %1874 = vst [vmem:[%s15] sm:$0xff] %v1872
    %1875 = vst [vmem:[%s16] sm:$0xff] %v1870
    %v1876 = vld [vmem:[#allocation2] sm:$0xff]
    %v1877 = vld [vmem:[#allocation2 + $0x8] sm:$0xff]
    %v1878 = vld [vmem:[#allocation2 + $0x10] sm:$0xff]
    %v1879 = vld [vmem:[#allocation2 + $0x18] sm:$0xff]
    %v1880 = vld [vmem:[#allocation2 + $0x20] sm:$0xff]
    %v1881 = vld [vmem:[#allocation2 + $0x28] sm:$0xff]
    %v1882 = vld [vmem:[#allocation2 + $0x30] sm:$0xff]
    %v1883 = vld [vmem:[#allocation2 + $0x38] sm:$0xff]
    %v1884 = vld [vmem:[#allocation7] sm:$0xff]
    %v1885 = vld [vmem:[#allocation7 + $0x8] sm:$0xff]
    %v1886 = vld [vmem:[#allocation7 + $0x10] sm:$0xff]
    %v1887 = vld [vmem:[#allocation7 + $0x18] sm:$0xff]
    %v1888 = vld [vmem:[#allocation7 + $0x20] sm:$0xff]
    %v1889 = vld [vmem:[#allocation7 + $0x28] sm:$0xff]
    %v1890 = vld [vmem:[#allocation7 + $0x30] sm:$0xff]
    %v1891 = vld [vmem:[#allocation7 + $0x38] sm:$0xff]
    %v1892 = vld [vmem:[#allocation7 + $0x40] sm:$0xff]
    %v1893 = vld [vmem:[#allocation7 + $0x48] sm:$0xff]
    %v1894 = vld [vmem:[#allocation7 + $0x50] sm:$0xff]
    %v1895 = vld [vmem:[#allocation7 + $0x58] sm:$0xff]
    %v1896 = vld [vmem:[#allocation7 + $0x60] sm:$0xff]
    %v1897 = vld [vmem:[#allocation7 + $0x68] sm:$0xff]
    %v1898 = vld [vmem:[#allocation7 + $0x70] sm:$0xff]
    %v1899 = vld [vmem:[#allocation7 + $0x78] sm:$0xff]
    %v1900 = vld [vmem:[#allocation7 + $0x80] sm:$0xff]
    %v1901 = vld [vmem:[#allocation7 + $0x88] sm:$0xff]
    %v1902 = vld [vmem:[#allocation7 + $0x90] sm:$0xff]
    %v1903 = vld [vmem:[#allocation7 + $0x98] sm:$0xff]
    %v1904 = vld [vmem:[#allocation7 + $0xa0] sm:$0xff]
    %v1905 = vld [vmem:[#allocation7 + $0xa8] sm:$0xff]
    %v1906 = vld [vmem:[#allocation7 + $0xb0] sm:$0xff]
    %v1907 = vld [vmem:[#allocation7 + $0xb8] sm:$0xff]
    %v1908 = vld [vmem:[#allocation7 + $0xc0] sm:$0xff]
    %v1909 = vld [vmem:[#allocation7 + $0xc8] sm:$0xff]
    %v1910 = vld [vmem:[#allocation7 + $0xd0] sm:$0xff]
    %v1911 = vld [vmem:[#allocation7 + $0xd8] sm:$0xff]
    %v1912 = vld [vmem:[#allocation7 + $0xe0] sm:$0xff]
    %v1913 = vld [vmem:[#allocation7 + $0xe8] sm:$0xff]
    %v1914 = vld [vmem:[#allocation7 + $0xf0] sm:$0xff]
    %v1915 = vld [vmem:[#allocation7 + $0xf8] sm:$0xff]
    %v1916 = vld [vmem:[#allocation8] sm:$0xff]
    %v1917 = vld [vmem:[#allocation8 + $0x8] sm:$0xff]
    %v1918 = vld [vmem:[#allocation8 + $0x10] sm:$0xff]
    %v1919 = vld [vmem:[#allocation8 + $0x18] sm:$0xff]
    %v1920 = vld [vmem:[#allocation8 + $0x20] sm:$0xff]
    %v1921 = vld [vmem:[#allocation8 + $0x28] sm:$0xff]
    %v1922 = vld [vmem:[#allocation8 + $0x30] sm:$0xff]
    %v1923 = vld [vmem:[#allocation8 + $0x38] sm:$0xff]
    %v1924 = vld [vmem:[#allocation8 + $0x40] sm:$0xff]
    %v1925 = vld [vmem:[#allocation8 + $0x48] sm:$0xff]
    %v1926 = vld [vmem:[#allocation8 + $0x50] sm:$0xff]
    %v1927 = vld [vmem:[#allocation8 + $0x58] sm:$0xff]
    %v1928 = vld [vmem:[#allocation8 + $0x60] sm:$0xff]
    %v1929 = vld [vmem:[#allocation8 + $0x68] sm:$0xff]
    %v1930 = vld [vmem:[#allocation8 + $0x70] sm:$0xff]
    %v1931 = vld [vmem:[#allocation8 + $0x78] sm:$0xff]
    %v1932 = vld [vmem:[#allocation8 + $0x80] sm:$0xff]
    %v1933 = vld [vmem:[#allocation8 + $0x88] sm:$0xff]
    %v1934 = vld [vmem:[#allocation8 + $0x90] sm:$0xff]
    %v1935 = vld [vmem:[#allocation8 + $0x98] sm:$0xff]
    %v1936 = vld [vmem:[#allocation8 + $0xa0] sm:$0xff]
    %v1937 = vld [vmem:[#allocation8 + $0xa8] sm:$0xff]
    %v1938 = vld [vmem:[#allocation8 + $0xb0] sm:$0xff]
    %v1939 = vld [vmem:[#allocation8 + $0xb8] sm:$0xff]
    %v1940 = vld [vmem:[#allocation8 + $0xc0] sm:$0xff]
    %v1941 = vld [vmem:[#allocation8 + $0xc8] sm:$0xff]
    %v1942 = vld [vmem:[#allocation8 + $0xd0] sm:$0xff]
    %v1943 = vld [vmem:[#allocation8 + $0xd8] sm:$0xff]
    %v1944 = vld [vmem:[#allocation8 + $0xe0] sm:$0xff]
    %v1945 = vld [vmem:[#allocation8 + $0xe8] sm:$0xff]
    %v1946 = vld [vmem:[#allocation8 + $0xf0] sm:$0xff]
    %v1947 = vld [vmem:[#allocation8 + $0xf8] sm:$0xff]
    %v1948 = vld [vmem:[%s8] sm:$0xf]
    %v1949 = vpack.c.bf16 %v1877, %v1876
    %v1950 = vpack.c.bf16 %v1879, %v1878
    %v1951 = vpack.c.bf16 %v1881, %v1880
    %v1952 = vpack.c.bf16 %v1883, %v1882
    %v1954 = vperm.slane %v1948, 0
    %v1955 = vperm.slane %v1948, 1
    %v1956 = vperm.slane %v1948, 2
    %v1957 = vperm.slane %v1948, 3
    %v1994 = vunpack.c.l.b16 %v1884
    %v1995 = vunpack.c.h.b16 %v1884
    %v1996 = vunpack.c.l.b16 %v1885
    %v1997 = vunpack.c.h.b16 %v1885
    %v1998 = vunpack.c.l.b16 %v1886
    %v1999 = vunpack.c.h.b16 %v1886
    %v2000 = vunpack.c.l.b16 %v1887
    %v2001 = vunpack.c.h.b16 %v1887
    %v2002 = vunpack.c.l.b16 %v1888
    %v2003 = vunpack.c.h.b16 %v1888
    %v2004 = vunpack.c.l.b16 %v1889
    %v2005 = vunpack.c.h.b16 %v1889
    %v2006 = vunpack.c.l.b16 %v1890
    %v2007 = vunpack.c.h.b16 %v1890
    %v2008 = vunpack.c.l.b16 %v1891
    %v2009 = vunpack.c.h.b16 %v1891
    %v2010 = vunpack.c.l.b16 %v1892
    %v2011 = vunpack.c.h.b16 %v1892
    %v2012 = vunpack.c.l.b16 %v1893
    %v2013 = vunpack.c.h.b16 %v1893
    %v2014 = vunpack.c.l.b16 %v1894
    %v2015 = vunpack.c.h.b16 %v1894
    %v2016 = vunpack.c.l.b16 %v1895
    %v2017 = vunpack.c.h.b16 %v1895
    %v2018 = vunpack.c.l.b16 %v1896
    %v2019 = vunpack.c.h.b16 %v1896
    %v2020 = vunpack.c.l.b16 %v1897
    %v2021 = vunpack.c.h.b16 %v1897
    %v2022 = vunpack.c.l.b16 %v1898
    %v2023 = vunpack.c.h.b16 %v1898
    %v2024 = vunpack.c.l.b16 %v1899
    %v2025 = vunpack.c.h.b16 %v1899
    %v2026 = vunpack.c.l.b16 %v1900
    %v2027 = vunpack.c.h.b16 %v1900
    %v2028 = vunpack.c.l.b16 %v1901
    %v2029 = vunpack.c.h.b16 %v1901
    %v2030 = vunpack.c.l.b16 %v1902
    %v2031 = vunpack.c.h.b16 %v1902
    %v2032 = vunpack.c.l.b16 %v1903
    %v2033 = vunpack.c.h.b16 %v1903
    %v2034 = vunpack.c.l.b16 %v1904
    %v2035 = vunpack.c.h.b16 %v1904
    %v2036 = vunpack.c.l.b16 %v1905
    %v2037 = vunpack.c.h.b16 %v1905
    %v2038 = vunpack.c.l.b16 %v1906
    %v2039 = vunpack.c.h.b16 %v1906
    %v2040 = vunpack.c.l.b16 %v1907
    %v2041 = vunpack.c.h.b16 %v1907
    %v2042 = vunpack.c.l.b16 %v1908
    %v2043 = vunpack.c.h.b16 %v1908
    %v2044 = vunpack.c.l.b16 %v1909
    %v2045 = vunpack.c.h.b16 %v1909
    %v2046 = vunpack.c.l.b16 %v1910
    %v2047 = vunpack.c.h.b16 %v1910
    %v2048 = vunpack.c.l.b16 %v1911
    %v2049 = vunpack.c.h.b16 %v1911
    %v2050 = vunpack.c.l.b16 %v1912
    %v2051 = vunpack.c.h.b16 %v1912
    %v2052 = vunpack.c.l.b16 %v1913
    %v2053 = vunpack.c.h.b16 %v1913
    %v2054 = vunpack.c.l.b16 %v1914
    %v2055 = vunpack.c.h.b16 %v1914
    %v2056 = vunpack.c.l.b16 %v1915
    %v2057 = vunpack.c.h.b16 %v1915
    %v2058 = vpack.c.b16 %v1998, %v1994
    %v2059 = vpack.c.b16 %v1999, %v1995
    %v2060 = vpack.c.b16 %v2000, %v1996
    %v2061 = vpack.c.b16 %v2001, %v1997
    %v2062 = vpack.c.b16 %v2006, %v2002
    %v2063 = vpack.c.b16 %v2007, %v2003
    %v2064 = vpack.c.b16 %v2008, %v2004
    %v2065 = vpack.c.b16 %v2009, %v2005
    %v2066 = vpack.c.b16 %v2014, %v2010
    %v2067 = vpack.c.b16 %v2015, %v2011
    %v2068 = vpack.c.b16 %v2016, %v2012
    %v2069 = vpack.c.b16 %v2017, %v2013
    %v2070 = vpack.c.b16 %v2022, %v2018
    %v2071 = vpack.c.b16 %v2023, %v2019
    %v2072 = vpack.c.b16 %v2024, %v2020
    %v2073 = vpack.c.b16 %v2025, %v2021
    %v2074 = vpack.c.b16 %v2030, %v2026
    %v2075 = vpack.c.b16 %v2031, %v2027
    %v2076 = vpack.c.b16 %v2032, %v2028
    %v2077 = vpack.c.b16 %v2033, %v2029
    %v2078 = vpack.c.b16 %v2038, %v2034
    %v2079 = vpack.c.b16 %v2039, %v2035
    %v2080 = vpack.c.b16 %v2040, %v2036
    %v2081 = vpack.c.b16 %v2041, %v2037
    %v2082 = vpack.c.b16 %v2046, %v2042
    %v2083 = vpack.c.b16 %v2047, %v2043
    %v2084 = vpack.c.b16 %v2048, %v2044
    %v2085 = vpack.c.b16 %v2049, %v2045
    %v2086 = vpack.c.b16 %v2054, %v2050
    %v2087 = vpack.c.b16 %v2055, %v2051
    %v2088 = vpack.c.b16 %v2056, %v2052
    %v2089 = vpack.c.b16 %v2057, %v2053
    %2122 = vmatpush.bf16.msra.mxu0 %v2086
    %2123 = vmatpush.bf16.msra.mxu0 %v2082
    %2124 = vmatpush.bf16.msra.mxu0 %v2078
    %2125 = vmatpush.bf16.msra.mxu0 %v2074
    %2126 = vmatpush.bf16.msra.mxu0 %v2070
    %2127 = vmatpush.bf16.msra.mxu0 %v2066
    %2128 = vmatpush.bf16.msra.mxu0 %v2062
    %2129 = vmatpush.bf16.msra.mxu0 %v2058
    %2130 = vmatmul.bf16.gmra.mxu0 %v1949
    %v2131 = vpop.f32.mrf.mxu0
    %v2132 = vadd.f32 %v1954, %v2131
    %v2133 = vpop.f32.mrf.mxu0
    %v2134 = vadd.f32 %v1954, %v2133
    %2135 = vmatmul.bf16.gmra.mxu0 %v1950
    %v2136 = vpop.f32.mrf.mxu0
    %v2137 = vadd.f32 %v1954, %v2136
    %v2138 = vpop.f32.mrf.mxu0
    %v2139 = vadd.f32 %v1954, %v2138
    %2140 = vmatmul.bf16.gmra.mxu0 %v1951
    %v2141 = vpop.f32.mrf.mxu0
    %v2142 = vadd.f32 %v1954, %v2141
    %v2143 = vpop.f32.mrf.mxu0
    %v2144 = vadd.f32 %v1954, %v2143
    %2145 = vmatmul.bf16.gmra.mxu0 %v1952
    %v2146 = vpop.f32.mrf.mxu0
    %v2147 = vadd.f32 %v1954, %v2146
    %v2148 = vpop.f32.mrf.mxu0
    %v2149 = vadd.f32 %v1954, %v2148
    %2150 = vdwg.mxu0
    %2151 = vmatpush.bf16.msra.mxu0 %v2087
    %2152 = vmatpush.bf16.msra.mxu0 %v2083
    %2153 = vmatpush.bf16.msra.mxu0 %v2079
    %2154 = vmatpush.bf16.msra.mxu0 %v2075
    %2155 = vmatpush.bf16.msra.mxu0 %v2071
    %2156 = vmatpush.bf16.msra.mxu0 %v2067
    %2157 = vmatpush.bf16.msra.mxu0 %v2063
    %2158 = vmatpush.bf16.msra.mxu0 %v2059
    %2159 = vmatmul.bf16.gmra.mxu0 %v1949
    %v2160 = vpop.f32.mrf.mxu0
    %v2161 = vadd.f32 %v1955, %v2160
    %v2162 = vpop.f32.mrf.mxu0
    %v2163 = vadd.f32 %v1955, %v2162
    %2164 = vmatmul.bf16.gmra.mxu0 %v1950
    %v2165 = vpop.f32.mrf.mxu0
    %v2166 = vadd.f32 %v1955, %v2165
    %v2167 = vpop.f32.mrf.mxu0
    %v2168 = vadd.f32 %v1955, %v2167
    %2169 = vmatmul.bf16.gmra.mxu0 %v1951
    %v2170 = vpop.f32.mrf.mxu0
    %v2171 = vadd.f32 %v1955, %v2170
    %v2172 = vpop.f32.mrf.mxu0
    %v2173 = vadd.f32 %v1955, %v2172
    %2174 = vmatmul.bf16.gmra.mxu0 %v1952
    %v2175 = vpop.f32.mrf.mxu0
    %v2176 = vadd.f32 %v1955, %v2175
    %v2177 = vpop.f32.mrf.mxu0
    %v2178 = vadd.f32 %v1955, %v2177
    %2179 = vdwg.mxu0
    %2180 = vmatpush.bf16.msra.mxu0 %v2088
    %2181 = vmatpush.bf16.msra.mxu0 %v2084
    %2182 = vmatpush.bf16.msra.mxu0 %v2080
    %2183 = vmatpush.bf16.msra.mxu0 %v2076
    %2184 = vmatpush.bf16.msra.mxu0 %v2072
    %2185 = vmatpush.bf16.msra.mxu0 %v2068
    %2186 = vmatpush.bf16.msra.mxu0 %v2064
    %2187 = vmatpush.bf16.msra.mxu0 %v2060
    %2188 = vmatmul.bf16.gmra.mxu0 %v1949
    %v2189 = vpop.f32.mrf.mxu0
    %v2190 = vadd.f32 %v1956, %v2189
    %v2191 = vpop.f32.mrf.mxu0
    %v2192 = vadd.f32 %v1956, %v2191
    %2193 = vmatmul.bf16.gmra.mxu0 %v1950
    %v2194 = vpop.f32.mrf.mxu0
    %v2195 = vadd.f32 %v1956, %v2194
    %v2196 = vpop.f32.mrf.mxu0
    %v2197 = vadd.f32 %v1956, %v2196
    %2198 = vmatmul.bf16.gmra.mxu0 %v1951
    %v2199 = vpop.f32.mrf.mxu0
    %v2200 = vadd.f32 %v1956, %v2199
    %v2201 = vpop.f32.mrf.mxu0
    %v2202 = vadd.f32 %v1956, %v2201
    %2203 = vmatmul.bf16.gmra.mxu0 %v1952
    %v2204 = vpop.f32.mrf.mxu0
    %v2205 = vadd.f32 %v1956, %v2204
    %v2206 = vpop.f32.mrf.mxu0
    %v2207 = vadd.f32 %v1956, %v2206
    %2208 = vdwg.mxu0
    %2209 = vmatpush.bf16.msra.mxu0 %v2089
    %2210 = vmatpush.bf16.msra.mxu0 %v2085
    %2211 = vmatpush.bf16.msra.mxu0 %v2081
    %2212 = vmatpush.bf16.msra.mxu0 %v2077
    %2213 = vmatpush.bf16.msra.mxu0 %v2073
    %2214 = vmatpush.bf16.msra.mxu0 %v2069
    %2215 = vmatpush.bf16.msra.mxu0 %v2065
    %2216 = vmatpush.bf16.msra.mxu0 %v2061
    %2217 = vmatmul.bf16.gmra.mxu0 %v1949
    %v2218 = vpop.f32.mrf.mxu0
    %v2219 = vadd.f32 %v1957, %v2218
    %v2220 = vpop.f32.mrf.mxu0
    %v2221 = vadd.f32 %v1957, %v2220
    %2222 = vmatmul.bf16.gmra.mxu0 %v1950
    %v2223 = vpop.f32.mrf.mxu0
    %v2224 = vadd.f32 %v1957, %v2223
    %v2225 = vpop.f32.mrf.mxu0
    %v2226 = vadd.f32 %v1957, %v2225
    %2227 = vmatmul.bf16.gmra.mxu0 %v1951
    %v2228 = vpop.f32.mrf.mxu0
    %v2229 = vadd.f32 %v1957, %v2228
    %v2230 = vpop.f32.mrf.mxu0
    %v2231 = vadd.f32 %v1957, %v2230
    %2232 = vmatmul.bf16.gmra.mxu0 %v1952
    %v2233 = vpop.f32.mrf.mxu0
    %v2234 = vadd.f32 %v1957, %v2233
    %v2235 = vpop.f32.mrf.mxu0
    %v2236 = vadd.f32 %v1957, %v2235
    %2237 = vdwg.mxu0
    %s2238 = scalar_lea.vmem %s1, 8
    %v2239 = vld [vmem:[%s2238] sm:$0xff]
    %s2240 = scalar_lea.vmem %s2, 8
    %v2241 = vld [vmem:[%s2240] sm:$0xff]
    %v2242 = vpack.c.bf16 %v2239, %v2239
    %v2275 = vunpack.c.l.b16 %v1916
    %v2276 = vunpack.c.h.b16 %v1916
    %v2277 = vunpack.c.l.b16 %v1917
    %v2278 = vunpack.c.h.b16 %v1917
    %v2279 = vunpack.c.l.b16 %v1918
    %v2280 = vunpack.c.h.b16 %v1918
    %v2281 = vunpack.c.l.b16 %v1919
    %v2282 = vunpack.c.h.b16 %v1919
    %v2283 = vunpack.c.l.b16 %v1920
    %v2284 = vunpack.c.h.b16 %v1920
    %v2285 = vunpack.c.l.b16 %v1921
    %v2286 = vunpack.c.h.b16 %v1921
    %v2287 = vunpack.c.l.b16 %v1922
    %v2288 = vunpack.c.h.b16 %v1922
    %v2289 = vunpack.c.l.b16 %v1923
    %v2290 = vunpack.c.h.b16 %v1923
    %v2291 = vunpack.c.l.b16 %v1924
    %v2292 = vunpack.c.h.b16 %v1924
    %v2293 = vunpack.c.l.b16 %v1925
    %v2294 = vunpack.c.h.b16 %v1925
    %v2295 = vunpack.c.l.b16 %v1926
    %v2296 = vunpack.c.h.b16 %v1926
    %v2297 = vunpack.c.l.b16 %v1927
    %v2298 = vunpack.c.h.b16 %v1927
    %v2299 = vunpack.c.l.b16 %v1928
    %v2300 = vunpack.c.h.b16 %v1928
    %v2301 = vunpack.c.l.b16 %v1929
    %v2302 = vunpack.c.h.b16 %v1929
    %v2303 = vunpack.c.l.b16 %v1930
    %v2304 = vunpack.c.h.b16 %v1930
    %v2305 = vunpack.c.l.b16 %v1931
    %v2306 = vunpack.c.h.b16 %v1931
    %v2307 = vunpack.c.l.b16 %v1932
    %v2308 = vunpack.c.h.b16 %v1932
    %v2309 = vunpack.c.l.b16 %v1933
    %v2310 = vunpack.c.h.b16 %v1933
    %v2311 = vunpack.c.l.b16 %v1934
    %v2312 = vunpack.c.h.b16 %v1934
    %v2313 = vunpack.c.l.b16 %v1935
    %v2314 = vunpack.c.h.b16 %v1935
    %v2315 = vunpack.c.l.b16 %v1936
    %v2316 = vunpack.c.h.b16 %v1936
    %v2317 = vunpack.c.l.b16 %v1937
    %v2318 = vunpack.c.h.b16 %v1937
    %v2319 = vunpack.c.l.b16 %v1938
    %v2320 = vunpack.c.h.b16 %v1938
    %v2321 = vunpack.c.l.b16 %v1939
    %v2322 = vunpack.c.h.b16 %v1939
    %v2323 = vunpack.c.l.b16 %v1940
    %v2324 = vunpack.c.h.b16 %v1940
    %v2325 = vunpack.c.l.b16 %v1941
    %v2326 = vunpack.c.h.b16 %v1941
    %v2327 = vunpack.c.l.b16 %v1942
    %v2328 = vunpack.c.h.b16 %v1942
    %v2329 = vunpack.c.l.b16 %v1943
    %v2330 = vunpack.c.h.b16 %v1943
    %v2331 = vunpack.c.l.b16 %v1944
    %v2332 = vunpack.c.h.b16 %v1944
    %v2333 = vunpack.c.l.b16 %v1945
    %v2334 = vunpack.c.h.b16 %v1945
    %v2335 = vunpack.c.l.b16 %v1946
    %v2336 = vunpack.c.h.b16 %v1946
    %v2337 = vunpack.c.l.b16 %v1947
    %v2338 = vunpack.c.h.b16 %v1947
    %v2339 = vpack.c.b16 %v2279, %v2275
    %v2340 = vpack.c.b16 %v2280, %v2276
    %v2341 = vpack.c.b16 %v2281, %v2277
    %v2342 = vpack.c.b16 %v2282, %v2278
    %v2343 = vpack.c.b16 %v2287, %v2283
    %v2344 = vpack.c.b16 %v2288, %v2284
    %v2345 = vpack.c.b16 %v2289, %v2285
    %v2346 = vpack.c.b16 %v2290, %v2286
    %v2347 = vpack.c.b16 %v2295, %v2291
    %v2348 = vpack.c.b16 %v2296, %v2292
    %v2349 = vpack.c.b16 %v2297, %v2293
    %v2350 = vpack.c.b16 %v2298, %v2294
    %v2351 = vpack.c.b16 %v2303, %v2299
    %v2352 = vpack.c.b16 %v2304, %v2300
    %v2353 = vpack.c.b16 %v2305, %v2301
    %v2354 = vpack.c.b16 %v2306, %v2302
    %v2355 = vpack.c.b16 %v2311, %v2307
    %v2356 = vpack.c.b16 %v2312, %v2308
    %v2357 = vpack.c.b16 %v2313, %v2309
    %v2358 = vpack.c.b16 %v2314, %v2310
    %v2359 = vpack.c.b16 %v2319, %v2315
    %v2360 = vpack.c.b16 %v2320, %v2316
    %v2361 = vpack.c.b16 %v2321, %v2317
    %v2362 = vpack.c.b16 %v2322, %v2318
    %v2363 = vpack.c.b16 %v2327, %v2323
    %v2364 = vpack.c.b16 %v2328, %v2324
    %v2365 = vpack.c.b16 %v2329, %v2325
    %v2366 = vpack.c.b16 %v2330, %v2326
    %v2367 = vpack.c.b16 %v2335, %v2331
    %v2368 = vpack.c.b16 %v2336, %v2332
    %v2369 = vpack.c.b16 %v2337, %v2333
    %v2370 = vpack.c.b16 %v2338, %v2334
    %2403 = vmatpush.bf16.msra.mxu0 %v2367
    %2404 = vmatpush.bf16.msra.mxu0 %v2363
    %2405 = vmatpush.bf16.msra.mxu0 %v2359
    %2406 = vmatpush.bf16.msra.mxu0 %v2355
    %2407 = vmatpush.bf16.msra.mxu0 %v2351
    %2408 = vmatpush.bf16.msra.mxu0 %v2347
    %2409 = vmatpush.bf16.msra.mxu0 %v2343
    %2410 = vmatpush.bf16.msra.mxu0 %v2339
    %2411 = vmatmul.bf16.gmra.mxu0 %v2242
    %v2412 = vpop.f32.mrf.mxu0
    %v2413 = vadd.f32 0.0, %v2412
    %v2414 = vpop.f32.mrf.mxu0
    %2415 = vdwg.mxu0
    %2416 = vmatpush.bf16.msra.mxu0 %v2368
    %2417 = vmatpush.bf16.msra.mxu0 %v2364
    %2418 = vmatpush.bf16.msra.mxu0 %v2360
    %2419 = vmatpush.bf16.msra.mxu0 %v2356
    %2420 = vmatpush.bf16.msra.mxu0 %v2352
    %2421 = vmatpush.bf16.msra.mxu0 %v2348
    %2422 = vmatpush.bf16.msra.mxu0 %v2344
    %2423 = vmatpush.bf16.msra.mxu0 %v2340
    %2424 = vmatmul.bf16.gmra.mxu0 %v2242
    %v2425 = vpop.f32.mrf.mxu0
    %v2426 = vadd.f32 0.0, %v2425
    %v2427 = vpop.f32.mrf.mxu0
    %2428 = vdwg.mxu0
    %2429 = vmatpush.bf16.msra.mxu0 %v2369
    %2430 = vmatpush.bf16.msra.mxu0 %v2365
    %2431 = vmatpush.bf16.msra.mxu0 %v2361
    %2432 = vmatpush.bf16.msra.mxu0 %v2357
    %2433 = vmatpush.bf16.msra.mxu0 %v2353
    %2434 = vmatpush.bf16.msra.mxu0 %v2349
    %2435 = vmatpush.bf16.msra.mxu0 %v2345
    %2436 = vmatpush.bf16.msra.mxu0 %v2341
    %2437 = vmatmul.bf16.gmra.mxu0 %v2242
    %v2438 = vpop.f32.mrf.mxu0
    %v2439 = vadd.f32 0.0, %v2438
    %v2440 = vpop.f32.mrf.mxu0
    %2441 = vdwg.mxu0
    %2442 = vmatpush.bf16.msra.mxu0 %v2370
    %2443 = vmatpush.bf16.msra.mxu0 %v2366
    %2444 = vmatpush.bf16.msra.mxu0 %v2362
    %2445 = vmatpush.bf16.msra.mxu0 %v2358
    %2446 = vmatpush.bf16.msra.mxu0 %v2354
    %2447 = vmatpush.bf16.msra.mxu0 %v2350
    %2448 = vmatpush.bf16.msra.mxu0 %v2346
    %2449 = vmatpush.bf16.msra.mxu0 %v2342
    %2450 = vmatmul.bf16.gmra.mxu0 %v2242
    %v2451 = vpop.f32.mrf.mxu0
    %v2452 = vadd.f32 0.0, %v2451
    %v2453 = vpop.f32.mrf.mxu0
    %2454 = vdwg.mxu0
    %v2455 = vadd.f32 %v2132, %v2413
    %v2456 = vadd.f32 %v2161, %v2426
    %v2457 = vadd.f32 %v2190, %v2439
    %v2458 = vadd.f32 %v2219, %v2452
    %v2459 = vxor.u32 %v2455, 2147483648
    %v2460 = vmul.f32 %v2459, 1.442695
    %v2461 = vpow.pop %v2460
    %v2462 = vadd.f32 %v2461, 1.0
    %v2463 = vrcp.pop %v2462
    %v2464 = vmul.f32 %v2462, %v2463
    %v2465 = vsub.f32 1.0, %v2464
    %v2466 = vmul.f32 %v2463, %v2465
    %v2467 = vadd.f32 %v2463, %v2466
    %vm2468 = vweird.f32 %v2462
    %vm2469 = vweird.f32 %v2463
    %vm2470 = vmor %vm2468, %vm2469
    %v2471 = vsel %vm2470, %v2463, %v2467
    %v2472 = vand.u32 2147483647, %v2462
    %vm2473 = vcmp.eq.f32.partialorder %v2472, 8.507059e+37
    %v2474 = vand.u32 %v2462, 2147483648
    %v2475 = vor.u32 1.1754944e-38, %v2474
    %v2476 = vsel %vm2473, %v2475, %v2471
    %v2477 = vmul.f32 1.0, %v2476
    %v2478 = vxor.u32 %v2456, 2147483648
    %v2479 = vmul.f32 %v2478, 1.442695
    %v2480 = vpow.pop %v2479
    %v2481 = vadd.f32 %v2480, 1.0
    %v2482 = vrcp.pop %v2481
    %v2483 = vmul.f32 %v2481, %v2482
    %v2484 = vsub.f32 1.0, %v2483
    %v2485 = vmul.f32 %v2482, %v2484
    %v2486 = vadd.f32 %v2482, %v2485
    %vm2487 = vweird.f32 %v2481
    %vm2488 = vweird.f32 %v2482
    %vm2489 = vmor %vm2487, %vm2488
    %v2490 = vsel %vm2489, %v2482, %v2486
    %v2491 = vand.u32 2147483647, %v2481
    %vm2492 = vcmp.eq.f32.partialorder %v2491, 8.507059e+37
    %v2493 = vand.u32 %v2481, 2147483648
    %v2494 = vor.u32 1.1754944e-38, %v2493
    %v2495 = vsel %vm2492, %v2494, %v2490
    %v2496 = vmul.f32 1.0, %v2495
    %v2497 = vtanh.pop %v2457
    %v2498 = vxor.u32 %v2458, 2147483648
    %v2499 = vmul.f32 %v2498, 1.442695
    %v2500 = vpow.pop %v2499
    %v2501 = vadd.f32 %v2500, 1.0
    %v2502 = vrcp.pop %v2501
    %v2503 = vmul.f32 %v2501, %v2502
    %v2504 = vsub.f32 1.0, %v2503
    %v2505 = vmul.f32 %v2502, %v2504
    %v2506 = vadd.f32 %v2502, %v2505
    %vm2507 = vweird.f32 %v2501
    %vm2508 = vweird.f32 %v2502
    %vm2509 = vmor %vm2507, %vm2508
    %v2510 = vsel %vm2509, %v2502, %v2506
    %v2511 = vand.u32 2147483647, %v2501
    %vm2512 = vcmp.eq.f32.partialorder %v2511, 8.507059e+37
    %v2513 = vand.u32 %v2501, 2147483648
    %v2514 = vor.u32 1.1754944e-38, %v2513
    %v2515 = vsel %vm2512, %v2514, %v2510
    %v2516 = vmul.f32 1.0, %v2515
    %v2517 = vmul.f32 %v2496, %v2241
    %v2518 = vmul.f32 %v2477, %v2497
    %v2519 = vadd.f32 %v2517, %v2518
    %v2520 = vtanh.pop %v2519
    %v2521 = vmul.f32 %v2516, %v2520
    %2522 = vst [vmem:[#allocation2] sm:$0xff] %v2521
    %v2523 = vpack.c.bf16 %v2521, %v2521
    %2524 = vmatpush.bf16.msra.mxu0 %v2367
    %2525 = vmatpush.bf16.msra.mxu0 %v2363
    %2526 = vmatpush.bf16.msra.mxu0 %v2359
    %2527 = vmatpush.bf16.msra.mxu0 %v2355
    %2528 = vmatpush.bf16.msra.mxu0 %v2351
    %2529 = vmatpush.bf16.msra.mxu0 %v2347
    %2530 = vmatpush.bf16.msra.mxu0 %v2343
    %2531 = vmatpush.bf16.msra.mxu0 %v2339
    %2532 = vmatmul.bf16.gmra.mxu0 %v2523
    %v2533 = vpop.f32.mrf.mxu0
    %v2534 = vadd.f32 0.0, %v2533
    %v2535 = vpop.f32.mrf.mxu0
    %2536 = vdwg.mxu0
    %2537 = vmatpush.bf16.msra.mxu0 %v2368
    %2538 = vmatpush.bf16.msra.mxu0 %v2364
    %2539 = vmatpush.bf16.msra.mxu0 %v2360
    %2540 = vmatpush.bf16.msra.mxu0 %v2356
    %2541 = vmatpush.bf16.msra.mxu0 %v2352
    %2542 = vmatpush.bf16.msra.mxu0 %v2348
    %2543 = vmatpush.bf16.msra.mxu0 %v2344
    %2544 = vmatpush.bf16.msra.mxu0 %v2340
    %2545 = vmatmul.bf16.gmra.mxu0 %v2523
    %v2546 = vpop.f32.mrf.mxu0
    %v2547 = vadd.f32 0.0, %v2546
    %v2548 = vpop.f32.mrf.mxu0
    %2549 = vdwg.mxu0
    %2550 = vmatpush.bf16.msra.mxu0 %v2369
    %2551 = vmatpush.bf16.msra.mxu0 %v2365
    %2552 = vmatpush.bf16.msra.mxu0 %v2361
    %2553 = vmatpush.bf16.msra.mxu0 %v2357
    %2554 = vmatpush.bf16.msra.mxu0 %v2353
    %2555 = vmatpush.bf16.msra.mxu0 %v2349
    %2556 = vmatpush.bf16.msra.mxu0 %v2345
    %2557 = vmatpush.bf16.msra.mxu0 %v2341
    %2558 = vmatmul.bf16.gmra.mxu0 %v2523
    %v2559 = vpop.f32.mrf.mxu0
    %v2560 = vadd.f32 0.0, %v2559
    %v2561 = vpop.f32.mrf.mxu0
    %2562 = vdwg.mxu0
    %2563 = vmatpush.bf16.msra.mxu0 %v2370
    %2564 = vmatpush.bf16.msra.mxu0 %v2366
    %2565 = vmatpush.bf16.msra.mxu0 %v2362
    %2566 = vmatpush.bf16.msra.mxu0 %v2358
    %2567 = vmatpush.bf16.msra.mxu0 %v2354
    %2568 = vmatpush.bf16.msra.mxu0 %v2350
    %2569 = vmatpush.bf16.msra.mxu0 %v2346
    %2570 = vmatpush.bf16.msra.mxu0 %v2342
    %2571 = vmatmul.bf16.gmra.mxu0 %v2523
    %v2572 = vpop.f32.mrf.mxu0
    %v2573 = vadd.f32 0.0, %v2572
    %v2574 = vpop.f32.mrf.mxu0
    %2575 = vdwg.mxu0
    %v2576 = vadd.f32 %v2134, %v2534
    %v2577 = vadd.f32 %v2163, %v2547
    %v2578 = vadd.f32 %v2192, %v2560
    %v2579 = vadd.f32 %v2221, %v2573
    %v2580 = vxor.u32 %v2576, 2147483648
    %v2581 = vmul.f32 %v2580, 1.442695
    %v2582 = vpow.pop %v2581
    %v2583 = vadd.f32 %v2582, 1.0
    %v2584 = vrcp.pop %v2583
    %v2585 = vmul.f32 %v2583, %v2584
    %v2586 = vsub.f32 1.0, %v2585
    %v2587 = vmul.f32 %v2584, %v2586
    %v2588 = vadd.f32 %v2584, %v2587
    %vm2589 = vweird.f32 %v2583
    %vm2590 = vweird.f32 %v2584
    %vm2591 = vmor %vm2589, %vm2590
    %v2592 = vsel %vm2591, %v2584, %v2588
    %v2593 = vand.u32 2147483647, %v2583
    %vm2594 = vcmp.eq.f32.partialorder %v2593, 8.507059e+37
    %v2595 = vand.u32 %v2583, 2147483648
    %v2596 = vor.u32 1.1754944e-38, %v2595
    %v2597 = vsel %vm2594, %v2596, %v2592
    %v2598 = vmul.f32 1.0, %v2597
    %v2599 = vxor.u32 %v2577, 2147483648
    %v2600 = vmul.f32 %v2599, 1.442695
    %v2601 = vpow.pop %v2600
    %v2602 = vadd.f32 %v2601, 1.0
    %v2603 = vrcp.pop %v2602
    %v2604 = vmul.f32 %v2602, %v2603
    %v2605 = vsub.f32 1.0, %v2604
    %v2606 = vmul.f32 %v2603, %v2605
    %v2607 = vadd.f32 %v2603, %v2606
    %vm2608 = vweird.f32 %v2602
    %vm2609 = vweird.f32 %v2603
    %vm2610 = vmor %vm2608, %vm2609
    %v2611 = vsel %vm2610, %v2603, %v2607
    %v2612 = vand.u32 2147483647, %v2602
    %vm2613 = vcmp.eq.f32.partialorder %v2612, 8.507059e+37
    %v2614 = vand.u32 %v2602, 2147483648
    %v2615 = vor.u32 1.1754944e-38, %v2614
    %v2616 = vsel %vm2613, %v2615, %v2611
    %v2617 = vmul.f32 1.0, %v2616
    %v2618 = vtanh.pop %v2578
    %v2619 = vxor.u32 %v2579, 2147483648
    %v2620 = vmul.f32 %v2619, 1.442695
    %v2621 = vpow.pop %v2620
    %v2622 = vadd.f32 %v2621, 1.0
    %v2623 = vrcp.pop %v2622
    %v2624 = vmul.f32 %v2622, %v2623
    %v2625 = vsub.f32 1.0, %v2624
    %v2626 = vmul.f32 %v2623, %v2625
    %v2627 = vadd.f32 %v2623, %v2626
    %vm2628 = vweird.f32 %v2622
    %vm2629 = vweird.f32 %v2623
    %vm2630 = vmor %vm2628, %vm2629
    %v2631 = vsel %vm2630, %v2623, %v2627
    %v2632 = vand.u32 2147483647, %v2622
    %vm2633 = vcmp.eq.f32.partialorder %v2632, 8.507059e+37
    %v2634 = vand.u32 %v2622, 2147483648
    %v2635 = vor.u32 1.1754944e-38, %v2634
    %v2636 = vsel %vm2633, %v2635, %v2631
    %v2637 = vmul.f32 1.0, %v2636
    %v2638 = vmul.f32 %v2617, %v2519
    %v2639 = vmul.f32 %v2598, %v2618
    %v2640 = vadd.f32 %v2638, %v2639
    %v2641 = vtanh.pop %v2640
    %v2642 = vmul.f32 %v2637, %v2641
    %2643 = vst [vmem:[#allocation2 + $0x8] sm:$0xff] %v2642
    %v2644 = vpack.c.bf16 %v2642, %v2642
    %2645 = vmatpush.bf16.msra.mxu0 %v2367
    %2646 = vmatpush.bf16.msra.mxu0 %v2363
    %2647 = vmatpush.bf16.msra.mxu0 %v2359
    %2648 = vmatpush.bf16.msra.mxu0 %v2355
    %2649 = vmatpush.bf16.msra.mxu0 %v2351
    %2650 = vmatpush.bf16.msra.mxu0 %v2347
    %2651 = vmatpush.bf16.msra.mxu0 %v2343
    %2652 = vmatpush.bf16.msra.mxu0 %v2339
    %2653 = vmatmul.bf16.gmra.mxu0 %v2644
    %v2654 = vpop.f32.mrf.mxu0
    %v2655 = vadd.f32 0.0, %v2654
    %v2656 = vpop.f32.mrf.mxu0
    %2657 = vdwg.mxu0
    %2658 = vmatpush.bf16.msra.mxu0 %v2368
    %2659 = vmatpush.bf16.msra.mxu0 %v2364
    %2660 = vmatpush.bf16.msra.mxu0 %v2360
    %2661 = vmatpush.bf16.msra.mxu0 %v2356
    %2662 = vmatpush.bf16.msra.mxu0 %v2352
    %2663 = vmatpush.bf16.msra.mxu0 %v2348
    %2664 = vmatpush.bf16.msra.mxu0 %v2344
    %2665 = vmatpush.bf16.msra.mxu0 %v2340
    %2666 = vmatmul.bf16.gmra.mxu0 %v2644
    %v2667 = vpop.f32.mrf.mxu0
    %v2668 = vadd.f32 0.0, %v2667
    %v2669 = vpop.f32.mrf.mxu0
    %2670 = vdwg.mxu0
    %2671 = vmatpush.bf16.msra.mxu0 %v2369
    %2672 = vmatpush.bf16.msra.mxu0 %v2365
    %2673 = vmatpush.bf16.msra.mxu0 %v2361
    %2674 = vmatpush.bf16.msra.mxu0 %v2357
    %2675 = vmatpush.bf16.msra.mxu0 %v2353
    %2676 = vmatpush.bf16.msra.mxu0 %v2349
    %2677 = vmatpush.bf16.msra.mxu0 %v2345
    %2678 = vmatpush.bf16.msra.mxu0 %v2341
    %2679 = vmatmul.bf16.gmra.mxu0 %v2644
    %v2680 = vpop.f32.mrf.mxu0
    %v2681 = vadd.f32 0.0, %v2680
    %v2682 = vpop.f32.mrf.mxu0
    %2683 = vdwg.mxu0
    %2684 = vmatpush.bf16.msra.mxu0 %v2370
    %2685 = vmatpush.bf16.msra.mxu0 %v2366
    %2686 = vmatpush.bf16.msra.mxu0 %v2362
    %2687 = vmatpush.bf16.msra.mxu0 %v2358
    %2688 = vmatpush.bf16.msra.mxu0 %v2354
    %2689 = vmatpush.bf16.msra.mxu0 %v2350
    %2690 = vmatpush.bf16.msra.mxu0 %v2346
    %2691 = vmatpush.bf16.msra.mxu0 %v2342
    %2692 = vmatmul.bf16.gmra.mxu0 %v2644
    %v2693 = vpop.f32.mrf.mxu0
    %v2694 = vadd.f32 0.0, %v2693
    %v2695 = vpop.f32.mrf.mxu0
    %2696 = vdwg.mxu0
    %v2697 = vadd.f32 %v2137, %v2655
    %v2698 = vadd.f32 %v2166, %v2668
    %v2699 = vadd.f32 %v2195, %v2681
    %v2700 = vadd.f32 %v2224, %v2694
    %v2701 = vxor.u32 %v2697, 2147483648
    %v2702 = vmul.f32 %v2701, 1.442695
    %v2703 = vpow.pop %v2702
    %v2704 = vadd.f32 %v2703, 1.0
    %v2705 = vrcp.pop %v2704
    %v2706 = vmul.f32 %v2704, %v2705
    %v2707 = vsub.f32 1.0, %v2706
    %v2708 = vmul.f32 %v2705, %v2707
    %v2709 = vadd.f32 %v2705, %v2708
    %vm2710 = vweird.f32 %v2704
    %vm2711 = vweird.f32 %v2705
    %vm2712 = vmor %vm2710, %vm2711
    %v2713 = vsel %vm2712, %v2705, %v2709
    %v2714 = vand.u32 2147483647, %v2704
    %vm2715 = vcmp.eq.f32.partialorder %v2714, 8.507059e+37
    %v2716 = vand.u32 %v2704, 2147483648
    %v2717 = vor.u32 1.1754944e-38, %v2716
    %v2718 = vsel %vm2715, %v2717, %v2713
    %v2719 = vmul.f32 1.0, %v2718
    %v2720 = vxor.u32 %v2698, 2147483648
    %v2721 = vmul.f32 %v2720, 1.442695
    %v2722 = vpow.pop %v2721
    %v2723 = vadd.f32 %v2722, 1.0
    %v2724 = vrcp.pop %v2723
    %v2725 = vmul.f32 %v2723, %v2724
    %v2726 = vsub.f32 1.0, %v2725
    %v2727 = vmul.f32 %v2724, %v2726
    %v2728 = vadd.f32 %v2724, %v2727
    %vm2729 = vweird.f32 %v2723
    %vm2730 = vweird.f32 %v2724
    %vm2731 = vmor %vm2729, %vm2730
    %v2732 = vsel %vm2731, %v2724, %v2728
    %v2733 = vand.u32 2147483647, %v2723
    %vm2734 = vcmp.eq.f32.partialorder %v2733, 8.507059e+37
    %v2735 = vand.u32 %v2723, 2147483648
    %v2736 = vor.u32 1.1754944e-38, %v2735
    %v2737 = vsel %vm2734, %v2736, %v2732
    %v2738 = vmul.f32 1.0, %v2737
    %v2739 = vtanh.pop %v2699
    %v2740 = vxor.u32 %v2700, 2147483648
    %v2741 = vmul.f32 %v2740, 1.442695
    %v2742 = vpow.pop %v2741
    %v2743 = vadd.f32 %v2742, 1.0
    %v2744 = vrcp.pop %v2743
    %v2745 = vmul.f32 %v2743, %v2744
    %v2746 = vsub.f32 1.0, %v2745
    %v2747 = vmul.f32 %v2744, %v2746
    %v2748 = vadd.f32 %v2744, %v2747
    %vm2749 = vweird.f32 %v2743
    %vm2750 = vweird.f32 %v2744
    %vm2751 = vmor %vm2749, %vm2750
    %v2752 = vsel %vm2751, %v2744, %v2748
    %v2753 = vand.u32 2147483647, %v2743
    %vm2754 = vcmp.eq.f32.partialorder %v2753, 8.507059e+37
    %v2755 = vand.u32 %v2743, 2147483648
    %v2756 = vor.u32 1.1754944e-38, %v2755
    %v2757 = vsel %vm2754, %v2756, %v2752
    %v2758 = vmul.f32 1.0, %v2757
    %v2759 = vmul.f32 %v2738, %v2640
    %v2760 = vmul.f32 %v2719, %v2739
    %v2761 = vadd.f32 %v2759, %v2760
    %v2762 = vtanh.pop %v2761
    %v2763 = vmul.f32 %v2758, %v2762
    %2764 = vst [vmem:[#allocation2 + $0x10] sm:$0xff] %v2763
    %v2765 = vpack.c.bf16 %v2763, %v2763
    %2766 = vmatpush.bf16.msra.mxu0 %v2367
    %2767 = vmatpush.bf16.msra.mxu0 %v2363
    %2768 = vmatpush.bf16.msra.mxu0 %v2359
    %2769 = vmatpush.bf16.msra.mxu0 %v2355
    %2770 = vmatpush.bf16.msra.mxu0 %v2351
    %2771 = vmatpush.bf16.msra.mxu0 %v2347
    %2772 = vmatpush.bf16.msra.mxu0 %v2343
    %2773 = vmatpush.bf16.msra.mxu0 %v2339
    %2774 = vmatmul.bf16.gmra.mxu0 %v2765
    %v2775 = vpop.f32.mrf.mxu0
    %v2776 = vadd.f32 0.0, %v2775
    %v2777 = vpop.f32.mrf.mxu0
    %2778 = vdwg.mxu0
    %2779 = vmatpush.bf16.msra.mxu0 %v2368
    %2780 = vmatpush.bf16.msra.mxu0 %v2364
    %2781 = vmatpush.bf16.msra.mxu0 %v2360
    %2782 = vmatpush.bf16.msra.mxu0 %v2356
    %2783 = vmatpush.bf16.msra.mxu0 %v2352
    %2784 = vmatpush.bf16.msra.mxu0 %v2348
    %2785 = vmatpush.bf16.msra.mxu0 %v2344
    %2786 = vmatpush.bf16.msra.mxu0 %v2340
    %2787 = vmatmul.bf16.gmra.mxu0 %v2765
    %v2788 = vpop.f32.mrf.mxu0
    %v2789 = vadd.f32 0.0, %v2788
    %v2790 = vpop.f32.mrf.mxu0
    %2791 = vdwg.mxu0
    %2792 = vmatpush.bf16.msra.mxu0 %v2369
    %2793 = vmatpush.bf16.msra.mxu0 %v2365
    %2794 = vmatpush.bf16.msra.mxu0 %v2361
    %2795 = vmatpush.bf16.msra.mxu0 %v2357
    %2796 = vmatpush.bf16.msra.mxu0 %v2353
    %2797 = vmatpush.bf16.msra.mxu0 %v2349
    %2798 = vmatpush.bf16.msra.mxu0 %v2345
    %2799 = vmatpush.bf16.msra.mxu0 %v2341
    %2800 = vmatmul.bf16.gmra.mxu0 %v2765
    %v2801 = vpop.f32.mrf.mxu0
    %v2802 = vadd.f32 0.0, %v2801
    %v2803 = vpop.f32.mrf.mxu0
    %2804 = vdwg.mxu0
    %2805 = vmatpush.bf16.msra.mxu0 %v2370
    %2806 = vmatpush.bf16.msra.mxu0 %v2366
    %2807 = vmatpush.bf16.msra.mxu0 %v2362
    %2808 = vmatpush.bf16.msra.mxu0 %v2358
    %2809 = vmatpush.bf16.msra.mxu0 %v2354
    %2810 = vmatpush.bf16.msra.mxu0 %v2350
    %2811 = vmatpush.bf16.msra.mxu0 %v2346
    %2812 = vmatpush.bf16.msra.mxu0 %v2342
    %2813 = vmatmul.bf16.gmra.mxu0 %v2765
    %v2814 = vpop.f32.mrf.mxu0
    %v2815 = vadd.f32 0.0, %v2814
    %v2816 = vpop.f32.mrf.mxu0
    %2817 = vdwg.mxu0
    %v2818 = vadd.f32 %v2139, %v2776
    %v2819 = vadd.f32 %v2168, %v2789
    %v2820 = vadd.f32 %v2197, %v2802
    %v2821 = vadd.f32 %v2226, %v2815
    %v2822 = vxor.u32 %v2818, 2147483648
    %v2823 = vmul.f32 %v2822, 1.442695
    %v2824 = vpow.pop %v2823
    %v2825 = vadd.f32 %v2824, 1.0
    %v2826 = vrcp.pop %v2825
    %v2827 = vmul.f32 %v2825, %v2826
    %v2828 = vsub.f32 1.0, %v2827
    %v2829 = vmul.f32 %v2826, %v2828
    %v2830 = vadd.f32 %v2826, %v2829
    %vm2831 = vweird.f32 %v2825
    %vm2832 = vweird.f32 %v2826
    %vm2833 = vmor %vm2831, %vm2832
    %v2834 = vsel %vm2833, %v2826, %v2830
    %v2835 = vand.u32 2147483647, %v2825
    %vm2836 = vcmp.eq.f32.partialorder %v2835, 8.507059e+37
    %v2837 = vand.u32 %v2825, 2147483648
    %v2838 = vor.u32 1.1754944e-38, %v2837
    %v2839 = vsel %vm2836, %v2838, %v2834
    %v2840 = vmul.f32 1.0, %v2839
    %v2841 = vxor.u32 %v2819, 2147483648
    %v2842 = vmul.f32 %v2841, 1.442695
    %v2843 = vpow.pop %v2842
    %v2844 = vadd.f32 %v2843, 1.0
    %v2845 = vrcp.pop %v2844
    %v2846 = vmul.f32 %v2844, %v2845
    %v2847 = vsub.f32 1.0, %v2846
    %v2848 = vmul.f32 %v2845, %v2847
    %v2849 = vadd.f32 %v2845, %v2848
    %vm2850 = vweird.f32 %v2844
    %vm2851 = vweird.f32 %v2845
    %vm2852 = vmor %vm2850, %vm2851
    %v2853 = vsel %vm2852, %v2845, %v2849
    %v2854 = vand.u32 2147483647, %v2844
    %vm2855 = vcmp.eq.f32.partialorder %v2854, 8.507059e+37
    %v2856 = vand.u32 %v2844, 2147483648
    %v2857 = vor.u32 1.1754944e-38, %v2856
    %v2858 = vsel %vm2855, %v2857, %v2853
    %v2859 = vmul.f32 1.0, %v2858
    %v2860 = vtanh.pop %v2820
    %v2861 = vxor.u32 %v2821, 2147483648
    %v2862 = vmul.f32 %v2861, 1.442695
    %v2863 = vpow.pop %v2862
    %v2864 = vadd.f32 %v2863, 1.0
    %v2865 = vrcp.pop %v2864
    %v2866 = vmul.f32 %v2864, %v2865
    %v2867 = vsub.f32 1.0, %v2866
    %v2868 = vmul.f32 %v2865, %v2867
    %v2869 = vadd.f32 %v2865, %v2868
    %vm2870 = vweird.f32 %v2864
    %vm2871 = vweird.f32 %v2865
    %vm2872 = vmor %vm2870, %vm2871
    %v2873 = vsel %vm2872, %v2865, %v2869
    %v2874 = vand.u32 2147483647, %v2864
    %vm2875 = vcmp.eq.f32.partialorder %v2874, 8.507059e+37
    %v2876 = vand.u32 %v2864, 2147483648
    %v2877 = vor.u32 1.1754944e-38, %v2876
    %v2878 = vsel %vm2875, %v2877, %v2873
    %v2879 = vmul.f32 1.0, %v2878
    %v2880 = vmul.f32 %v2859, %v2761
    %v2881 = vmul.f32 %v2840, %v2860
    %v2882 = vadd.f32 %v2880, %v2881
    %v2883 = vtanh.pop %v2882
    %v2884 = vmul.f32 %v2879, %v2883
    %2885 = vst [vmem:[#allocation2 + $0x18] sm:$0xff] %v2884
    %v2886 = vpack.c.bf16 %v2884, %v2884
    %2887 = vmatpush.bf16.msra.mxu0 %v2367
    %2888 = vmatpush.bf16.msra.mxu0 %v2363
    %2889 = vmatpush.bf16.msra.mxu0 %v2359
    %2890 = vmatpush.bf16.msra.mxu0 %v2355
    %2891 = vmatpush.bf16.msra.mxu0 %v2351
    %2892 = vmatpush.bf16.msra.mxu0 %v2347
    %2893 = vmatpush.bf16.msra.mxu0 %v2343
    %2894 = vmatpush.bf16.msra.mxu0 %v2339
    %2895 = vmatmul.bf16.gmra.mxu0 %v2886
    %v2896 = vpop.f32.mrf.mxu0
    %v2897 = vadd.f32 0.0, %v2896
    %v2898 = vpop.f32.mrf.mxu0
    %2899 = vdwg.mxu0
    %2900 = vmatpush.bf16.msra.mxu0 %v2368
    %2901 = vmatpush.bf16.msra.mxu0 %v2364
    %2902 = vmatpush.bf16.msra.mxu0 %v2360
    %2903 = vmatpush.bf16.msra.mxu0 %v2356
    %2904 = vmatpush.bf16.msra.mxu0 %v2352
    %2905 = vmatpush.bf16.msra.mxu0 %v2348
    %2906 = vmatpush.bf16.msra.mxu0 %v2344
    %2907 = vmatpush.bf16.msra.mxu0 %v2340
    %2908 = vmatmul.bf16.gmra.mxu0 %v2886
    %v2909 = vpop.f32.mrf.mxu0
    %v2910 = vadd.f32 0.0, %v2909
    %v2911 = vpop.f32.mrf.mxu0
    %2912 = vdwg.mxu0
    %2913 = vmatpush.bf16.msra.mxu0 %v2369
    %2914 = vmatpush.bf16.msra.mxu0 %v2365
    %2915 = vmatpush.bf16.msra.mxu0 %v2361
    %2916 = vmatpush.bf16.msra.mxu0 %v2357
    %2917 = vmatpush.bf16.msra.mxu0 %v2353
    %2918 = vmatpush.bf16.msra.mxu0 %v2349
    %2919 = vmatpush.bf16.msra.mxu0 %v2345
    %2920 = vmatpush.bf16.msra.mxu0 %v2341
    %2921 = vmatmul.bf16.gmra.mxu0 %v2886
    %v2922 = vpop.f32.mrf.mxu0
    %v2923 = vadd.f32 0.0, %v2922
    %v2924 = vpop.f32.mrf.mxu0
    %2925 = vdwg.mxu0
    %2926 = vmatpush.bf16.msra.mxu0 %v2370
    %2927 = vmatpush.bf16.msra.mxu0 %v2366
    %2928 = vmatpush.bf16.msra.mxu0 %v2362
    %2929 = vmatpush.bf16.msra.mxu0 %v2358
    %2930 = vmatpush.bf16.msra.mxu0 %v2354
    %2931 = vmatpush.bf16.msra.mxu0 %v2350
    %2932 = vmatpush.bf16.msra.mxu0 %v2346
    %2933 = vmatpush.bf16.msra.mxu0 %v2342
    %2934 = vmatmul.bf16.gmra.mxu0 %v2886
    %v2935 = vpop.f32.mrf.mxu0
    %v2936 = vadd.f32 0.0, %v2935
    %v2937 = vpop.f32.mrf.mxu0
    %2938 = vdwg.mxu0
    %v2939 = vadd.f32 %v2142, %v2897
    %v2940 = vadd.f32 %v2171, %v2910
    %v2941 = vadd.f32 %v2200, %v2923
    %v2942 = vadd.f32 %v2229, %v2936
    %v2943 = vxor.u32 %v2939, 2147483648
    %v2944 = vmul.f32 %v2943, 1.442695
    %v2945 = vpow.pop %v2944
    %v2946 = vadd.f32 %v2945, 1.0
    %v2947 = vrcp.pop %v2946
    %v2948 = vmul.f32 %v2946, %v2947
    %v2949 = vsub.f32 1.0, %v2948
    %v2950 = vmul.f32 %v2947, %v2949
    %v2951 = vadd.f32 %v2947, %v2950
    %vm2952 = vweird.f32 %v2946
    %vm2953 = vweird.f32 %v2947
    %vm2954 = vmor %vm2952, %vm2953
    %v2955 = vsel %vm2954, %v2947, %v2951
    %v2956 = vand.u32 2147483647, %v2946
    %vm2957 = vcmp.eq.f32.partialorder %v2956, 8.507059e+37
    %v2958 = vand.u32 %v2946, 2147483648
    %v2959 = vor.u32 1.1754944e-38, %v2958
    %v2960 = vsel %vm2957, %v2959, %v2955
    %v2961 = vmul.f32 1.0, %v2960
    %v2962 = vxor.u32 %v2940, 2147483648
    %v2963 = vmul.f32 %v2962, 1.442695
    %v2964 = vpow.pop %v2963
    %v2965 = vadd.f32 %v2964, 1.0
    %v2966 = vrcp.pop %v2965
    %v2967 = vmul.f32 %v2965, %v2966
    %v2968 = vsub.f32 1.0, %v2967
    %v2969 = vmul.f32 %v2966, %v2968
    %v2970 = vadd.f32 %v2966, %v2969
    %vm2971 = vweird.f32 %v2965
    %vm2972 = vweird.f32 %v2966
    %vm2973 = vmor %vm2971, %vm2972
    %v2974 = vsel %vm2973, %v2966, %v2970
    %v2975 = vand.u32 2147483647, %v2965
    %vm2976 = vcmp.eq.f32.partialorder %v2975, 8.507059e+37
    %v2977 = vand.u32 %v2965, 2147483648
    %v2978 = vor.u32 1.1754944e-38, %v2977
    %v2979 = vsel %vm2976, %v2978, %v2974
    %v2980 = vmul.f32 1.0, %v2979
    %v2981 = vtanh.pop %v2941
    %v2982 = vxor.u32 %v2942, 2147483648
    %v2983 = vmul.f32 %v2982, 1.442695
    %v2984 = vpow.pop %v2983
    %v2985 = vadd.f32 %v2984, 1.0
    %v2986 = vrcp.pop %v2985
    %v2987 = vmul.f32 %v2985, %v2986
    %v2988 = vsub.f32 1.0, %v2987
    %v2989 = vmul.f32 %v2986, %v2988
    %v2990 = vadd.f32 %v2986, %v2989
    %vm2991 = vweird.f32 %v2985
    %vm2992 = vweird.f32 %v2986
    %vm2993 = vmor %vm2991, %vm2992
    %v2994 = vsel %vm2993, %v2986, %v2990
    %v2995 = vand.u32 2147483647, %v2985
    %vm2996 = vcmp.eq.f32.partialorder %v2995, 8.507059e+37
    %v2997 = vand.u32 %v2985, 2147483648
    %v2998 = vor.u32 1.1754944e-38, %v2997
    %v2999 = vsel %vm2996, %v2998, %v2994
    %v3000 = vmul.f32 1.0, %v2999
    %v3001 = vmul.f32 %v2980, %v2882
    %v3002 = vmul.f32 %v2961, %v2981
    %v3003 = vadd.f32 %v3001, %v3002
    %v3004 = vtanh.pop %v3003
    %v3005 = vmul.f32 %v3000, %v3004
    %3006 = vst [vmem:[#allocation2 + $0x20] sm:$0xff] %v3005
    %v3007 = vpack.c.bf16 %v3005, %v3005
    %3008 = vmatpush.bf16.msra.mxu0 %v2367
    %3009 = vmatpush.bf16.msra.mxu0 %v2363
    %3010 = vmatpush.bf16.msra.mxu0 %v2359
    %3011 = vmatpush.bf16.msra.mxu0 %v2355
    %3012 = vmatpush.bf16.msra.mxu0 %v2351
    %3013 = vmatpush.bf16.msra.mxu0 %v2347
    %3014 = vmatpush.bf16.msra.mxu0 %v2343
    %3015 = vmatpush.bf16.msra.mxu0 %v2339
    %3016 = vmatmul.bf16.gmra.mxu0 %v3007
    %v3017 = vpop.f32.mrf.mxu0
    %v3018 = vadd.f32 0.0, %v3017
    %v3019 = vpop.f32.mrf.mxu0
    %3020 = vdwg.mxu0
    %3021 = vmatpush.bf16.msra.mxu0 %v2368
    %3022 = vmatpush.bf16.msra.mxu0 %v2364
    %3023 = vmatpush.bf16.msra.mxu0 %v2360
    %3024 = vmatpush.bf16.msra.mxu0 %v2356
    %3025 = vmatpush.bf16.msra.mxu0 %v2352
    %3026 = vmatpush.bf16.msra.mxu0 %v2348
    %3027 = vmatpush.bf16.msra.mxu0 %v2344
    %3028 = vmatpush.bf16.msra.mxu0 %v2340
    %3029 = vmatmul.bf16.gmra.mxu0 %v3007
    %v3030 = vpop.f32.mrf.mxu0
    %v3031 = vadd.f32 0.0, %v3030
    %v3032 = vpop.f32.mrf.mxu0
    %3033 = vdwg.mxu0
    %3034 = vmatpush.bf16.msra.mxu0 %v2369
    %3035 = vmatpush.bf16.msra.mxu0 %v2365
    %3036 = vmatpush.bf16.msra.mxu0 %v2361
    %3037 = vmatpush.bf16.msra.mxu0 %v2357
    %3038 = vmatpush.bf16.msra.mxu0 %v2353
    %3039 = vmatpush.bf16.msra.mxu0 %v2349
    %3040 = vmatpush.bf16.msra.mxu0 %v2345
    %3041 = vmatpush.bf16.msra.mxu0 %v2341
    %3042 = vmatmul.bf16.gmra.mxu0 %v3007
    %v3043 = vpop.f32.mrf.mxu0
    %v3044 = vadd.f32 0.0, %v3043
    %v3045 = vpop.f32.mrf.mxu0
    %3046 = vdwg.mxu0
    %3047 = vmatpush.bf16.msra.mxu0 %v2370
    %3048 = vmatpush.bf16.msra.mxu0 %v2366
    %3049 = vmatpush.bf16.msra.mxu0 %v2362
    %3050 = vmatpush.bf16.msra.mxu0 %v2358
    %3051 = vmatpush.bf16.msra.mxu0 %v2354
    %3052 = vmatpush.bf16.msra.mxu0 %v2350
    %3053 = vmatpush.bf16.msra.mxu0 %v2346
    %3054 = vmatpush.bf16.msra.mxu0 %v2342
    %3055 = vmatmul.bf16.gmra.mxu0 %v3007
    %v3056 = vpop.f32.mrf.mxu0
    %v3057 = vadd.f32 0.0, %v3056
    %v3058 = vpop.f32.mrf.mxu0
    %3059 = vdwg.mxu0
    %v3060 = vadd.f32 %v2144, %v3018
    %v3061 = vadd.f32 %v2173, %v3031
    %v3062 = vadd.f32 %v2202, %v3044
    %v3063 = vadd.f32 %v2231, %v3057
    %v3064 = vxor.u32 %v3060, 2147483648
    %v3065 = vmul.f32 %v3064, 1.442695
    %v3066 = vpow.pop %v3065
    %v3067 = vadd.f32 %v3066, 1.0
    %v3068 = vrcp.pop %v3067
    %v3069 = vmul.f32 %v3067, %v3068
    %v3070 = vsub.f32 1.0, %v3069
    %v3071 = vmul.f32 %v3068, %v3070
    %v3072 = vadd.f32 %v3068, %v3071
    %vm3073 = vweird.f32 %v3067
    %vm3074 = vweird.f32 %v3068
    %vm3075 = vmor %vm3073, %vm3074
    %v3076 = vsel %vm3075, %v3068, %v3072
    %v3077 = vand.u32 2147483647, %v3067
    %vm3078 = vcmp.eq.f32.partialorder %v3077, 8.507059e+37
    %v3079 = vand.u32 %v3067, 2147483648
    %v3080 = vor.u32 1.1754944e-38, %v3079
    %v3081 = vsel %vm3078, %v3080, %v3076
    %v3082 = vmul.f32 1.0, %v3081
    %v3083 = vxor.u32 %v3061, 2147483648
    %v3084 = vmul.f32 %v3083, 1.442695
    %v3085 = vpow.pop %v3084
    %v3086 = vadd.f32 %v3085, 1.0
    %v3087 = vrcp.pop %v3086
    %v3088 = vmul.f32 %v3086, %v3087
    %v3089 = vsub.f32 1.0, %v3088
    %v3090 = vmul.f32 %v3087, %v3089
    %v3091 = vadd.f32 %v3087, %v3090
    %vm3092 = vweird.f32 %v3086
    %vm3093 = vweird.f32 %v3087
    %vm3094 = vmor %vm3092, %vm3093
    %v3095 = vsel %vm3094, %v3087, %v3091
    %v3096 = vand.u32 2147483647, %v3086
    %vm3097 = vcmp.eq.f32.partialorder %v3096, 8.507059e+37
    %v3098 = vand.u32 %v3086, 2147483648
    %v3099 = vor.u32 1.1754944e-38, %v3098
    %v3100 = vsel %vm3097, %v3099, %v3095
    %v3101 = vmul.f32 1.0, %v3100
    %v3102 = vtanh.pop %v3062
    %v3103 = vxor.u32 %v3063, 2147483648
    %v3104 = vmul.f32 %v3103, 1.442695
    %v3105 = vpow.pop %v3104
    %v3106 = vadd.f32 %v3105, 1.0
    %v3107 = vrcp.pop %v3106
    %v3108 = vmul.f32 %v3106, %v3107
    %v3109 = vsub.f32 1.0, %v3108
    %v3110 = vmul.f32 %v3107, %v3109
    %v3111 = vadd.f32 %v3107, %v3110
    %vm3112 = vweird.f32 %v3106
    %vm3113 = vweird.f32 %v3107
    %vm3114 = vmor %vm3112, %vm3113
    %v3115 = vsel %vm3114, %v3107, %v3111
    %v3116 = vand.u32 2147483647, %v3106
    %vm3117 = vcmp.eq.f32.partialorder %v3116, 8.507059e+37
    %v3118 = vand.u32 %v3106, 2147483648
    %v3119 = vor.u32 1.1754944e-38, %v3118
    %v3120 = vsel %vm3117, %v3119, %v3115
    %v3121 = vmul.f32 1.0, %v3120
    %v3122 = vmul.f32 %v3101, %v3003
    %v3123 = vmul.f32 %v3082, %v3102
    %v3124 = vadd.f32 %v3122, %v3123
    %v3125 = vtanh.pop %v3124
    %v3126 = vmul.f32 %v3121, %v3125
    %3127 = vst [vmem:[#allocation2 + $0x28] sm:$0xff] %v3126
    %v3128 = vpack.c.bf16 %v3126, %v3126
    %3129 = vmatpush.bf16.msra.mxu0 %v2367
    %3130 = vmatpush.bf16.msra.mxu0 %v2363
    %3131 = vmatpush.bf16.msra.mxu0 %v2359
    %3132 = vmatpush.bf16.msra.mxu0 %v2355
    %3133 = vmatpush.bf16.msra.mxu0 %v2351
    %3134 = vmatpush.bf16.msra.mxu0 %v2347
    %3135 = vmatpush.bf16.msra.mxu0 %v2343
    %3136 = vmatpush.bf16.msra.mxu0 %v2339
    %3137 = vmatmul.bf16.gmra.mxu0 %v3128
    %v3138 = vpop.f32.mrf.mxu0
    %v3139 = vadd.f32 0.0, %v3138
    %v3140 = vpop.f32.mrf.mxu0
    %3141 = vdwg.mxu0
    %3142 = vmatpush.bf16.msra.mxu0 %v2368
    %3143 = vmatpush.bf16.msra.mxu0 %v2364
    %3144 = vmatpush.bf16.msra.mxu0 %v2360
    %3145 = vmatpush.bf16.msra.mxu0 %v2356
    %3146 = vmatpush.bf16.msra.mxu0 %v2352
    %3147 = vmatpush.bf16.msra.mxu0 %v2348
    %3148 = vmatpush.bf16.msra.mxu0 %v2344
    %3149 = vmatpush.bf16.msra.mxu0 %v2340
    %3150 = vmatmul.bf16.gmra.mxu0 %v3128
    %v3151 = vpop.f32.mrf.mxu0
    %v3152 = vadd.f32 0.0, %v3151
    %v3153 = vpop.f32.mrf.mxu0
    %3154 = vdwg.mxu0
    %3155 = vmatpush.bf16.msra.mxu0 %v2369
    %3156 = vmatpush.bf16.msra.mxu0 %v2365
    %3157 = vmatpush.bf16.msra.mxu0 %v2361
    %3158 = vmatpush.bf16.msra.mxu0 %v2357
    %3159 = vmatpush.bf16.msra.mxu0 %v2353
    %3160 = vmatpush.bf16.msra.mxu0 %v2349
    %3161 = vmatpush.bf16.msra.mxu0 %v2345
    %3162 = vmatpush.bf16.msra.mxu0 %v2341
    %3163 = vmatmul.bf16.gmra.mxu0 %v3128
    %v3164 = vpop.f32.mrf.mxu0
    %v3165 = vadd.f32 0.0, %v3164
    %v3166 = vpop.f32.mrf.mxu0
    %3167 = vdwg.mxu0
    %3168 = vmatpush.bf16.msra.mxu0 %v2370
    %3169 = vmatpush.bf16.msra.mxu0 %v2366
    %3170 = vmatpush.bf16.msra.mxu0 %v2362
    %3171 = vmatpush.bf16.msra.mxu0 %v2358
    %3172 = vmatpush.bf16.msra.mxu0 %v2354
    %3173 = vmatpush.bf16.msra.mxu0 %v2350
    %3174 = vmatpush.bf16.msra.mxu0 %v2346
    %3175 = vmatpush.bf16.msra.mxu0 %v2342
    %3176 = vmatmul.bf16.gmra.mxu0 %v3128
    %v3177 = vpop.f32.mrf.mxu0
    %v3178 = vadd.f32 0.0, %v3177
    %v3179 = vpop.f32.mrf.mxu0
    %3180 = vdwg.mxu0
    %v3181 = vadd.f32 %v2147, %v3139
    %v3182 = vadd.f32 %v2176, %v3152
    %v3183 = vadd.f32 %v2205, %v3165
    %v3184 = vadd.f32 %v2234, %v3178
    %v3185 = vxor.u32 %v3181, 2147483648
    %v3186 = vmul.f32 %v3185, 1.442695
    %v3187 = vpow.pop %v3186
    %v3188 = vadd.f32 %v3187, 1.0
    %v3189 = vrcp.pop %v3188
    %v3190 = vmul.f32 %v3188, %v3189
    %v3191 = vsub.f32 1.0, %v3190
    %v3192 = vmul.f32 %v3189, %v3191
    %v3193 = vadd.f32 %v3189, %v3192
    %vm3194 = vweird.f32 %v3188
    %vm3195 = vweird.f32 %v3189
    %vm3196 = vmor %vm3194, %vm3195
    %v3197 = vsel %vm3196, %v3189, %v3193
    %v3198 = vand.u32 2147483647, %v3188
    %vm3199 = vcmp.eq.f32.partialorder %v3198, 8.507059e+37
    %v3200 = vand.u32 %v3188, 2147483648
    %v3201 = vor.u32 1.1754944e-38, %v3200
    %v3202 = vsel %vm3199, %v3201, %v3197
    %v3203 = vmul.f32 1.0, %v3202
    %v3204 = vxor.u32 %v3182, 2147483648
    %v3205 = vmul.f32 %v3204, 1.442695
    %v3206 = vpow.pop %v3205
    %v3207 = vadd.f32 %v3206, 1.0
    %v3208 = vrcp.pop %v3207
    %v3209 = vmul.f32 %v3207, %v3208
    %v3210 = vsub.f32 1.0, %v3209
    %v3211 = vmul.f32 %v3208, %v3210
    %v3212 = vadd.f32 %v3208, %v3211
    %vm3213 = vweird.f32 %v3207
    %vm3214 = vweird.f32 %v3208
    %vm3215 = vmor %vm3213, %vm3214
    %v3216 = vsel %vm3215, %v3208, %v3212
    %v3217 = vand.u32 2147483647, %v3207
    %vm3218 = vcmp.eq.f32.partialorder %v3217, 8.507059e+37
    %v3219 = vand.u32 %v3207, 2147483648
    %v3220 = vor.u32 1.1754944e-38, %v3219
    %v3221 = vsel %vm3218, %v3220, %v3216
    %v3222 = vmul.f32 1.0, %v3221
    %v3223 = vtanh.pop %v3183
    %v3224 = vxor.u32 %v3184, 2147483648
    %v3225 = vmul.f32 %v3224, 1.442695
    %v3226 = vpow.pop %v3225
    %v3227 = vadd.f32 %v3226, 1.0
    %v3228 = vrcp.pop %v3227
    %v3229 = vmul.f32 %v3227, %v3228
    %v3230 = vsub.f32 1.0, %v3229
    %v3231 = vmul.f32 %v3228, %v3230
    %v3232 = vadd.f32 %v3228, %v3231
    %vm3233 = vweird.f32 %v3227
    %vm3234 = vweird.f32 %v3228
    %vm3235 = vmor %vm3233, %vm3234
    %v3236 = vsel %vm3235, %v3228, %v3232
    %v3237 = vand.u32 2147483647, %v3227
    %vm3238 = vcmp.eq.f32.partialorder %v3237, 8.507059e+37
    %v3239 = vand.u32 %v3227, 2147483648
    %v3240 = vor.u32 1.1754944e-38, %v3239
    %v3241 = vsel %vm3238, %v3240, %v3236
    %v3242 = vmul.f32 1.0, %v3241
    %v3243 = vmul.f32 %v3222, %v3124
    %v3244 = vmul.f32 %v3203, %v3223
    %v3245 = vadd.f32 %v3243, %v3244
    %v3246 = vtanh.pop %v3245
    %v3247 = vmul.f32 %v3242, %v3246
    %3248 = vst [vmem:[#allocation2 + $0x30] sm:$0xff] %v3247
    %v3249 = vpack.c.bf16 %v3247, %v3247
    %3250 = vmatpush.bf16.msra.mxu0 %v2367
    %3251 = vmatpush.bf16.msra.mxu0 %v2363
    %3252 = vmatpush.bf16.msra.mxu0 %v2359
    %3253 = vmatpush.bf16.msra.mxu0 %v2355
    %3254 = vmatpush.bf16.msra.mxu0 %v2351
    %3255 = vmatpush.bf16.msra.mxu0 %v2347
    %3256 = vmatpush.bf16.msra.mxu0 %v2343
    %3257 = vmatpush.bf16.msra.mxu0 %v2339
    %3258 = vmatmul.bf16.gmra.mxu0 %v3249
    %v3259 = vpop.f32.mrf.mxu0
    %v3260 = vadd.f32 0.0, %v3259
    %v3261 = vpop.f32.mrf.mxu0
    %3262 = vdwg.mxu0
    %3263 = vmatpush.bf16.msra.mxu0 %v2368
    %3264 = vmatpush.bf16.msra.mxu0 %v2364
    %3265 = vmatpush.bf16.msra.mxu0 %v2360
    %3266 = vmatpush.bf16.msra.mxu0 %v2356
    %3267 = vmatpush.bf16.msra.mxu0 %v2352
    %3268 = vmatpush.bf16.msra.mxu0 %v2348
    %3269 = vmatpush.bf16.msra.mxu0 %v2344
    %3270 = vmatpush.bf16.msra.mxu0 %v2340
    %3271 = vmatmul.bf16.gmra.mxu0 %v3249
    %v3272 = vpop.f32.mrf.mxu0
    %v3273 = vadd.f32 0.0, %v3272
    %v3274 = vpop.f32.mrf.mxu0
    %3275 = vdwg.mxu0
    %3276 = vmatpush.bf16.msra.mxu0 %v2369
    %3277 = vmatpush.bf16.msra.mxu0 %v2365
    %3278 = vmatpush.bf16.msra.mxu0 %v2361
    %3279 = vmatpush.bf16.msra.mxu0 %v2357
    %3280 = vmatpush.bf16.msra.mxu0 %v2353
    %3281 = vmatpush.bf16.msra.mxu0 %v2349
    %3282 = vmatpush.bf16.msra.mxu0 %v2345
    %3283 = vmatpush.bf16.msra.mxu0 %v2341
    %3284 = vmatmul.bf16.gmra.mxu0 %v3249
    %v3285 = vpop.f32.mrf.mxu0
    %v3286 = vadd.f32 0.0, %v3285
    %v3287 = vpop.f32.mrf.mxu0
    %3288 = vdwg.mxu0
    %3289 = vmatpush.bf16.msra.mxu0 %v2370
    %3290 = vmatpush.bf16.msra.mxu0 %v2366
    %3291 = vmatpush.bf16.msra.mxu0 %v2362
    %3292 = vmatpush.bf16.msra.mxu0 %v2358
    %3293 = vmatpush.bf16.msra.mxu0 %v2354
    %3294 = vmatpush.bf16.msra.mxu0 %v2350
    %3295 = vmatpush.bf16.msra.mxu0 %v2346
    %3296 = vmatpush.bf16.msra.mxu0 %v2342
    %3297 = vmatmul.bf16.gmra.mxu0 %v3249
    %v3298 = vpop.f32.mrf.mxu0
    %v3299 = vadd.f32 0.0, %v3298
    %v3300 = vpop.f32.mrf.mxu0
    %3301 = vdwg.mxu0
    %v3302 = vadd.f32 %v2149, %v3260
    %v3303 = vadd.f32 %v2178, %v3273
    %v3304 = vadd.f32 %v2207, %v3286
    %v3305 = vadd.f32 %v2236, %v3299
    %v3306 = vxor.u32 %v3302, 2147483648
    %v3307 = vmul.f32 %v3306, 1.442695
    %v3308 = vpow.pop %v3307
    %v3309 = vadd.f32 %v3308, 1.0
    %v3310 = vrcp.pop %v3309
    %v3311 = vmul.f32 %v3309, %v3310
    %v3312 = vsub.f32 1.0, %v3311
    %v3313 = vmul.f32 %v3310, %v3312
    %v3314 = vadd.f32 %v3310, %v3313
    %vm3315 = vweird.f32 %v3309
    %vm3316 = vweird.f32 %v3310
    %vm3317 = vmor %vm3315, %vm3316
    %v3318 = vsel %vm3317, %v3310, %v3314
    %v3319 = vand.u32 2147483647, %v3309
    %vm3320 = vcmp.eq.f32.partialorder %v3319, 8.507059e+37
    %v3321 = vand.u32 %v3309, 2147483648
    %v3322 = vor.u32 1.1754944e-38, %v3321
    %v3323 = vsel %vm3320, %v3322, %v3318
    %v3324 = vmul.f32 1.0, %v3323
    %v3325 = vxor.u32 %v3303, 2147483648
    %v3326 = vmul.f32 %v3325, 1.442695
    %v3327 = vpow.pop %v3326
    %v3328 = vadd.f32 %v3327, 1.0
    %v3329 = vrcp.pop %v3328
    %v3330 = vmul.f32 %v3328, %v3329
    %v3331 = vsub.f32 1.0, %v3330
    %v3332 = vmul.f32 %v3329, %v3331
    %v3333 = vadd.f32 %v3329, %v3332
    %vm3334 = vweird.f32 %v3328
    %vm3335 = vweird.f32 %v3329
    %vm3336 = vmor %vm3334, %vm3335
    %v3337 = vsel %vm3336, %v3329, %v3333
    %v3338 = vand.u32 2147483647, %v3328
    %vm3339 = vcmp.eq.f32.partialorder %v3338, 8.507059e+37
    %v3340 = vand.u32 %v3328, 2147483648
    %v3341 = vor.u32 1.1754944e-38, %v3340
    %v3342 = vsel %vm3339, %v3341, %v3337
    %v3343 = vmul.f32 1.0, %v3342
    %v3344 = vtanh.pop %v3304
    %v3345 = vxor.u32 %v3305, 2147483648
    %v3346 = vmul.f32 %v3345, 1.442695
    %v3347 = vpow.pop %v3346
    %v3348 = vadd.f32 %v3347, 1.0
    %v3349 = vrcp.pop %v3348
    %v3350 = vmul.f32 %v3348, %v3349
    %v3351 = vsub.f32 1.0, %v3350
    %v3352 = vmul.f32 %v3349, %v3351
    %v3353 = vadd.f32 %v3349, %v3352
    %vm3354 = vweird.f32 %v3348
    %vm3355 = vweird.f32 %v3349
    %vm3356 = vmor %vm3354, %vm3355
    %v3357 = vsel %vm3356, %v3349, %v3353
    %v3358 = vand.u32 2147483647, %v3348
    %vm3359 = vcmp.eq.f32.partialorder %v3358, 8.507059e+37
    %v3360 = vand.u32 %v3348, 2147483648
    %v3361 = vor.u32 1.1754944e-38, %v3360
    %v3362 = vsel %vm3359, %v3361, %v3357
    %v3363 = vmul.f32 1.0, %v3362
    %v3364 = vmul.f32 %v3343, %v3245
    %v3365 = vmul.f32 %v3324, %v3344
    %v3366 = vadd.f32 %v3364, %v3365
    %v3367 = vtanh.pop %v3366
    %v3368 = vmul.f32 %v3363, %v3367
    %3369 = vst [vmem:[#allocation2 + $0x38] sm:$0xff] %v3368
    %s3370 = scalar_lea.vmem %s15, 8
    %3371 = vst [vmem:[%s3370] sm:$0xff] %v3368
    %s3372 = scalar_lea.vmem %s16, 8
    %3373 = vst [vmem:[%s3372] sm:$0xff] %v3366
    %v3374 = vld [vmem:[#allocation2] sm:$0xff]
    %v3375 = vld [vmem:[#allocation2 + $0x8] sm:$0xff]
    %v3376 = vld [vmem:[#allocation2 + $0x10] sm:$0xff]
    %v3377 = vld [vmem:[#allocation2 + $0x18] sm:$0xff]
    %v3378 = vld [vmem:[#allocation2 + $0x20] sm:$0xff]
    %v3379 = vld [vmem:[#allocation2 + $0x28] sm:$0xff]
    %v3380 = vld [vmem:[#allocation2 + $0x30] sm:$0xff]
    %v3381 = vld [vmem:[#allocation2 + $0x38] sm:$0xff]
    %v3382 = vld [vmem:[#allocation10] sm:$0xff]
    %v3383 = vld [vmem:[#allocation10 + $0x8] sm:$0xff]
    %v3384 = vld [vmem:[#allocation10 + $0x10] sm:$0xff]
    %v3385 = vld [vmem:[#allocation10 + $0x18] sm:$0xff]
    %v3386 = vld [vmem:[#allocation10 + $0x20] sm:$0xff]
    %v3387 = vld [vmem:[#allocation10 + $0x28] sm:$0xff]
    %v3388 = vld [vmem:[#allocation10 + $0x30] sm:$0xff]
    %v3389 = vld [vmem:[#allocation10 + $0x38] sm:$0xff]
    %v3390 = vld [vmem:[#allocation10 + $0x40] sm:$0xff]
    %v3391 = vld [vmem:[#allocation10 + $0x48] sm:$0xff]
    %v3392 = vld [vmem:[#allocation10 + $0x50] sm:$0xff]
    %v3393 = vld [vmem:[#allocation10 + $0x58] sm:$0xff]
    %v3394 = vld [vmem:[#allocation10 + $0x60] sm:$0xff]
    %v3395 = vld [vmem:[#allocation10 + $0x68] sm:$0xff]
    %v3396 = vld [vmem:[#allocation10 + $0x70] sm:$0xff]
    %v3397 = vld [vmem:[#allocation10 + $0x78] sm:$0xff]
    %v3398 = vld [vmem:[#allocation10 + $0x80] sm:$0xff]
    %v3399 = vld [vmem:[#allocation10 + $0x88] sm:$0xff]
    %v3400 = vld [vmem:[#allocation10 + $0x90] sm:$0xff]
    %v3401 = vld [vmem:[#allocation10 + $0x98] sm:$0xff]
    %v3402 = vld [vmem:[#allocation10 + $0xa0] sm:$0xff]
    %v3403 = vld [vmem:[#allocation10 + $0xa8] sm:$0xff]
    %v3404 = vld [vmem:[#allocation10 + $0xb0] sm:$0xff]
    %v3405 = vld [vmem:[#allocation10 + $0xb8] sm:$0xff]
    %v3406 = vld [vmem:[#allocation10 + $0xc0] sm:$0xff]
    %v3407 = vld [vmem:[#allocation10 + $0xc8] sm:$0xff]
    %v3408 = vld [vmem:[#allocation10 + $0xd0] sm:$0xff]
    %v3409 = vld [vmem:[#allocation10 + $0xd8] sm:$0xff]
    %v3410 = vld [vmem:[#allocation10 + $0xe0] sm:$0xff]
    %v3411 = vld [vmem:[#allocation10 + $0xe8] sm:$0xff]
    %v3412 = vld [vmem:[#allocation10 + $0xf0] sm:$0xff]
    %v3413 = vld [vmem:[#allocation10 + $0xf8] sm:$0xff]
    %v3414 = vld [vmem:[#allocation11] sm:$0xff]
    %v3415 = vld [vmem:[#allocation11 + $0x8] sm:$0xff]
    %v3416 = vld [vmem:[#allocation11 + $0x10] sm:$0xff]
    %v3417 = vld [vmem:[#allocation11 + $0x18] sm:$0xff]
    %v3418 = vld [vmem:[#allocation11 + $0x20] sm:$0xff]
    %v3419 = vld [vmem:[#allocation11 + $0x28] sm:$0xff]
    %v3420 = vld [vmem:[#allocation11 + $0x30] sm:$0xff]
    %v3421 = vld [vmem:[#allocation11 + $0x38] sm:$0xff]
    %v3422 = vld [vmem:[#allocation11 + $0x40] sm:$0xff]
    %v3423 = vld [vmem:[#allocation11 + $0x48] sm:$0xff]
    %v3424 = vld [vmem:[#allocation11 + $0x50] sm:$0xff]
    %v3425 = vld [vmem:[#allocation11 + $0x58] sm:$0xff]
    %v3426 = vld [vmem:[#allocation11 + $0x60] sm:$0xff]
    %v3427 = vld [vmem:[#allocation11 + $0x68] sm:$0xff]
    %v3428 = vld [vmem:[#allocation11 + $0x70] sm:$0xff]
    %v3429 = vld [vmem:[#allocation11 + $0x78] sm:$0xff]
    %v3430 = vld [vmem:[#allocation11 + $0x80] sm:$0xff]
    %v3431 = vld [vmem:[#allocation11 + $0x88] sm:$0xff]
    %v3432 = vld [vmem:[#allocation11 + $0x90] sm:$0xff]
    %v3433 = vld [vmem:[#allocation11 + $0x98] sm:$0xff]
    %v3434 = vld [vmem:[#allocation11 + $0xa0] sm:$0xff]
    %v3435 = vld [vmem:[#allocation11 + $0xa8] sm:$0xff]
    %v3436 = vld [vmem:[#allocation11 + $0xb0] sm:$0xff]
    %v3437 = vld [vmem:[#allocation11 + $0xb8] sm:$0xff]
    %v3438 = vld [vmem:[#allocation11 + $0xc0] sm:$0xff]
    %v3439 = vld [vmem:[#allocation11 + $0xc8] sm:$0xff]
    %v3440 = vld [vmem:[#allocation11 + $0xd0] sm:$0xff]
    %v3441 = vld [vmem:[#allocation11 + $0xd8] sm:$0xff]
    %v3442 = vld [vmem:[#allocation11 + $0xe0] sm:$0xff]
    %v3443 = vld [vmem:[#allocation11 + $0xe8] sm:$0xff]
    %v3444 = vld [vmem:[#allocation11 + $0xf0] sm:$0xff]
    %v3445 = vld [vmem:[#allocation11 + $0xf8] sm:$0xff]
    %v3446 = vld [vmem:[%s11] sm:$0xf]
    %v3447 = vpack.c.bf16 %v3375, %v3374
    %v3448 = vpack.c.bf16 %v3377, %v3376
    %v3449 = vpack.c.bf16 %v3379, %v3378
    %v3450 = vpack.c.bf16 %v3381, %v3380
    %v3452 = vperm.slane %v3446, 0
    %v3453 = vperm.slane %v3446, 1
    %v3454 = vperm.slane %v3446, 2
    %v3455 = vperm.slane %v3446, 3
    %v3492 = vunpack.c.l.b16 %v3382
    %v3493 = vunpack.c.h.b16 %v3382
    %v3494 = vunpack.c.l.b16 %v3383
    %v3495 = vunpack.c.h.b16 %v3383
    %v3496 = vunpack.c.l.b16 %v3384
    %v3497 = vunpack.c.h.b16 %v3384
    %v3498 = vunpack.c.l.b16 %v3385
    %v3499 = vunpack.c.h.b16 %v3385
    %v3500 = vunpack.c.l.b16 %v3386
    %v3501 = vunpack.c.h.b16 %v3386
    %v3502 = vunpack.c.l.b16 %v3387
    %v3503 = vunpack.c.h.b16 %v3387
    %v3504 = vunpack.c.l.b16 %v3388
    %v3505 = vunpack.c.h.b16 %v3388
    %v3506 = vunpack.c.l.b16 %v3389
    %v3507 = vunpack.c.h.b16 %v3389
    %v3508 = vunpack.c.l.b16 %v3390
    %v3509 = vunpack.c.h.b16 %v3390
    %v3510 = vunpack.c.l.b16 %v3391
    %v3511 = vunpack.c.h.b16 %v3391
    %v3512 = vunpack.c.l.b16 %v3392
    %v3513 = vunpack.c.h.b16 %v3392
    %v3514 = vunpack.c.l.b16 %v3393
    %v3515 = vunpack.c.h.b16 %v3393
    %v3516 = vunpack.c.l.b16 %v3394
    %v3517 = vunpack.c.h.b16 %v3394
    %v3518 = vunpack.c.l.b16 %v3395
    %v3519 = vunpack.c.h.b16 %v3395
    %v3520 = vunpack.c.l.b16 %v3396
    %v3521 = vunpack.c.h.b16 %v3396
    %v3522 = vunpack.c.l.b16 %v3397
    %v3523 = vunpack.c.h.b16 %v3397
    %v3524 = vunpack.c.l.b16 %v3398
    %v3525 = vunpack.c.h.b16 %v3398
    %v3526 = vunpack.c.l.b16 %v3399
    %v3527 = vunpack.c.h.b16 %v3399
    %v3528 = vunpack.c.l.b16 %v3400
    %v3529 = vunpack.c.h.b16 %v3400
    %v3530 = vunpack.c.l.b16 %v3401
    %v3531 = vunpack.c.h.b16 %v3401
    %v3532 = vunpack.c.l.b16 %v3402
    %v3533 = vunpack.c.h.b16 %v3402
    %v3534 = vunpack.c.l.b16 %v3403
    %v3535 = vunpack.c.h.b16 %v3403
    %v3536 = vunpack.c.l.b16 %v3404
    %v3537 = vunpack.c.h.b16 %v3404
    %v3538 = vunpack.c.l.b16 %v3405
    %v3539 = vunpack.c.h.b16 %v3405
    %v3540 = vunpack.c.l.b16 %v3406
    %v3541 = vunpack.c.h.b16 %v3406
    %v3542 = vunpack.c.l.b16 %v3407
    %v3543 = vunpack.c.h.b16 %v3407
    %v3544 = vunpack.c.l.b16 %v3408
    %v3545 = vunpack.c.h.b16 %v3408
    %v3546 = vunpack.c.l.b16 %v3409
    %v3547 = vunpack.c.h.b16 %v3409
    %v3548 = vunpack.c.l.b16 %v3410
    %v3549 = vunpack.c.h.b16 %v3410
    %v3550 = vunpack.c.l.b16 %v3411
    %v3551 = vunpack.c.h.b16 %v3411
    %v3552 = vunpack.c.l.b16 %v3412
    %v3553 = vunpack.c.h.b16 %v3412
    %v3554 = vunpack.c.l.b16 %v3413
    %v3555 = vunpack.c.h.b16 %v3413
    %v3556 = vpack.c.b16 %v3496, %v3492
    %v3557 = vpack.c.b16 %v3497, %v3493
    %v3558 = vpack.c.b16 %v3498, %v3494
    %v3559 = vpack.c.b16 %v3499, %v3495
    %v3560 = vpack.c.b16 %v3504, %v3500
    %v3561 = vpack.c.b16 %v3505, %v3501
    %v3562 = vpack.c.b16 %v3506, %v3502
    %v3563 = vpack.c.b16 %v3507, %v3503
    %v3564 = vpack.c.b16 %v3512, %v3508
    %v3565 = vpack.c.b16 %v3513, %v3509
    %v3566 = vpack.c.b16 %v3514, %v3510
    %v3567 = vpack.c.b16 %v3515, %v3511
    %v3568 = vpack.c.b16 %v3520, %v3516
    %v3569 = vpack.c.b16 %v3521, %v3517
    %v3570 = vpack.c.b16 %v3522, %v3518
    %v3571 = vpack.c.b16 %v3523, %v3519
    %v3572 = vpack.c.b16 %v3528, %v3524
    %v3573 = vpack.c.b16 %v3529, %v3525
    %v3574 = vpack.c.b16 %v3530, %v3526
    %v3575 = vpack.c.b16 %v3531, %v3527
    %v3576 = vpack.c.b16 %v3536, %v3532
    %v3577 = vpack.c.b16 %v3537, %v3533
    %v3578 = vpack.c.b16 %v3538, %v3534
    %v3579 = vpack.c.b16 %v3539, %v3535
    %v3580 = vpack.c.b16 %v3544, %v3540
    %v3581 = vpack.c.b16 %v3545, %v3541
    %v3582 = vpack.c.b16 %v3546, %v3542
    %v3583 = vpack.c.b16 %v3547, %v3543
    %v3584 = vpack.c.b16 %v3552, %v3548
    %v3585 = vpack.c.b16 %v3553, %v3549
    %v3586 = vpack.c.b16 %v3554, %v3550
    %v3587 = vpack.c.b16 %v3555, %v3551
    %3620 = vmatpush.bf16.msra.mxu0 %v3584
    %3621 = vmatpush.bf16.msra.mxu0 %v3580
    %3622 = vmatpush.bf16.msra.mxu0 %v3576
    %3623 = vmatpush.bf16.msra.mxu0 %v3572
    %3624 = vmatpush.bf16.msra.mxu0 %v3568
    %3625 = vmatpush.bf16.msra.mxu0 %v3564
    %3626 = vmatpush.bf16.msra.mxu0 %v3560
    %3627 = vmatpush.bf16.msra.mxu0 %v3556
    %3628 = vmatmul.bf16.gmra.mxu0 %v3447
    %v3629 = vpop.f32.mrf.mxu0
    %v3630 = vadd.f32 %v3452, %v3629
    %v3631 = vpop.f32.mrf.mxu0
    %v3632 = vadd.f32 %v3452, %v3631
    %3633 = vmatmul.bf16.gmra.mxu0 %v3448
    %v3634 = vpop.f32.mrf.mxu0
    %v3635 = vadd.f32 %v3452, %v3634
    %v3636 = vpop.f32.mrf.mxu0
    %v3637 = vadd.f32 %v3452, %v3636
    %3638 = vmatmul.bf16.gmra.mxu0 %v3449
    %v3639 = vpop.f32.mrf.mxu0
    %v3640 = vadd.f32 %v3452, %v3639
    %v3641 = vpop.f32.mrf.mxu0
    %v3642 = vadd.f32 %v3452, %v3641
    %3643 = vmatmul.bf16.gmra.mxu0 %v3450
    %v3644 = vpop.f32.mrf.mxu0
    %v3645 = vadd.f32 %v3452, %v3644
    %v3646 = vpop.f32.mrf.mxu0
    %v3647 = vadd.f32 %v3452, %v3646
    %3648 = vdwg.mxu0
    %3649 = vmatpush.bf16.msra.mxu0 %v3585
    %3650 = vmatpush.bf16.msra.mxu0 %v3581
    %3651 = vmatpush.bf16.msra.mxu0 %v3577
    %3652 = vmatpush.bf16.msra.mxu0 %v3573
    %3653 = vmatpush.bf16.msra.mxu0 %v3569
    %3654 = vmatpush.bf16.msra.mxu0 %v3565
    %3655 = vmatpush.bf16.msra.mxu0 %v3561
    %3656 = vmatpush.bf16.msra.mxu0 %v3557
    %3657 = vmatmul.bf16.gmra.mxu0 %v3447
    %v3658 = vpop.f32.mrf.mxu0
    %v3659 = vadd.f32 %v3453, %v3658
    %v3660 = vpop.f32.mrf.mxu0
    %v3661 = vadd.f32 %v3453, %v3660
    %3662 = vmatmul.bf16.gmra.mxu0 %v3448
    %v3663 = vpop.f32.mrf.mxu0
    %v3664 = vadd.f32 %v3453, %v3663
    %v3665 = vpop.f32.mrf.mxu0
    %v3666 = vadd.f32 %v3453, %v3665
    %3667 = vmatmul.bf16.gmra.mxu0 %v3449
    %v3668 = vpop.f32.mrf.mxu0
    %v3669 = vadd.f32 %v3453, %v3668
    %v3670 = vpop.f32.mrf.mxu0
    %v3671 = vadd.f32 %v3453, %v3670
    %3672 = vmatmul.bf16.gmra.mxu0 %v3450
    %v3673 = vpop.f32.mrf.mxu0
    %v3674 = vadd.f32 %v3453, %v3673
    %v3675 = vpop.f32.mrf.mxu0
    %v3676 = vadd.f32 %v3453, %v3675
    %3677 = vdwg.mxu0
    %3678 = vmatpush.bf16.msra.mxu0 %v3586
    %3679 = vmatpush.bf16.msra.mxu0 %v3582
    %3680 = vmatpush.bf16.msra.mxu0 %v3578
    %3681 = vmatpush.bf16.msra.mxu0 %v3574
    %3682 = vmatpush.bf16.msra.mxu0 %v3570
    %3683 = vmatpush.bf16.msra.mxu0 %v3566
    %3684 = vmatpush.bf16.msra.mxu0 %v3562
    %3685 = vmatpush.bf16.msra.mxu0 %v3558
    %3686 = vmatmul.bf16.gmra.mxu0 %v3447
    %v3687 = vpop.f32.mrf.mxu0
    %v3688 = vadd.f32 %v3454, %v3687
    %v3689 = vpop.f32.mrf.mxu0
    %v3690 = vadd.f32 %v3454, %v3689
    %3691 = vmatmul.bf16.gmra.mxu0 %v3448
    %v3692 = vpop.f32.mrf.mxu0
    %v3693 = vadd.f32 %v3454, %v3692
    %v3694 = vpop.f32.mrf.mxu0
    %v3695 = vadd.f32 %v3454, %v3694
    %3696 = vmatmul.bf16.gmra.mxu0 %v3449
    %v3697 = vpop.f32.mrf.mxu0
    %v3698 = vadd.f32 %v3454, %v3697
    %v3699 = vpop.f32.mrf.mxu0
    %v3700 = vadd.f32 %v3454, %v3699
    %3701 = vmatmul.bf16.gmra.mxu0 %v3450
    %v3702 = vpop.f32.mrf.mxu0
    %v3703 = vadd.f32 %v3454, %v3702
    %v3704 = vpop.f32.mrf.mxu0
    %v3705 = vadd.f32 %v3454, %v3704
    %3706 = vdwg.mxu0
    %3707 = vmatpush.bf16.msra.mxu0 %v3587
    %3708 = vmatpush.bf16.msra.mxu0 %v3583
    %3709 = vmatpush.bf16.msra.mxu0 %v3579
    %3710 = vmatpush.bf16.msra.mxu0 %v3575
    %3711 = vmatpush.bf16.msra.mxu0 %v3571
    %3712 = vmatpush.bf16.msra.mxu0 %v3567
    %3713 = vmatpush.bf16.msra.mxu0 %v3563
    %3714 = vmatpush.bf16.msra.mxu0 %v3559
    %3715 = vmatmul.bf16.gmra.mxu0 %v3447
    %v3716 = vpop.f32.mrf.mxu0
    %v3717 = vadd.f32 %v3455, %v3716
    %v3718 = vpop.f32.mrf.mxu0
    %v3719 = vadd.f32 %v3455, %v3718
    %3720 = vmatmul.bf16.gmra.mxu0 %v3448
    %v3721 = vpop.f32.mrf.mxu0
    %v3722 = vadd.f32 %v3455, %v3721
    %v3723 = vpop.f32.mrf.mxu0
    %v3724 = vadd.f32 %v3455, %v3723
    %3725 = vmatmul.bf16.gmra.mxu0 %v3449
    %v3726 = vpop.f32.mrf.mxu0
    %v3727 = vadd.f32 %v3455, %v3726
    %v3728 = vpop.f32.mrf.mxu0
    %v3729 = vadd.f32 %v3455, %v3728
    %3730 = vmatmul.bf16.gmra.mxu0 %v3450
    %v3731 = vpop.f32.mrf.mxu0
    %v3732 = vadd.f32 %v3455, %v3731
    %v3733 = vpop.f32.mrf.mxu0
    %v3734 = vadd.f32 %v3455, %v3733
    %3735 = vdwg.mxu0
    %s3736 = scalar_lea.vmem %s1, 16
    %v3737 = vld [vmem:[%s3736] sm:$0xff]
    %s3738 = scalar_lea.vmem %s2, 16
    %v3739 = vld [vmem:[%s3738] sm:$0xff]
    %v3740 = vpack.c.bf16 %v3737, %v3737
    %v3773 = vunpack.c.l.b16 %v3414
    %v3774 = vunpack.c.h.b16 %v3414
    %v3775 = vunpack.c.l.b16 %v3415
    %v3776 = vunpack.c.h.b16 %v3415
    %v3777 = vunpack.c.l.b16 %v3416
    %v3778 = vunpack.c.h.b16 %v3416
    %v3779 = vunpack.c.l.b16 %v3417
    %v3780 = vunpack.c.h.b16 %v3417
    %v3781 = vunpack.c.l.b16 %v3418
    %v3782 = vunpack.c.h.b16 %v3418
    %v3783 = vunpack.c.l.b16 %v3419
    %v3784 = vunpack.c.h.b16 %v3419
    %v3785 = vunpack.c.l.b16 %v3420
    %v3786 = vunpack.c.h.b16 %v3420
    %v3787 = vunpack.c.l.b16 %v3421
    %v3788 = vunpack.c.h.b16 %v3421
    %v3789 = vunpack.c.l.b16 %v3422
    %v3790 = vunpack.c.h.b16 %v3422
    %v3791 = vunpack.c.l.b16 %v3423
    %v3792 = vunpack.c.h.b16 %v3423
    %v3793 = vunpack.c.l.b16 %v3424
    %v3794 = vunpack.c.h.b16 %v3424
    %v3795 = vunpack.c.l.b16 %v3425
    %v3796 = vunpack.c.h.b16 %v3425
    %v3797 = vunpack.c.l.b16 %v3426
    %v3798 = vunpack.c.h.b16 %v3426
    %v3799 = vunpack.c.l.b16 %v3427
    %v3800 = vunpack.c.h.b16 %v3427
    %v3801 = vunpack.c.l.b16 %v3428
    %v3802 = vunpack.c.h.b16 %v3428
    %v3803 = vunpack.c.l.b16 %v3429
    %v3804 = vunpack.c.h.b16 %v3429
    %v3805 = vunpack.c.l.b16 %v3430
    %v3806 = vunpack.c.h.b16 %v3430
    %v3807 = vunpack.c.l.b16 %v3431
    %v3808 = vunpack.c.h.b16 %v3431
    %v3809 = vunpack.c.l.b16 %v3432
    %v3810 = vunpack.c.h.b16 %v3432
    %v3811 = vunpack.c.l.b16 %v3433
    %v3812 = vunpack.c.h.b16 %v3433
    %v3813 = vunpack.c.l.b16 %v3434
    %v3814 = vunpack.c.h.b16 %v3434
    %v3815 = vunpack.c.l.b16 %v3435
    %v3816 = vunpack.c.h.b16 %v3435
    %v3817 = vunpack.c.l.b16 %v3436
    %v3818 = vunpack.c.h.b16 %v3436
    %v3819 = vunpack.c.l.b16 %v3437
    %v3820 = vunpack.c.h.b16 %v3437
    %v3821 = vunpack.c.l.b16 %v3438
    %v3822 = vunpack.c.h.b16 %v3438
    %v3823 = vunpack.c.l.b16 %v3439
    %v3824 = vunpack.c.h.b16 %v3439
    %v3825 = vunpack.c.l.b16 %v3440
    %v3826 = vunpack.c.h.b16 %v3440
    %v3827 = vunpack.c.l.b16 %v3441
    %v3828 = vunpack.c.h.b16 %v3441
    %v3829 = vunpack.c.l.b16 %v3442
    %v3830 = vunpack.c.h.b16 %v3442
    %v3831 = vunpack.c.l.b16 %v3443
    %v3832 = vunpack.c.h.b16 %v3443
    %v3833 = vunpack.c.l.b16 %v3444
    %v3834 = vunpack.c.h.b16 %v3444
    %v3835 = vunpack.c.l.b16 %v3445
    %v3836 = vunpack.c.h.b16 %v3445
    %v3837 = vpack.c.b16 %v3777, %v3773
    %v3838 = vpack.c.b16 %v3778, %v3774
    %v3839 = vpack.c.b16 %v3779, %v3775
    %v3840 = vpack.c.b16 %v3780, %v3776
    %v3841 = vpack.c.b16 %v3785, %v3781
    %v3842 = vpack.c.b16 %v3786, %v3782
    %v3843 = vpack.c.b16 %v3787, %v3783
    %v3844 = vpack.c.b16 %v3788, %v3784
    %v3845 = vpack.c.b16 %v3793, %v3789
    %v3846 = vpack.c.b16 %v3794, %v3790
    %v3847 = vpack.c.b16 %v3795, %v3791
    %v3848 = vpack.c.b16 %v3796, %v3792
    %v3849 = vpack.c.b16 %v3801, %v3797
    %v3850 = vpack.c.b16 %v3802, %v3798
    %v3851 = vpack.c.b16 %v3803, %v3799
    %v3852 = vpack.c.b16 %v3804, %v3800
    %v3853 = vpack.c.b16 %v3809, %v3805
    %v3854 = vpack.c.b16 %v3810, %v3806
    %v3855 = vpack.c.b16 %v3811, %v3807
    %v3856 = vpack.c.b16 %v3812, %v3808
    %v3857 = vpack.c.b16 %v3817, %v3813
    %v3858 = vpack.c.b16 %v3818, %v3814
    %v3859 = vpack.c.b16 %v3819, %v3815
    %v3860 = vpack.c.b16 %v3820, %v3816
    %v3861 = vpack.c.b16 %v3825, %v3821
    %v3862 = vpack.c.b16 %v3826, %v3822
    %v3863 = vpack.c.b16 %v3827, %v3823
    %v3864 = vpack.c.b16 %v3828, %v3824
    %v3865 = vpack.c.b16 %v3833, %v3829
    %v3866 = vpack.c.b16 %v3834, %v3830
    %v3867 = vpack.c.b16 %v3835, %v3831
    %v3868 = vpack.c.b16 %v3836, %v3832
    %3901 = vmatpush.bf16.msra.mxu0 %v3865
    %3902 = vmatpush.bf16.msra.mxu0 %v3861
    %3903 = vmatpush.bf16.msra.mxu0 %v3857
    %3904 = vmatpush.bf16.msra.mxu0 %v3853
    %3905 = vmatpush.bf16.msra.mxu0 %v3849
    %3906 = vmatpush.bf16.msra.mxu0 %v3845
    %3907 = vmatpush.bf16.msra.mxu0 %v3841
    %3908 = vmatpush.bf16.msra.mxu0 %v3837
    %3909 = vmatmul.bf16.gmra.mxu0 %v3740
    %v3910 = vpop.f32.mrf.mxu0
    %v3911 = vadd.f32 0.0, %v3910
    %v3912 = vpop.f32.mrf.mxu0
    %3913 = vdwg.mxu0
    %3914 = vmatpush.bf16.msra.mxu0 %v3866
    %3915 = vmatpush.bf16.msra.mxu0 %v3862
    %3916 = vmatpush.bf16.msra.mxu0 %v3858
    %3917 = vmatpush.bf16.msra.mxu0 %v3854
    %3918 = vmatpush.bf16.msra.mxu0 %v3850
    %3919 = vmatpush.bf16.msra.mxu0 %v3846
    %3920 = vmatpush.bf16.msra.mxu0 %v3842
    %3921 = vmatpush.bf16.msra.mxu0 %v3838
    %3922 = vmatmul.bf16.gmra.mxu0 %v3740
    %v3923 = vpop.f32.mrf.mxu0
    %v3924 = vadd.f32 0.0, %v3923
    %v3925 = vpop.f32.mrf.mxu0
    %3926 = vdwg.mxu0
    %3927 = vmatpush.bf16.msra.mxu0 %v3867
    %3928 = vmatpush.bf16.msra.mxu0 %v3863
    %3929 = vmatpush.bf16.msra.mxu0 %v3859
    %3930 = vmatpush.bf16.msra.mxu0 %v3855
    %3931 = vmatpush.bf16.msra.mxu0 %v3851
    %3932 = vmatpush.bf16.msra.mxu0 %v3847
    %3933 = vmatpush.bf16.msra.mxu0 %v3843
    %3934 = vmatpush.bf16.msra.mxu0 %v3839
    %3935 = vmatmul.bf16.gmra.mxu0 %v3740
    %v3936 = vpop.f32.mrf.mxu0
    %v3937 = vadd.f32 0.0, %v3936
    %v3938 = vpop.f32.mrf.mxu0
    %3939 = vdwg.mxu0
    %3940 = vmatpush.bf16.msra.mxu0 %v3868
    %3941 = vmatpush.bf16.msra.mxu0 %v3864
    %3942 = vmatpush.bf16.msra.mxu0 %v3860
    %3943 = vmatpush.bf16.msra.mxu0 %v3856
    %3944 = vmatpush.bf16.msra.mxu0 %v3852
    %3945 = vmatpush.bf16.msra.mxu0 %v3848
    %3946 = vmatpush.bf16.msra.mxu0 %v3844
    %3947 = vmatpush.bf16.msra.mxu0 %v3840
    %3948 = vmatmul.bf16.gmra.mxu0 %v3740
    %v3949 = vpop.f32.mrf.mxu0
    %v3950 = vadd.f32 0.0, %v3949
    %v3951 = vpop.f32.mrf.mxu0
    %3952 = vdwg.mxu0
    %v3953 = vadd.f32 %v3630, %v3911
    %v3954 = vadd.f32 %v3659, %v3924
    %v3955 = vadd.f32 %v3688, %v3937
    %v3956 = vadd.f32 %v3717, %v3950
    %v3957 = vxor.u32 %v3953, 2147483648
    %v3958 = vmul.f32 %v3957, 1.442695
    %v3959 = vpow.pop %v3958
    %v3960 = vadd.f32 %v3959, 1.0
    %v3961 = vrcp.pop %v3960
    %v3962 = vmul.f32 %v3960, %v3961
    %v3963 = vsub.f32 1.0, %v3962
    %v3964 = vmul.f32 %v3961, %v3963
    %v3965 = vadd.f32 %v3961, %v3964
    %vm3966 = vweird.f32 %v3960
    %vm3967 = vweird.f32 %v3961
    %vm3968 = vmor %vm3966, %vm3967
    %v3969 = vsel %vm3968, %v3961, %v3965
    %v3970 = vand.u32 2147483647, %v3960
    %vm3971 = vcmp.eq.f32.partialorder %v3970, 8.507059e+37
    %v3972 = vand.u32 %v3960, 2147483648
    %v3973 = vor.u32 1.1754944e-38, %v3972
    %v3974 = vsel %vm3971, %v3973, %v3969
    %v3975 = vmul.f32 1.0, %v3974
    %v3976 = vxor.u32 %v3954, 2147483648
    %v3977 = vmul.f32 %v3976, 1.442695
    %v3978 = vpow.pop %v3977
    %v3979 = vadd.f32 %v3978, 1.0
    %v3980 = vrcp.pop %v3979
    %v3981 = vmul.f32 %v3979, %v3980
    %v3982 = vsub.f32 1.0, %v3981
    %v3983 = vmul.f32 %v3980, %v3982
    %v3984 = vadd.f32 %v3980, %v3983
    %vm3985 = vweird.f32 %v3979
    %vm3986 = vweird.f32 %v3980
    %vm3987 = vmor %vm3985, %vm3986
    %v3988 = vsel %vm3987, %v3980, %v3984
    %v3989 = vand.u32 2147483647, %v3979
    %vm3990 = vcmp.eq.f32.partialorder %v3989, 8.507059e+37
    %v3991 = vand.u32 %v3979, 2147483648
    %v3992 = vor.u32 1.1754944e-38, %v3991
    %v3993 = vsel %vm3990, %v3992, %v3988
    %v3994 = vmul.f32 1.0, %v3993
    %v3995 = vtanh.pop %v3955
    %v3996 = vxor.u32 %v3956, 2147483648
    %v3997 = vmul.f32 %v3996, 1.442695
    %v3998 = vpow.pop %v3997
    %v3999 = vadd.f32 %v3998, 1.0
    %v4000 = vrcp.pop %v3999
    %v4001 = vmul.f32 %v3999, %v4000
    %v4002 = vsub.f32 1.0, %v4001
    %v4003 = vmul.f32 %v4000, %v4002
    %v4004 = vadd.f32 %v4000, %v4003
    %vm4005 = vweird.f32 %v3999
    %vm4006 = vweird.f32 %v4000
    %vm4007 = vmor %vm4005, %vm4006
    %v4008 = vsel %vm4007, %v4000, %v4004
    %v4009 = vand.u32 2147483647, %v3999
    %vm4010 = vcmp.eq.f32.partialorder %v4009, 8.507059e+37
    %v4011 = vand.u32 %v3999, 2147483648
    %v4012 = vor.u32 1.1754944e-38, %v4011
    %v4013 = vsel %vm4010, %v4012, %v4008
    %v4014 = vmul.f32 1.0, %v4013
    %v4015 = vmul.f32 %v3994, %v3739
    %v4016 = vmul.f32 %v3975, %v3995
    %v4017 = vadd.f32 %v4015, %v4016
    %v4018 = vtanh.pop %v4017
    %v4019 = vmul.f32 %v4014, %v4018
    %4020 = vst [vmem:[#allocation2] sm:$0xff] %v4019
    %v4021 = vpack.c.bf16 %v4019, %v4019
    %4022 = vmatpush.bf16.msra.mxu0 %v3865
    %4023 = vmatpush.bf16.msra.mxu0 %v3861
    %4024 = vmatpush.bf16.msra.mxu0 %v3857
    %4025 = vmatpush.bf16.msra.mxu0 %v3853
    %4026 = vmatpush.bf16.msra.mxu0 %v3849
    %4027 = vmatpush.bf16.msra.mxu0 %v3845
    %4028 = vmatpush.bf16.msra.mxu0 %v3841
    %4029 = vmatpush.bf16.msra.mxu0 %v3837
    %4030 = vmatmul.bf16.gmra.mxu0 %v4021
    %v4031 = vpop.f32.mrf.mxu0
    %v4032 = vadd.f32 0.0, %v4031
    %v4033 = vpop.f32.mrf.mxu0
    %4034 = vdwg.mxu0
    %4035 = vmatpush.bf16.msra.mxu0 %v3866
    %4036 = vmatpush.bf16.msra.mxu0 %v3862
    %4037 = vmatpush.bf16.msra.mxu0 %v3858
    %4038 = vmatpush.bf16.msra.mxu0 %v3854
    %4039 = vmatpush.bf16.msra.mxu0 %v3850
    %4040 = vmatpush.bf16.msra.mxu0 %v3846
    %4041 = vmatpush.bf16.msra.mxu0 %v3842
    %4042 = vmatpush.bf16.msra.mxu0 %v3838
    %4043 = vmatmul.bf16.gmra.mxu0 %v4021
    %v4044 = vpop.f32.mrf.mxu0
    %v4045 = vadd.f32 0.0, %v4044
    %v4046 = vpop.f32.mrf.mxu0
    %4047 = vdwg.mxu0
    %4048 = vmatpush.bf16.msra.mxu0 %v3867
    %4049 = vmatpush.bf16.msra.mxu0 %v3863
    %4050 = vmatpush.bf16.msra.mxu0 %v3859
    %4051 = vmatpush.bf16.msra.mxu0 %v3855
    %4052 = vmatpush.bf16.msra.mxu0 %v3851
    %4053 = vmatpush.bf16.msra.mxu0 %v3847
    %4054 = vmatpush.bf16.msra.mxu0 %v3843
    %4055 = vmatpush.bf16.msra.mxu0 %v3839
    %4056 = vmatmul.bf16.gmra.mxu0 %v4021
    %v4057 = vpop.f32.mrf.mxu0
    %v4058 = vadd.f32 0.0, %v4057
    %v4059 = vpop.f32.mrf.mxu0
    %4060 = vdwg.mxu0
    %4061 = vmatpush.bf16.msra.mxu0 %v3868
    %4062 = vmatpush.bf16.msra.mxu0 %v3864
    %4063 = vmatpush.bf16.msra.mxu0 %v3860
    %4064 = vmatpush.bf16.msra.mxu0 %v3856
    %4065 = vmatpush.bf16.msra.mxu0 %v3852
    %4066 = vmatpush.bf16.msra.mxu0 %v3848
    %4067 = vmatpush.bf16.msra.mxu0 %v3844
    %4068 = vmatpush.bf16.msra.mxu0 %v3840
    %4069 = vmatmul.bf16.gmra.mxu0 %v4021
    %v4070 = vpop.f32.mrf.mxu0
    %v4071 = vadd.f32 0.0, %v4070
    %v4072 = vpop.f32.mrf.mxu0
    %4073 = vdwg.mxu0
    %v4074 = vadd.f32 %v3632, %v4032
    %v4075 = vadd.f32 %v3661, %v4045
    %v4076 = vadd.f32 %v3690, %v4058
    %v4077 = vadd.f32 %v3719, %v4071
    %v4078 = vxor.u32 %v4074, 2147483648
    %v4079 = vmul.f32 %v4078, 1.442695
    %v4080 = vpow.pop %v4079
    %v4081 = vadd.f32 %v4080, 1.0
    %v4082 = vrcp.pop %v4081
    %v4083 = vmul.f32 %v4081, %v4082
    %v4084 = vsub.f32 1.0, %v4083
    %v4085 = vmul.f32 %v4082, %v4084
    %v4086 = vadd.f32 %v4082, %v4085
    %vm4087 = vweird.f32 %v4081
    %vm4088 = vweird.f32 %v4082
    %vm4089 = vmor %vm4087, %vm4088
    %v4090 = vsel %vm4089, %v4082, %v4086
    %v4091 = vand.u32 2147483647, %v4081
    %vm4092 = vcmp.eq.f32.partialorder %v4091, 8.507059e+37
    %v4093 = vand.u32 %v4081, 2147483648
    %v4094 = vor.u32 1.1754944e-38, %v4093
    %v4095 = vsel %vm4092, %v4094, %v4090
    %v4096 = vmul.f32 1.0, %v4095
    %v4097 = vxor.u32 %v4075, 2147483648
    %v4098 = vmul.f32 %v4097, 1.442695
    %v4099 = vpow.pop %v4098
    %v4100 = vadd.f32 %v4099, 1.0
    %v4101 = vrcp.pop %v4100
    %v4102 = vmul.f32 %v4100, %v4101
    %v4103 = vsub.f32 1.0, %v4102
    %v4104 = vmul.f32 %v4101, %v4103
    %v4105 = vadd.f32 %v4101, %v4104
    %vm4106 = vweird.f32 %v4100
    %vm4107 = vweird.f32 %v4101
    %vm4108 = vmor %vm4106, %vm4107
    %v4109 = vsel %vm4108, %v4101, %v4105
    %v4110 = vand.u32 2147483647, %v4100
    %vm4111 = vcmp.eq.f32.partialorder %v4110, 8.507059e+37
    %v4112 = vand.u32 %v4100, 2147483648
    %v4113 = vor.u32 1.1754944e-38, %v4112
    %v4114 = vsel %vm4111, %v4113, %v4109
    %v4115 = vmul.f32 1.0, %v4114
    %v4116 = vtanh.pop %v4076
    %v4117 = vxor.u32 %v4077, 2147483648
    %v4118 = vmul.f32 %v4117, 1.442695
    %v4119 = vpow.pop %v4118
    %v4120 = vadd.f32 %v4119, 1.0
    %v4121 = vrcp.pop %v4120
    %v4122 = vmul.f32 %v4120, %v4121
    %v4123 = vsub.f32 1.0, %v4122
    %v4124 = vmul.f32 %v4121, %v4123
    %v4125 = vadd.f32 %v4121, %v4124
    %vm4126 = vweird.f32 %v4120
    %vm4127 = vweird.f32 %v4121
    %vm4128 = vmor %vm4126, %vm4127
    %v4129 = vsel %vm4128, %v4121, %v4125
    %v4130 = vand.u32 2147483647, %v4120
    %vm4131 = vcmp.eq.f32.partialorder %v4130, 8.507059e+37
    %v4132 = vand.u32 %v4120, 2147483648
    %v4133 = vor.u32 1.1754944e-38, %v4132
    %v4134 = vsel %vm4131, %v4133, %v4129
    %v4135 = vmul.f32 1.0, %v4134
    %v4136 = vmul.f32 %v4115, %v4017
    %v4137 = vmul.f32 %v4096, %v4116
    %v4138 = vadd.f32 %v4136, %v4137
    %v4139 = vtanh.pop %v4138
    %v4140 = vmul.f32 %v4135, %v4139
    %4141 = vst [vmem:[#allocation2 + $0x8] sm:$0xff] %v4140
    %v4142 = vpack.c.bf16 %v4140, %v4140
    %4143 = vmatpush.bf16.msra.mxu0 %v3865
    %4144 = vmatpush.bf16.msra.mxu0 %v3861
    %4145 = vmatpush.bf16.msra.mxu0 %v3857
    %4146 = vmatpush.bf16.msra.mxu0 %v3853
    %4147 = vmatpush.bf16.msra.mxu0 %v3849
    %4148 = vmatpush.bf16.msra.mxu0 %v3845
    %4149 = vmatpush.bf16.msra.mxu0 %v3841
    %4150 = vmatpush.bf16.msra.mxu0 %v3837
    %4151 = vmatmul.bf16.gmra.mxu0 %v4142
    %v4152 = vpop.f32.mrf.mxu0
    %v4153 = vadd.f32 0.0, %v4152
    %v4154 = vpop.f32.mrf.mxu0
    %4155 = vdwg.mxu0
    %4156 = vmatpush.bf16.msra.mxu0 %v3866
    %4157 = vmatpush.bf16.msra.mxu0 %v3862
    %4158 = vmatpush.bf16.msra.mxu0 %v3858
    %4159 = vmatpush.bf16.msra.mxu0 %v3854
    %4160 = vmatpush.bf16.msra.mxu0 %v3850
    %4161 = vmatpush.bf16.msra.mxu0 %v3846
    %4162 = vmatpush.bf16.msra.mxu0 %v3842
    %4163 = vmatpush.bf16.msra.mxu0 %v3838
    %4164 = vmatmul.bf16.gmra.mxu0 %v4142
    %v4165 = vpop.f32.mrf.mxu0
    %v4166 = vadd.f32 0.0, %v4165
    %v4167 = vpop.f32.mrf.mxu0
    %4168 = vdwg.mxu0
    %4169 = vmatpush.bf16.msra.mxu0 %v3867
    %4170 = vmatpush.bf16.msra.mxu0 %v3863
    %4171 = vmatpush.bf16.msra.mxu0 %v3859
    %4172 = vmatpush.bf16.msra.mxu0 %v3855
    %4173 = vmatpush.bf16.msra.mxu0 %v3851
    %4174 = vmatpush.bf16.msra.mxu0 %v3847
    %4175 = vmatpush.bf16.msra.mxu0 %v3843
    %4176 = vmatpush.bf16.msra.mxu0 %v3839
    %4177 = vmatmul.bf16.gmra.mxu0 %v4142
    %v4178 = vpop.f32.mrf.mxu0
    %v4179 = vadd.f32 0.0, %v4178
    %v4180 = vpop.f32.mrf.mxu0
    %4181 = vdwg.mxu0
    %4182 = vmatpush.bf16.msra.mxu0 %v3868
    %4183 = vmatpush.bf16.msra.mxu0 %v3864
    %4184 = vmatpush.bf16.msra.mxu0 %v3860
    %4185 = vmatpush.bf16.msra.mxu0 %v3856
    %4186 = vmatpush.bf16.msra.mxu0 %v3852
    %4187 = vmatpush.bf16.msra.mxu0 %v3848
    %4188 = vmatpush.bf16.msra.mxu0 %v3844
    %4189 = vmatpush.bf16.msra.mxu0 %v3840
    %4190 = vmatmul.bf16.gmra.mxu0 %v4142
    %v4191 = vpop.f32.mrf.mxu0
    %v4192 = vadd.f32 0.0, %v4191
    %v4193 = vpop.f32.mrf.mxu0
    %4194 = vdwg.mxu0
    %v4195 = vadd.f32 %v3635, %v4153
    %v4196 = vadd.f32 %v3664, %v4166
    %v4197 = vadd.f32 %v3693, %v4179
    %v4198 = vadd.f32 %v3722, %v4192
    %v4199 = vxor.u32 %v4195, 2147483648
    %v4200 = vmul.f32 %v4199, 1.442695
    %v4201 = vpow.pop %v4200
    %v4202 = vadd.f32 %v4201, 1.0
    %v4203 = vrcp.pop %v4202
    %v4204 = vmul.f32 %v4202, %v4203
    %v4205 = vsub.f32 1.0, %v4204
    %v4206 = vmul.f32 %v4203, %v4205
    %v4207 = vadd.f32 %v4203, %v4206
    %vm4208 = vweird.f32 %v4202
    %vm4209 = vweird.f32 %v4203
    %vm4210 = vmor %vm4208, %vm4209
    %v4211 = vsel %vm4210, %v4203, %v4207
    %v4212 = vand.u32 2147483647, %v4202
    %vm4213 = vcmp.eq.f32.partialorder %v4212, 8.507059e+37
    %v4214 = vand.u32 %v4202, 2147483648
    %v4215 = vor.u32 1.1754944e-38, %v4214
    %v4216 = vsel %vm4213, %v4215, %v4211
    %v4217 = vmul.f32 1.0, %v4216
    %v4218 = vxor.u32 %v4196, 2147483648
    %v4219 = vmul.f32 %v4218, 1.442695
    %v4220 = vpow.pop %v4219
    %v4221 = vadd.f32 %v4220, 1.0
    %v4222 = vrcp.pop %v4221
    %v4223 = vmul.f32 %v4221, %v4222
    %v4224 = vsub.f32 1.0, %v4223
    %v4225 = vmul.f32 %v4222, %v4224
    %v4226 = vadd.f32 %v4222, %v4225
    %vm4227 = vweird.f32 %v4221
    %vm4228 = vweird.f32 %v4222
    %vm4229 = vmor %vm4227, %vm4228
    %v4230 = vsel %vm4229, %v4222, %v4226
    %v4231 = vand.u32 2147483647, %v4221
    %vm4232 = vcmp.eq.f32.partialorder %v4231, 8.507059e+37
    %v4233 = vand.u32 %v4221, 2147483648
    %v4234 = vor.u32 1.1754944e-38, %v4233
    %v4235 = vsel %vm4232, %v4234, %v4230
    %v4236 = vmul.f32 1.0, %v4235
    %v4237 = vtanh.pop %v4197
    %v4238 = vxor.u32 %v4198, 2147483648
    %v4239 = vmul.f32 %v4238, 1.442695
    %v4240 = vpow.pop %v4239
    %v4241 = vadd.f32 %v4240, 1.0
    %v4242 = vrcp.pop %v4241
    %v4243 = vmul.f32 %v4241, %v4242
    %v4244 = vsub.f32 1.0, %v4243
    %v4245 = vmul.f32 %v4242, %v4244
    %v4246 = vadd.f32 %v4242, %v4245
    %vm4247 = vweird.f32 %v4241
    %vm4248 = vweird.f32 %v4242
    %vm4249 = vmor %vm4247, %vm4248
    %v4250 = vsel %vm4249, %v4242, %v4246
    %v4251 = vand.u32 2147483647, %v4241
    %vm4252 = vcmp.eq.f32.partialorder %v4251, 8.507059e+37
    %v4253 = vand.u32 %v4241, 2147483648
    %v4254 = vor.u32 1.1754944e-38, %v4253
    %v4255 = vsel %vm4252, %v4254, %v4250
    %v4256 = vmul.f32 1.0, %v4255
    %v4257 = vmul.f32 %v4236, %v4138
    %v4258 = vmul.f32 %v4217, %v4237
    %v4259 = vadd.f32 %v4257, %v4258
    %v4260 = vtanh.pop %v4259
    %v4261 = vmul.f32 %v4256, %v4260
    %4262 = vst [vmem:[#allocation2 + $0x10] sm:$0xff] %v4261
    %v4263 = vpack.c.bf16 %v4261, %v4261
    %4264 = vmatpush.bf16.msra.mxu0 %v3865
    %4265 = vmatpush.bf16.msra.mxu0 %v3861
    %4266 = vmatpush.bf16.msra.mxu0 %v3857
    %4267 = vmatpush.bf16.msra.mxu0 %v3853
    %4268 = vmatpush.bf16.msra.mxu0 %v3849
    %4269 = vmatpush.bf16.msra.mxu0 %v3845
    %4270 = vmatpush.bf16.msra.mxu0 %v3841
    %4271 = vmatpush.bf16.msra.mxu0 %v3837
    %4272 = vmatmul.bf16.gmra.mxu0 %v4263
    %v4273 = vpop.f32.mrf.mxu0
    %v4274 = vadd.f32 0.0, %v4273
    %v4275 = vpop.f32.mrf.mxu0
    %4276 = vdwg.mxu0
    %4277 = vmatpush.bf16.msra.mxu0 %v3866
    %4278 = vmatpush.bf16.msra.mxu0 %v3862
    %4279 = vmatpush.bf16.msra.mxu0 %v3858
    %4280 = vmatpush.bf16.msra.mxu0 %v3854
    %4281 = vmatpush.bf16.msra.mxu0 %v3850
    %4282 = vmatpush.bf16.msra.mxu0 %v3846
    %4283 = vmatpush.bf16.msra.mxu0 %v3842
    %4284 = vmatpush.bf16.msra.mxu0 %v3838
    %4285 = vmatmul.bf16.gmra.mxu0 %v4263
    %v4286 = vpop.f32.mrf.mxu0
    %v4287 = vadd.f32 0.0, %v4286
    %v4288 = vpop.f32.mrf.mxu0
    %4289 = vdwg.mxu0
    %4290 = vmatpush.bf16.msra.mxu0 %v3867
    %4291 = vmatpush.bf16.msra.mxu0 %v3863
    %4292 = vmatpush.bf16.msra.mxu0 %v3859
    %4293 = vmatpush.bf16.msra.mxu0 %v3855
    %4294 = vmatpush.bf16.msra.mxu0 %v3851
    %4295 = vmatpush.bf16.msra.mxu0 %v3847
    %4296 = vmatpush.bf16.msra.mxu0 %v3843
    %4297 = vmatpush.bf16.msra.mxu0 %v3839
    %4298 = vmatmul.bf16.gmra.mxu0 %v4263
    %v4299 = vpop.f32.mrf.mxu0
    %v4300 = vadd.f32 0.0, %v4299
    %v4301 = vpop.f32.mrf.mxu0
    %4302 = vdwg.mxu0
    %4303 = vmatpush.bf16.msra.mxu0 %v3868
    %4304 = vmatpush.bf16.msra.mxu0 %v3864
    %4305 = vmatpush.bf16.msra.mxu0 %v3860
    %4306 = vmatpush.bf16.msra.mxu0 %v3856
    %4307 = vmatpush.bf16.msra.mxu0 %v3852
    %4308 = vmatpush.bf16.msra.mxu0 %v3848
    %4309 = vmatpush.bf16.msra.mxu0 %v3844
    %4310 = vmatpush.bf16.msra.mxu0 %v3840
    %4311 = vmatmul.bf16.gmra.mxu0 %v4263
    %v4312 = vpop.f32.mrf.mxu0
    %v4313 = vadd.f32 0.0, %v4312
    %v4314 = vpop.f32.mrf.mxu0
    %4315 = vdwg.mxu0
    %v4316 = vadd.f32 %v3637, %v4274
    %v4317 = vadd.f32 %v3666, %v4287
    %v4318 = vadd.f32 %v3695, %v4300
    %v4319 = vadd.f32 %v3724, %v4313
    %v4320 = vxor.u32 %v4316, 2147483648
    %v4321 = vmul.f32 %v4320, 1.442695
    %v4322 = vpow.pop %v4321
    %v4323 = vadd.f32 %v4322, 1.0
    %v4324 = vrcp.pop %v4323
    %v4325 = vmul.f32 %v4323, %v4324
    %v4326 = vsub.f32 1.0, %v4325
    %v4327 = vmul.f32 %v4324, %v4326
    %v4328 = vadd.f32 %v4324, %v4327
    %vm4329 = vweird.f32 %v4323
    %vm4330 = vweird.f32 %v4324
    %vm4331 = vmor %vm4329, %vm4330
    %v4332 = vsel %vm4331, %v4324, %v4328
    %v4333 = vand.u32 2147483647, %v4323
    %vm4334 = vcmp.eq.f32.partialorder %v4333, 8.507059e+37
    %v4335 = vand.u32 %v4323, 2147483648
    %v4336 = vor.u32 1.1754944e-38, %v4335
    %v4337 = vsel %vm4334, %v4336, %v4332
    %v4338 = vmul.f32 1.0, %v4337
    %v4339 = vxor.u32 %v4317, 2147483648
    %v4340 = vmul.f32 %v4339, 1.442695
    %v4341 = vpow.pop %v4340
    %v4342 = vadd.f32 %v4341, 1.0
    %v4343 = vrcp.pop %v4342
    %v4344 = vmul.f32 %v4342, %v4343
    %v4345 = vsub.f32 1.0, %v4344
    %v4346 = vmul.f32 %v4343, %v4345
    %v4347 = vadd.f32 %v4343, %v4346
    %vm4348 = vweird.f32 %v4342
    %vm4349 = vweird.f32 %v4343
    %vm4350 = vmor %vm4348, %vm4349
    %v4351 = vsel %vm4350, %v4343, %v4347
    %v4352 = vand.u32 2147483647, %v4342
    %vm4353 = vcmp.eq.f32.partialorder %v4352, 8.507059e+37
    %v4354 = vand.u32 %v4342, 2147483648
    %v4355 = vor.u32 1.1754944e-38, %v4354
    %v4356 = vsel %vm4353, %v4355, %v4351
    %v4357 = vmul.f32 1.0, %v4356
    %v4358 = vtanh.pop %v4318
    %v4359 = vxor.u32 %v4319, 2147483648
    %v4360 = vmul.f32 %v4359, 1.442695
    %v4361 = vpow.pop %v4360
    %v4362 = vadd.f32 %v4361, 1.0
    %v4363 = vrcp.pop %v4362
    %v4364 = vmul.f32 %v4362, %v4363
    %v4365 = vsub.f32 1.0, %v4364
    %v4366 = vmul.f32 %v4363, %v4365
    %v4367 = vadd.f32 %v4363, %v4366
    %vm4368 = vweird.f32 %v4362
    %vm4369 = vweird.f32 %v4363
    %vm4370 = vmor %vm4368, %vm4369
    %v4371 = vsel %vm4370, %v4363, %v4367
    %v4372 = vand.u32 2147483647, %v4362
    %vm4373 = vcmp.eq.f32.partialorder %v4372, 8.507059e+37
    %v4374 = vand.u32 %v4362, 2147483648
    %v4375 = vor.u32 1.1754944e-38, %v4374
    %v4376 = vsel %vm4373, %v4375, %v4371
    %v4377 = vmul.f32 1.0, %v4376
    %v4378 = vmul.f32 %v4357, %v4259
    %v4379 = vmul.f32 %v4338, %v4358
    %v4380 = vadd.f32 %v4378, %v4379
    %v4381 = vtanh.pop %v4380
    %v4382 = vmul.f32 %v4377, %v4381
    %4383 = vst [vmem:[#allocation2 + $0x18] sm:$0xff] %v4382
    %v4384 = vpack.c.bf16 %v4382, %v4382
    %4385 = vmatpush.bf16.msra.mxu0 %v3865
    %4386 = vmatpush.bf16.msra.mxu0 %v3861
    %4387 = vmatpush.bf16.msra.mxu0 %v3857
    %4388 = vmatpush.bf16.msra.mxu0 %v3853
    %4389 = vmatpush.bf16.msra.mxu0 %v3849
    %4390 = vmatpush.bf16.msra.mxu0 %v3845
    %4391 = vmatpush.bf16.msra.mxu0 %v3841
    %4392 = vmatpush.bf16.msra.mxu0 %v3837
    %4393 = vmatmul.bf16.gmra.mxu0 %v4384
    %v4394 = vpop.f32.mrf.mxu0
    %v4395 = vadd.f32 0.0, %v4394
    %v4396 = vpop.f32.mrf.mxu0
    %4397 = vdwg.mxu0
    %4398 = vmatpush.bf16.msra.mxu0 %v3866
    %4399 = vmatpush.bf16.msra.mxu0 %v3862
    %4400 = vmatpush.bf16.msra.mxu0 %v3858
    %4401 = vmatpush.bf16.msra.mxu0 %v3854
    %4402 = vmatpush.bf16.msra.mxu0 %v3850
    %4403 = vmatpush.bf16.msra.mxu0 %v3846
    %4404 = vmatpush.bf16.msra.mxu0 %v3842
    %4405 = vmatpush.bf16.msra.mxu0 %v3838
    %4406 = vmatmul.bf16.gmra.mxu0 %v4384
    %v4407 = vpop.f32.mrf.mxu0
    %v4408 = vadd.f32 0.0, %v4407
    %v4409 = vpop.f32.mrf.mxu0
    %4410 = vdwg.mxu0
    %4411 = vmatpush.bf16.msra.mxu0 %v3867
    %4412 = vmatpush.bf16.msra.mxu0 %v3863
    %4413 = vmatpush.bf16.msra.mxu0 %v3859
    %4414 = vmatpush.bf16.msra.mxu0 %v3855
    %4415 = vmatpush.bf16.msra.mxu0 %v3851
    %4416 = vmatpush.bf16.msra.mxu0 %v3847
    %4417 = vmatpush.bf16.msra.mxu0 %v3843
    %4418 = vmatpush.bf16.msra.mxu0 %v3839
    %4419 = vmatmul.bf16.gmra.mxu0 %v4384
    %v4420 = vpop.f32.mrf.mxu0
    %v4421 = vadd.f32 0.0, %v4420
    %v4422 = vpop.f32.mrf.mxu0
    %4423 = vdwg.mxu0
    %4424 = vmatpush.bf16.msra.mxu0 %v3868
    %4425 = vmatpush.bf16.msra.mxu0 %v3864
    %4426 = vmatpush.bf16.msra.mxu0 %v3860
    %4427 = vmatpush.bf16.msra.mxu0 %v3856
    %4428 = vmatpush.bf16.msra.mxu0 %v3852
    %4429 = vmatpush.bf16.msra.mxu0 %v3848
    %4430 = vmatpush.bf16.msra.mxu0 %v3844
    %4431 = vmatpush.bf16.msra.mxu0 %v3840
    %4432 = vmatmul.bf16.gmra.mxu0 %v4384
    %v4433 = vpop.f32.mrf.mxu0
    %v4434 = vadd.f32 0.0, %v4433
    %v4435 = vpop.f32.mrf.mxu0
    %4436 = vdwg.mxu0
    %v4437 = vadd.f32 %v3640, %v4395
    %v4438 = vadd.f32 %v3669, %v4408
    %v4439 = vadd.f32 %v3698, %v4421
    %v4440 = vadd.f32 %v3727, %v4434
    %v4441 = vxor.u32 %v4437, 2147483648
    %v4442 = vmul.f32 %v4441, 1.442695
    %v4443 = vpow.pop %v4442
    %v4444 = vadd.f32 %v4443, 1.0
    %v4445 = vrcp.pop %v4444
    %v4446 = vmul.f32 %v4444, %v4445
    %v4447 = vsub.f32 1.0, %v4446
    %v4448 = vmul.f32 %v4445, %v4447
    %v4449 = vadd.f32 %v4445, %v4448
    %vm4450 = vweird.f32 %v4444
    %vm4451 = vweird.f32 %v4445
    %vm4452 = vmor %vm4450, %vm4451
    %v4453 = vsel %vm4452, %v4445, %v4449
    %v4454 = vand.u32 2147483647, %v4444
    %vm4455 = vcmp.eq.f32.partialorder %v4454, 8.507059e+37
    %v4456 = vand.u32 %v4444, 2147483648
    %v4457 = vor.u32 1.1754944e-38, %v4456
    %v4458 = vsel %vm4455, %v4457, %v4453
    %v4459 = vmul.f32 1.0, %v4458
    %v4460 = vxor.u32 %v4438, 2147483648
    %v4461 = vmul.f32 %v4460, 1.442695
    %v4462 = vpow.pop %v4461
    %v4463 = vadd.f32 %v4462, 1.0
    %v4464 = vrcp.pop %v4463
    %v4465 = vmul.f32 %v4463, %v4464
    %v4466 = vsub.f32 1.0, %v4465
    %v4467 = vmul.f32 %v4464, %v4466
    %v4468 = vadd.f32 %v4464, %v4467
    %vm4469 = vweird.f32 %v4463
    %vm4470 = vweird.f32 %v4464
    %vm4471 = vmor %vm4469, %vm4470
    %v4472 = vsel %vm4471, %v4464, %v4468
    %v4473 = vand.u32 2147483647, %v4463
    %vm4474 = vcmp.eq.f32.partialorder %v4473, 8.507059e+37
    %v4475 = vand.u32 %v4463, 2147483648
    %v4476 = vor.u32 1.1754944e-38, %v4475
    %v4477 = vsel %vm4474, %v4476, %v4472
    %v4478 = vmul.f32 1.0, %v4477
    %v4479 = vtanh.pop %v4439
    %v4480 = vxor.u32 %v4440, 2147483648
    %v4481 = vmul.f32 %v4480, 1.442695
    %v4482 = vpow.pop %v4481
    %v4483 = vadd.f32 %v4482, 1.0
    %v4484 = vrcp.pop %v4483
    %v4485 = vmul.f32 %v4483, %v4484
    %v4486 = vsub.f32 1.0, %v4485
    %v4487 = vmul.f32 %v4484, %v4486
    %v4488 = vadd.f32 %v4484, %v4487
    %vm4489 = vweird.f32 %v4483
    %vm4490 = vweird.f32 %v4484
    %vm4491 = vmor %vm4489, %vm4490
    %v4492 = vsel %vm4491, %v4484, %v4488
    %v4493 = vand.u32 2147483647, %v4483
    %vm4494 = vcmp.eq.f32.partialorder %v4493, 8.507059e+37
    %v4495 = vand.u32 %v4483, 2147483648
    %v4496 = vor.u32 1.1754944e-38, %v4495
    %v4497 = vsel %vm4494, %v4496, %v4492
    %v4498 = vmul.f32 1.0, %v4497
    %v4499 = vmul.f32 %v4478, %v4380
    %v4500 = vmul.f32 %v4459, %v4479
    %v4501 = vadd.f32 %v4499, %v4500
    %v4502 = vtanh.pop %v4501
    %v4503 = vmul.f32 %v4498, %v4502
    %4504 = vst [vmem:[#allocation2 + $0x20] sm:$0xff] %v4503
    %v4505 = vpack.c.bf16 %v4503, %v4503
    %4506 = vmatpush.bf16.msra.mxu0 %v3865
    %4507 = vmatpush.bf16.msra.mxu0 %v3861
    %4508 = vmatpush.bf16.msra.mxu0 %v3857
    %4509 = vmatpush.bf16.msra.mxu0 %v3853
    %4510 = vmatpush.bf16.msra.mxu0 %v3849
    %4511 = vmatpush.bf16.msra.mxu0 %v3845
    %4512 = vmatpush.bf16.msra.mxu0 %v3841
    %4513 = vmatpush.bf16.msra.mxu0 %v3837
    %4514 = vmatmul.bf16.gmra.mxu0 %v4505
    %v4515 = vpop.f32.mrf.mxu0
    %v4516 = vadd.f32 0.0, %v4515
    %v4517 = vpop.f32.mrf.mxu0
    %4518 = vdwg.mxu0
    %4519 = vmatpush.bf16.msra.mxu0 %v3866
    %4520 = vmatpush.bf16.msra.mxu0 %v3862
    %4521 = vmatpush.bf16.msra.mxu0 %v3858
    %4522 = vmatpush.bf16.msra.mxu0 %v3854
    %4523 = vmatpush.bf16.msra.mxu0 %v3850
    %4524 = vmatpush.bf16.msra.mxu0 %v3846
    %4525 = vmatpush.bf16.msra.mxu0 %v3842
    %4526 = vmatpush.bf16.msra.mxu0 %v3838
    %4527 = vmatmul.bf16.gmra.mxu0 %v4505
    %v4528 = vpop.f32.mrf.mxu0
    %v4529 = vadd.f32 0.0, %v4528
    %v4530 = vpop.f32.mrf.mxu0
    %4531 = vdwg.mxu0
    %4532 = vmatpush.bf16.msra.mxu0 %v3867
    %4533 = vmatpush.bf16.msra.mxu0 %v3863
    %4534 = vmatpush.bf16.msra.mxu0 %v3859
    %4535 = vmatpush.bf16.msra.mxu0 %v3855
    %4536 = vmatpush.bf16.msra.mxu0 %v3851
    %4537 = vmatpush.bf16.msra.mxu0 %v3847
    %4538 = vmatpush.bf16.msra.mxu0 %v3843
    %4539 = vmatpush.bf16.msra.mxu0 %v3839
    %4540 = vmatmul.bf16.gmra.mxu0 %v4505
    %v4541 = vpop.f32.mrf.mxu0
    %v4542 = vadd.f32 0.0, %v4541
    %v4543 = vpop.f32.mrf.mxu0
    %4544 = vdwg.mxu0
    %4545 = vmatpush.bf16.msra.mxu0 %v3868
    %4546 = vmatpush.bf16.msra.mxu0 %v3864
    %4547 = vmatpush.bf16.msra.mxu0 %v3860
    %4548 = vmatpush.bf16.msra.mxu0 %v3856
    %4549 = vmatpush.bf16.msra.mxu0 %v3852
    %4550 = vmatpush.bf16.msra.mxu0 %v3848
    %4551 = vmatpush.bf16.msra.mxu0 %v3844
    %4552 = vmatpush.bf16.msra.mxu0 %v3840
    %4553 = vmatmul.bf16.gmra.mxu0 %v4505
    %v4554 = vpop.f32.mrf.mxu0
    %v4555 = vadd.f32 0.0, %v4554
    %v4556 = vpop.f32.mrf.mxu0
    %4557 = vdwg.mxu0
    %v4558 = vadd.f32 %v3642, %v4516
    %v4559 = vadd.f32 %v3671, %v4529
    %v4560 = vadd.f32 %v3700, %v4542
    %v4561 = vadd.f32 %v3729, %v4555
    %v4562 = vxor.u32 %v4558, 2147483648
    %v4563 = vmul.f32 %v4562, 1.442695
    %v4564 = vpow.pop %v4563
    %v4565 = vadd.f32 %v4564, 1.0
    %v4566 = vrcp.pop %v4565
    %v4567 = vmul.f32 %v4565, %v4566
    %v4568 = vsub.f32 1.0, %v4567
    %v4569 = vmul.f32 %v4566, %v4568
    %v4570 = vadd.f32 %v4566, %v4569
    %vm4571 = vweird.f32 %v4565
    %vm4572 = vweird.f32 %v4566
    %vm4573 = vmor %vm4571, %vm4572
    %v4574 = vsel %vm4573, %v4566, %v4570
    %v4575 = vand.u32 2147483647, %v4565
    %vm4576 = vcmp.eq.f32.partialorder %v4575, 8.507059e+37
    %v4577 = vand.u32 %v4565, 2147483648
    %v4578 = vor.u32 1.1754944e-38, %v4577
    %v4579 = vsel %vm4576, %v4578, %v4574
    %v4580 = vmul.f32 1.0, %v4579
    %v4581 = vxor.u32 %v4559, 2147483648
    %v4582 = vmul.f32 %v4581, 1.442695
    %v4583 = vpow.pop %v4582
    %v4584 = vadd.f32 %v4583, 1.0
    %v4585 = vrcp.pop %v4584
    %v4586 = vmul.f32 %v4584, %v4585
    %v4587 = vsub.f32 1.0, %v4586
    %v4588 = vmul.f32 %v4585, %v4587
    %v4589 = vadd.f32 %v4585, %v4588
    %vm4590 = vweird.f32 %v4584
    %vm4591 = vweird.f32 %v4585
    %vm4592 = vmor %vm4590, %vm4591
    %v4593 = vsel %vm4592, %v4585, %v4589
    %v4594 = vand.u32 2147483647, %v4584
    %vm4595 = vcmp.eq.f32.partialorder %v4594, 8.507059e+37
    %v4596 = vand.u32 %v4584, 2147483648
    %v4597 = vor.u32 1.1754944e-38, %v4596
    %v4598 = vsel %vm4595, %v4597, %v4593
    %v4599 = vmul.f32 1.0, %v4598
    %v4600 = vtanh.pop %v4560
    %v4601 = vxor.u32 %v4561, 2147483648
    %v4602 = vmul.f32 %v4601, 1.442695
    %v4603 = vpow.pop %v4602
    %v4604 = vadd.f32 %v4603, 1.0
    %v4605 = vrcp.pop %v4604
    %v4606 = vmul.f32 %v4604, %v4605
    %v4607 = vsub.f32 1.0, %v4606
    %v4608 = vmul.f32 %v4605, %v4607
    %v4609 = vadd.f32 %v4605, %v4608
    %vm4610 = vweird.f32 %v4604
    %vm4611 = vweird.f32 %v4605
    %vm4612 = vmor %vm4610, %vm4611
    %v4613 = vsel %vm4612, %v4605, %v4609
    %v4614 = vand.u32 2147483647, %v4604
    %vm4615 = vcmp.eq.f32.partialorder %v4614, 8.507059e+37
    %v4616 = vand.u32 %v4604, 2147483648
    %v4617 = vor.u32 1.1754944e-38, %v4616
    %v4618 = vsel %vm4615, %v4617, %v4613
    %v4619 = vmul.f32 1.0, %v4618
    %v4620 = vmul.f32 %v4599, %v4501
    %v4621 = vmul.f32 %v4580, %v4600
    %v4622 = vadd.f32 %v4620, %v4621
    %v4623 = vtanh.pop %v4622
    %v4624 = vmul.f32 %v4619, %v4623
    %4625 = vst [vmem:[#allocation2 + $0x28] sm:$0xff] %v4624
    %v4626 = vpack.c.bf16 %v4624, %v4624
    %4627 = vmatpush.bf16.msra.mxu0 %v3865
    %4628 = vmatpush.bf16.msra.mxu0 %v3861
    %4629 = vmatpush.bf16.msra.mxu0 %v3857
    %4630 = vmatpush.bf16.msra.mxu0 %v3853
    %4631 = vmatpush.bf16.msra.mxu0 %v3849
    %4632 = vmatpush.bf16.msra.mxu0 %v3845
    %4633 = vmatpush.bf16.msra.mxu0 %v3841
    %4634 = vmatpush.bf16.msra.mxu0 %v3837
    %4635 = vmatmul.bf16.gmra.mxu0 %v4626
    %v4636 = vpop.f32.mrf.mxu0
    %v4637 = vadd.f32 0.0, %v4636
    %v4638 = vpop.f32.mrf.mxu0
    %4639 = vdwg.mxu0
    %4640 = vmatpush.bf16.msra.mxu0 %v3866
    %4641 = vmatpush.bf16.msra.mxu0 %v3862
    %4642 = vmatpush.bf16.msra.mxu0 %v3858
    %4643 = vmatpush.bf16.msra.mxu0 %v3854
    %4644 = vmatpush.bf16.msra.mxu0 %v3850
    %4645 = vmatpush.bf16.msra.mxu0 %v3846
    %4646 = vmatpush.bf16.msra.mxu0 %v3842
    %4647 = vmatpush.bf16.msra.mxu0 %v3838
    %4648 = vmatmul.bf16.gmra.mxu0 %v4626
    %v4649 = vpop.f32.mrf.mxu0
    %v4650 = vadd.f32 0.0, %v4649
    %v4651 = vpop.f32.mrf.mxu0
    %4652 = vdwg.mxu0
    %4653 = vmatpush.bf16.msra.mxu0 %v3867
    %4654 = vmatpush.bf16.msra.mxu0 %v3863
    %4655 = vmatpush.bf16.msra.mxu0 %v3859
    %4656 = vmatpush.bf16.msra.mxu0 %v3855
    %4657 = vmatpush.bf16.msra.mxu0 %v3851
    %4658 = vmatpush.bf16.msra.mxu0 %v3847
    %4659 = vmatpush.bf16.msra.mxu0 %v3843
    %4660 = vmatpush.bf16.msra.mxu0 %v3839
    %4661 = vmatmul.bf16.gmra.mxu0 %v4626
    %v4662 = vpop.f32.mrf.mxu0
    %v4663 = vadd.f32 0.0, %v4662
    %v4664 = vpop.f32.mrf.mxu0
    %4665 = vdwg.mxu0
    %4666 = vmatpush.bf16.msra.mxu0 %v3868
    %4667 = vmatpush.bf16.msra.mxu0 %v3864
    %4668 = vmatpush.bf16.msra.mxu0 %v3860
    %4669 = vmatpush.bf16.msra.mxu0 %v3856
    %4670 = vmatpush.bf16.msra.mxu0 %v3852
    %4671 = vmatpush.bf16.msra.mxu0 %v3848
    %4672 = vmatpush.bf16.msra.mxu0 %v3844
    %4673 = vmatpush.bf16.msra.mxu0 %v3840
    %4674 = vmatmul.bf16.gmra.mxu0 %v4626
    %v4675 = vpop.f32.mrf.mxu0
    %v4676 = vadd.f32 0.0, %v4675
    %v4677 = vpop.f32.mrf.mxu0
    %4678 = vdwg.mxu0
    %v4679 = vadd.f32 %v3645, %v4637
    %v4680 = vadd.f32 %v3674, %v4650
    %v4681 = vadd.f32 %v3703, %v4663
    %v4682 = vadd.f32 %v3732, %v4676
    %v4683 = vxor.u32 %v4679, 2147483648
    %v4684 = vmul.f32 %v4683, 1.442695
    %v4685 = vpow.pop %v4684
    %v4686 = vadd.f32 %v4685, 1.0
    %v4687 = vrcp.pop %v4686
    %v4688 = vmul.f32 %v4686, %v4687
    %v4689 = vsub.f32 1.0, %v4688
    %v4690 = vmul.f32 %v4687, %v4689
    %v4691 = vadd.f32 %v4687, %v4690
    %vm4692 = vweird.f32 %v4686
    %vm4693 = vweird.f32 %v4687
    %vm4694 = vmor %vm4692, %vm4693
    %v4695 = vsel %vm4694, %v4687, %v4691
    %v4696 = vand.u32 2147483647, %v4686
    %vm4697 = vcmp.eq.f32.partialorder %v4696, 8.507059e+37
    %v4698 = vand.u32 %v4686, 2147483648
    %v4699 = vor.u32 1.1754944e-38, %v4698
    %v4700 = vsel %vm4697, %v4699, %v4695
    %v4701 = vmul.f32 1.0, %v4700
    %v4702 = vxor.u32 %v4680, 2147483648
    %v4703 = vmul.f32 %v4702, 1.442695
    %v4704 = vpow.pop %v4703
    %v4705 = vadd.f32 %v4704, 1.0
    %v4706 = vrcp.pop %v4705
    %v4707 = vmul.f32 %v4705, %v4706
    %v4708 = vsub.f32 1.0, %v4707
    %v4709 = vmul.f32 %v4706, %v4708
    %v4710 = vadd.f32 %v4706, %v4709
    %vm4711 = vweird.f32 %v4705
    %vm4712 = vweird.f32 %v4706
    %vm4713 = vmor %vm4711, %vm4712
    %v4714 = vsel %vm4713, %v4706, %v4710
    %v4715 = vand.u32 2147483647, %v4705
    %vm4716 = vcmp.eq.f32.partialorder %v4715, 8.507059e+37
    %v4717 = vand.u32 %v4705, 2147483648
    %v4718 = vor.u32 1.1754944e-38, %v4717
    %v4719 = vsel %vm4716, %v4718, %v4714
    %v4720 = vmul.f32 1.0, %v4719
    %v4721 = vtanh.pop %v4681
    %v4722 = vxor.u32 %v4682, 2147483648
    %v4723 = vmul.f32 %v4722, 1.442695
    %v4724 = vpow.pop %v4723
    %v4725 = vadd.f32 %v4724, 1.0
    %v4726 = vrcp.pop %v4725
    %v4727 = vmul.f32 %v4725, %v4726
    %v4728 = vsub.f32 1.0, %v4727
    %v4729 = vmul.f32 %v4726, %v4728
    %v4730 = vadd.f32 %v4726, %v4729
    %vm4731 = vweird.f32 %v4725
    %vm4732 = vweird.f32 %v4726
    %vm4733 = vmor %vm4731, %vm4732
    %v4734 = vsel %vm4733, %v4726, %v4730
    %v4735 = vand.u32 2147483647, %v4725
    %vm4736 = vcmp.eq.f32.partialorder %v4735, 8.507059e+37
    %v4737 = vand.u32 %v4725, 2147483648
    %v4738 = vor.u32 1.1754944e-38, %v4737
    %v4739 = vsel %vm4736, %v4738, %v4734
    %v4740 = vmul.f32 1.0, %v4739
    %v4741 = vmul.f32 %v4720, %v4622
    %v4742 = vmul.f32 %v4701, %v4721
    %v4743 = vadd.f32 %v4741, %v4742
    %v4744 = vtanh.pop %v4743
    %v4745 = vmul.f32 %v4740, %v4744
    %4746 = vst [vmem:[#allocation2 + $0x30] sm:$0xff] %v4745
    %v4747 = vpack.c.bf16 %v4745, %v4745
    %4748 = vmatpush.bf16.msra.mxu0 %v3865
    %4749 = vmatpush.bf16.msra.mxu0 %v3861
    %4750 = vmatpush.bf16.msra.mxu0 %v3857
    %4751 = vmatpush.bf16.msra.mxu0 %v3853
    %4752 = vmatpush.bf16.msra.mxu0 %v3849
    %4753 = vmatpush.bf16.msra.mxu0 %v3845
    %4754 = vmatpush.bf16.msra.mxu0 %v3841
    %4755 = vmatpush.bf16.msra.mxu0 %v3837
    %4756 = vmatmul.bf16.gmra.mxu0 %v4747
    %v4757 = vpop.f32.mrf.mxu0
    %v4758 = vadd.f32 0.0, %v4757
    %v4759 = vpop.f32.mrf.mxu0
    %4760 = vdwg.mxu0
    %4761 = vmatpush.bf16.msra.mxu0 %v3866
    %4762 = vmatpush.bf16.msra.mxu0 %v3862
    %4763 = vmatpush.bf16.msra.mxu0 %v3858
    %4764 = vmatpush.bf16.msra.mxu0 %v3854
    %4765 = vmatpush.bf16.msra.mxu0 %v3850
    %4766 = vmatpush.bf16.msra.mxu0 %v3846
    %4767 = vmatpush.bf16.msra.mxu0 %v3842
    %4768 = vmatpush.bf16.msra.mxu0 %v3838
    %4769 = vmatmul.bf16.gmra.mxu0 %v4747
    %v4770 = vpop.f32.mrf.mxu0
    %v4771 = vadd.f32 0.0, %v4770
    %v4772 = vpop.f32.mrf.mxu0
    %4773 = vdwg.mxu0
    %4774 = vmatpush.bf16.msra.mxu0 %v3867
    %4775 = vmatpush.bf16.msra.mxu0 %v3863
    %4776 = vmatpush.bf16.msra.mxu0 %v3859
    %4777 = vmatpush.bf16.msra.mxu0 %v3855
    %4778 = vmatpush.bf16.msra.mxu0 %v3851
    %4779 = vmatpush.bf16.msra.mxu0 %v3847
    %4780 = vmatpush.bf16.msra.mxu0 %v3843
    %4781 = vmatpush.bf16.msra.mxu0 %v3839
    %4782 = vmatmul.bf16.gmra.mxu0 %v4747
    %v4783 = vpop.f32.mrf.mxu0
    %v4784 = vadd.f32 0.0, %v4783
    %v4785 = vpop.f32.mrf.mxu0
    %4786 = vdwg.mxu0
    %4787 = vmatpush.bf16.msra.mxu0 %v3868
    %4788 = vmatpush.bf16.msra.mxu0 %v3864
    %4789 = vmatpush.bf16.msra.mxu0 %v3860
    %4790 = vmatpush.bf16.msra.mxu0 %v3856
    %4791 = vmatpush.bf16.msra.mxu0 %v3852
    %4792 = vmatpush.bf16.msra.mxu0 %v3848
    %4793 = vmatpush.bf16.msra.mxu0 %v3844
    %4794 = vmatpush.bf16.msra.mxu0 %v3840
    %4795 = vmatmul.bf16.gmra.mxu0 %v4747
    %v4796 = vpop.f32.mrf.mxu0
    %v4797 = vadd.f32 0.0, %v4796
    %v4798 = vpop.f32.mrf.mxu0
    %4799 = vdwg.mxu0
    %v4800 = vadd.f32 %v3647, %v4758
    %v4801 = vadd.f32 %v3676, %v4771
    %v4802 = vadd.f32 %v3705, %v4784
    %v4803 = vadd.f32 %v3734, %v4797
    %v4804 = vxor.u32 %v4800, 2147483648
    %v4805 = vmul.f32 %v4804, 1.442695
    %v4806 = vpow.pop %v4805
    %v4807 = vadd.f32 %v4806, 1.0
    %v4808 = vrcp.pop %v4807
    %v4809 = vmul.f32 %v4807, %v4808
    %v4810 = vsub.f32 1.0, %v4809
    %v4811 = vmul.f32 %v4808, %v4810
    %v4812 = vadd.f32 %v4808, %v4811
    %vm4813 = vweird.f32 %v4807
    %vm4814 = vweird.f32 %v4808
    %vm4815 = vmor %vm4813, %vm4814
    %v4816 = vsel %vm4815, %v4808, %v4812
    %v4817 = vand.u32 2147483647, %v4807
    %vm4818 = vcmp.eq.f32.partialorder %v4817, 8.507059e+37
    %v4819 = vand.u32 %v4807, 2147483648
    %v4820 = vor.u32 1.1754944e-38, %v4819
    %v4821 = vsel %vm4818, %v4820, %v4816
    %v4822 = vmul.f32 1.0, %v4821
    %v4823 = vxor.u32 %v4801, 2147483648
    %v4824 = vmul.f32 %v4823, 1.442695
    %v4825 = vpow.pop %v4824
    %v4826 = vadd.f32 %v4825, 1.0
    %v4827 = vrcp.pop %v4826
    %v4828 = vmul.f32 %v4826, %v4827
    %v4829 = vsub.f32 1.0, %v4828
    %v4830 = vmul.f32 %v4827, %v4829
    %v4831 = vadd.f32 %v4827, %v4830
    %vm4832 = vweird.f32 %v4826
    %vm4833 = vweird.f32 %v4827
    %vm4834 = vmor %vm4832, %vm4833
    %v4835 = vsel %vm4834, %v4827, %v4831
    %v4836 = vand.u32 2147483647, %v4826
    %vm4837 = vcmp.eq.f32.partialorder %v4836, 8.507059e+37
    %v4838 = vand.u32 %v4826, 2147483648
    %v4839 = vor.u32 1.1754944e-38, %v4838
    %v4840 = vsel %vm4837, %v4839, %v4835
    %v4841 = vmul.f32 1.0, %v4840
    %v4842 = vtanh.pop %v4802
    %v4843 = vxor.u32 %v4803, 2147483648
    %v4844 = vmul.f32 %v4843, 1.442695
    %v4845 = vpow.pop %v4844
    %v4846 = vadd.f32 %v4845, 1.0
    %v4847 = vrcp.pop %v4846
    %v4848 = vmul.f32 %v4846, %v4847
    %v4849 = vsub.f32 1.0, %v4848
    %v4850 = vmul.f32 %v4847, %v4849
    %v4851 = vadd.f32 %v4847, %v4850
    %vm4852 = vweird.f32 %v4846
    %vm4853 = vweird.f32 %v4847
    %vm4854 = vmor %vm4852, %vm4853
    %v4855 = vsel %vm4854, %v4847, %v4851
    %v4856 = vand.u32 2147483647, %v4846
    %vm4857 = vcmp.eq.f32.partialorder %v4856, 8.507059e+37
    %v4858 = vand.u32 %v4846, 2147483648
    %v4859 = vor.u32 1.1754944e-38, %v4858
    %v4860 = vsel %vm4857, %v4859, %v4855
    %v4861 = vmul.f32 1.0, %v4860
    %v4862 = vmul.f32 %v4841, %v4743
    %v4863 = vmul.f32 %v4822, %v4842
    %v4864 = vadd.f32 %v4862, %v4863
    %v4865 = vtanh.pop %v4864
    %v4866 = vmul.f32 %v4861, %v4865
    %4867 = vst [vmem:[#allocation2 + $0x38] sm:$0xff] %v4866
    %s4868 = scalar_lea.vmem %s15, 16
    %4869 = vst [vmem:[%s4868] sm:$0xff] %v4866
    %s4870 = scalar_lea.vmem %s16, 16
    %4871 = vst [vmem:[%s4870] sm:$0xff] %v4864
    %v4872 = vld [vmem:[#allocation2] sm:$0xff]
    %v4873 = vld [vmem:[#allocation2 + $0x8] sm:$0xff]
    %v4874 = vld [vmem:[#allocation2 + $0x10] sm:$0xff]
    %v4875 = vld [vmem:[#allocation2 + $0x18] sm:$0xff]
    %v4876 = vld [vmem:[#allocation2 + $0x20] sm:$0xff]
    %v4877 = vld [vmem:[#allocation2 + $0x28] sm:$0xff]
    %v4878 = vld [vmem:[#allocation2 + $0x30] sm:$0xff]
    %v4879 = vld [vmem:[#allocation2 + $0x38] sm:$0xff]
    %v4880 = vpack.c.bf16 %v4873, %v4872
    %v4881 = vpack.c.bf16 %v4875, %v4874
    %v4882 = vpack.c.bf16 %v4877, %v4876
    %v4883 = vpack.c.bf16 %v4879, %v4878
    %v4884 = vld [vmem:[%s12] sm:$0xf]
    %v4885 = vld [vmem:[%s12 + $0x4] sm:$0xf]
    %v4886 = vld [vmem:[%s12 + $0x8] sm:$0xf]
    %v4887 = vld [vmem:[%s12 + $0xc] sm:$0xf]
    %v4888 = vld [vmem:[%s12 + $0x10] sm:$0xf]
    %v4889 = vld [vmem:[%s12 + $0x14] sm:$0xf]
    %v4890 = vld [vmem:[%s12 + $0x18] sm:$0xf]
    %v4891 = vld [vmem:[%s12 + $0x1c] sm:$0xf]
    %v4892 = vld [vmem:[%s12 + $0x20] sm:$0xf]
    %v4893 = vld [vmem:[%s12 + $0x24] sm:$0xf]
    %v4894 = vld [vmem:[%s12 + $0x28] sm:$0xf]
    %v4895 = vld [vmem:[%s12 + $0x2c] sm:$0xf]
    %v4896 = vld [vmem:[%s12 + $0x30] sm:$0xf]
    %v4897 = vld [vmem:[%s12 + $0x34] sm:$0xf]
    %v4898 = vld [vmem:[%s12 + $0x38] sm:$0xf]
    %v4899 = vld [vmem:[%s12 + $0x3c] sm:$0xf]
    %v4900 = vld [vmem:[%s13] sm:$0x1]
    %v4902 = vperm.slane %v4900, 0
    %v4920 = vunpack.c.l.b16 %v4884
    %v4921 = vunpack.c.l.b16 %v4885
    %v4922 = vunpack.c.l.b16 %v4886
    %v4923 = vunpack.c.l.b16 %v4887
    %v4924 = vunpack.c.l.b16 %v4888
    %v4925 = vunpack.c.l.b16 %v4889
    %v4926 = vunpack.c.l.b16 %v4890
    %v4927 = vunpack.c.l.b16 %v4891
    %v4928 = vunpack.c.l.b16 %v4892
    %v4929 = vunpack.c.l.b16 %v4893
    %v4930 = vunpack.c.l.b16 %v4894
    %v4931 = vunpack.c.l.b16 %v4895
    %v4932 = vunpack.c.l.b16 %v4896
    %v4933 = vunpack.c.l.b16 %v4897
    %v4934 = vunpack.c.l.b16 %v4898
    %v4935 = vunpack.c.l.b16 %v4899
    %v4936 = vpack.c.b16 %v4921, %v4920
    %v4937 = vpack.c.b16 %v4923, %v4922
    %v4938 = vpack.c.b16 %v4925, %v4924
    %v4939 = vpack.c.b16 %v4927, %v4926
    %v4940 = vpack.c.b16 %v4929, %v4928
    %v4941 = vpack.c.b16 %v4931, %v4930
    %v4942 = vpack.c.b16 %v4933, %v4932
    %v4943 = vpack.c.b16 %v4935, %v4934
    %4952 = vmatpush.bf16.msra.mxu0 %v4943
    %4953 = vmatpush.bf16.msra.mxu0 %v4942
    %4954 = vmatpush.bf16.msra.mxu0 %v4941
    %4955 = vmatpush.bf16.msra.mxu0 %v4940
    %4956 = vmatpush.bf16.msra.mxu0 %v4939
    %4957 = vmatpush.bf16.msra.mxu0 %v4938
    %4958 = vmatpush.bf16.msra.mxu0 %v4937
    %4959 = vmatpush.bf16.msra.mxu0 %v4936
    %4960 = vmatmul.bf16.gmra.mxu0 %v4880
    %v4961 = vpop.f32.mrf.mxu0
    %v4962 = vadd.f32 %v4902, %v4961
    %v4963 = vpop.f32.mrf.mxu0
    %v4964 = vadd.f32 %v4902, %v4963
    %4965 = vmatmul.bf16.gmra.mxu0 %v4881
    %v4966 = vpop.f32.mrf.mxu0
    %v4967 = vadd.f32 %v4902, %v4966
    %v4968 = vpop.f32.mrf.mxu0
    %v4969 = vadd.f32 %v4902, %v4968
    %4970 = vmatmul.bf16.gmra.mxu0 %v4882
    %v4971 = vpop.f32.mrf.mxu0
    %v4972 = vadd.f32 %v4902, %v4971
    %v4973 = vpop.f32.mrf.mxu0
    %v4974 = vadd.f32 %v4902, %v4973
    %4975 = vmatmul.bf16.gmra.mxu0 %v4883
    %v4976 = vpop.f32.mrf.mxu0
    %v4977 = vadd.f32 %v4902, %v4976
    %v4978 = vpop.f32.mrf.mxu0
    %v4979 = vadd.f32 %v4902, %v4978
    %4980 = vdwg.mxu0
    %4981 = vst [vmem:[%s14] sm:$0xff] %v4962
    %4982 = vst [vmem:[%s14 + $0x8] sm:$0xff] %v4964
    %4983 = vst [vmem:[%s14 + $0x10] sm:$0xff] %v4967
    %4984 = vst [vmem:[%s14 + $0x18] sm:$0xff] %v4969
    %4985 = vst [vmem:[%s14 + $0x20] sm:$0xff] %v4972
    %4986 = vst [vmem:[%s14 + $0x28] sm:$0xff] %v4974
    %4987 = vst [vmem:[%s14 + $0x30] sm:$0xff] %v4977
    %4988 = vst [vmem:[%s14 + $0x38] sm:$0xff] %v4979
    // Predicated region
    $region82: #{lstm_model_simple_forward.1} parent=1 // pred_check
      _
    $region83: #{lstm_model_simple_forward.1} parent=1 // pred_check_branch
      %4990 = sbr.rel (0) target = $region85
    $region84: #{lstm_model_simple_forward.1} parent=1 // pred_region
      _
    $region85: #{lstm_model_simple_forward.1} parent=1 // pred_fallthru
      _
    // Predicated region
    $region86: #{lstm_model_simple_forward.1} parent=1 // pred_check
      _
    $region87: #{lstm_model_simple_forward.1} parent=1 // pred_check_branch
      %4992 = sbr.rel (0) target = $region89
    $region88: #{lstm_model_simple_forward.1} parent=1 // pred_region
      _
    $region89: #{lstm_model_simple_forward.1} parent=1 // pred_fallthru
      _
    // Predicated region
    $region90: #{lstm_model_simple_forward.1} parent=1 // pred_check
      _
    $region91: #{lstm_model_simple_forward.1} parent=1 // pred_check_branch
      %4994 = sbr.rel (0) target = $region93
    $region92: #{lstm_model_simple_forward.1} parent=1 // pred_region
      _
    $region93: #{lstm_model_simple_forward.1} parent=1 // pred_fallthru
      _
    // Predicated region
    $region94: #{lstm_model_simple_forward.1} parent=1 // pred_check
      _
    $region95: #{lstm_model_simple_forward.1} parent=1 // pred_check_branch
      %4996 = sbr.rel (0) target = $region97
    $region96: #{lstm_model_simple_forward.1} parent=1 // pred_region
      _
    $region97: #{lstm_model_simple_forward.1} parent=1 // pred_fallthru
      _
    // Predicated region
    $region98: #{lstm_model_simple_forward.1} parent=1 // pred_check
      _
    $region99: #{lstm_model_simple_forward.1} parent=1 // pred_check_branch
      %4998 = sbr.rel (0) target = $region101
    $region100: #{lstm_model_simple_forward.1} parent=1 // pred_region
      _
    $region101: #{lstm_model_simple_forward.1} parent=1 // pred_fallthru
      _
    // Predicated region
    $region102: #{lstm_model_simple_forward.1} parent=1 // pred_check
      _
    $region103: #{lstm_model_simple_forward.1} parent=1 // pred_check_branch
      %5000 = sbr.rel (0) target = $region105
    $region104: #{lstm_model_simple_forward.1} parent=1 // pred_region
      _
    $region105: #{lstm_model_simple_forward.1} parent=1 // pred_fallthru
      _
    %5001 = vsyncpa [#allocation4], 1
    %5002 = vsyncpa [#allocation6], 1
    %5003 = vsyncpa [#allocation9], 1
    %5004 = vsyncpa [#allocation12], 1

</llo_original>
